<compile_context>
chip_gen: v7x
topology: tpu7x:2x2x1
jax: 0.10.0
libtpu: 0.0.40
codegen_flags: <defaults>
</compile_context>

<pallas_src>
import functools
import math

import jax
import jax.numpy as jnp
from jax.experimental import pallas as pl
from jax.experimental.pallas import tpu as pltpu


def _round_up(x, m):
    return (x + m - 1) // m * m


def _device_kind():
    try:
        return jax.devices()[0].device_kind.lower()
    except Exception:   # pragma: no cover
        return ""


_KIND = _device_kind()
_IS_V5 = "v5" in _KIND
_IS_V6 = "v6" in _KIND

# v5e / v6e have 128 MiB physical VMEM -> large scoped budget; anything else
# (notably v7x with 64 MiB physical per TC) stays at a conservative 48 MiB.
VMEM_LIMIT_BYTES = (100 * 1024 * 1024) if (_IS_V5 or _IS_V6) else (48 * 1024 * 1024)
ROW_TILE = 512                 # row tile for the row-wise (LN / QKV / MLP) kernels
SEQ_ALIGN = 128                # lane-dense softmax / MXU-aligned key axis
ROW_BUFFERS = 3 if _IS_V5 else None   # deeper row pipeline on the lowest-BW chip
_SPLIT_FOR_DUAL_TC = not (_IS_V5 or _IS_V6)   # v7x has 2 TensorCores per chip
WEIGHT_PIPELINE = pl.Buffered(1)      # constant-index weights: single buffer


def _row_tile(rows):
    """Largest row tile <= ROW_TILE; on dual-TC chips prefer >= 2 grid steps."""
    tr = min(ROW_TILE, rows)
    if _SPLIT_FOR_DUAL_TC and rows <= ROW_TILE and rows >= 32 and rows % 32 == 0:
        tr = rows // 2
    return tr


def _row_spec(block_shape, index_map):
    if ROW_BUFFERS is None:
        return pl.BlockSpec(block_shape, index_map)
    return pl.BlockSpec(block_shape, index_map,
                        pipeline_mode=pl.Buffered(ROW_BUFFERS))


def _weight_spec(shape):
    ndim = len(shape)
    return pl.BlockSpec(shape, lambda i: (0,) * ndim, pipeline_mode=WEIGHT_PIPELINE)


# ---------------------------------------------------------------------------
# In-kernel helpers
# ---------------------------------------------------------------------------
def _layernorm_f32(x, w, b, eps=1e-5):
    # x: (rows, D); w, b: (1, D) -- statistics always in f32.
    x = x.astype(jnp.float32)
    mu = jnp.mean(x, axis=-1, keepdims=True)
    var = jnp.mean(jnp.square(x - mu), axis=-1, keepdims=True)
    return (x - mu) * jax.lax.rsqrt(var + eps) * w + b


# ---------------------------------------------------------------------------
# Kernels
# ---------------------------------------------------------------------------
def patch_embed_kernel(patches_ref, w_ref, b_ref, o_ref):
    # patches: (tm, C*p*p) bf16, w: (C*p*p, D) bf16, b: (1, D) f32
    o_ref[...] = (
        jnp.dot(patches_ref[...], w_ref[...], preferred_element_type=jnp.float32)
        + b_ref[...]
    )


def qkv_kernel(x_ref, ln1w_ref, ln1b_ref, wqkv_ref, bqkv_ref, qkv_ref):
    # Row-wise: LayerNorm (f32 stats) then ONE fused (D, 3D) bf16 projection.
    h = _layernorm_f32(x_ref[...], ln1w_ref[...], ln1b_ref[...]).astype(jnp.bfloat16)
    qkv_ref[...] = (
        jnp.dot(h, wqkv_ref[...], preferred_element_type=jnp.float32) + bqkv_ref[...]
    ).astype(jnp.bfloat16)   # q columns already carry the 1/sqrt(hd) scale


def attention_kernel(qkv_ref, o_ref, *, seq_len, num_heads, embed_dim):
    # One batch element per grid step; heads sliced in-kernel (static lane
    # slices), dots issued back-to-back in a fully unrolled head loop, and the
    # context written as a single lane-dense (S_pad, D) store.
    qkv = qkv_ref[...]                                         # (S_pad, 3D) bf16
    S = qkv.shape[0]
    hd = embed_dim // num_heads
    key_ok = jax.lax.broadcasted_iota(jnp.int32, (1, S), 1) < seq_len
    ctx = []
    for h in range(num_heads):
        q = qkv[:, h * hd:(h + 1) * hd]                        # pre-scaled q
        k = qkv[:, embed_dim + h * hd:embed_dim + (h + 1) * hd]
        v = qkv[:, 2 * embed_dim + h * hd:2 * embed_dim + (h + 1) * hd]
        s = jax.lax.dot_general(q, k, (((1,), (1,)), ((), ())),
                                preferred_element_type=jnp.float32)   # (S, S) f32
        s = jnp.where(key_ok, s, -1e30)                        # mask padded keys
        m = jnp.max(s, axis=-1, keepdims=True)
        p = jnp.exp(s - m)
        l = jnp.sum(p, axis=-1, keepdims=True)
        p = p * pl.reciprocal(l, approx=True)                  # divide on the EUP
        ctx.append(jnp.dot(p.astype(jnp.bfloat16), v,
                           preferred_element_type=jnp.float32).astype(jnp.bfloat16))
    o_ref[...] = jnp.concatenate(ctx, axis=-1)                 # lane-dense (S, D)


def mlp_kernel(x_ref, ctx_ref, projw_ref, projb_ref, ln2w_ref, ln2b_ref,
               fc1w_ref, fc1b_ref, fc2w_ref, fc2b_ref, o_ref):
    # Row-wise: attention output projection + residual, then pre-norm MLP + residual.
    x = x_ref[...]                                             # (tr, D) f32 residual
    attn = (jnp.dot(ctx_ref[...], projw_ref[...], preferred_element_type=jnp.float32)
            + projb_ref[...])
    x = x + attn
    h2 = _layernorm_f32(x, ln2w_ref[...], ln2b_ref[...]).astype(jnp.bfloat16)
    m1 = jnp.dot(h2, fc1w_ref[...], preferred_element_type=jnp.float32) + fc1b_ref[...]
    m1 = jax.nn.gelu(m1, approximate=True)
    m2 = (jnp.dot(m1.astype(jnp.bfloat16), fc2w_ref[...],
                  preferred_element_type=jnp.float32) + fc2b_ref[...])
    o_ref[...] = x + m2


def norm_head_kernel(cls_ref, lnw_ref, lnb_ref, hw_ref, hb_ref, o_ref):
    # cls: (Bp, D) f32 -> LayerNorm (f32) -> bf16 matmul -> (Bp, NC_pad) f32
    h = _layernorm_f32(cls_ref[...], lnw_ref[...], lnb_ref[...]).astype(jnp.bfloat16)
    o_ref[...] = jnp.dot(h, hw_ref[...], preferred_element_type=jnp.float32) + hb_ref[...]


# ---------------------------------------------------------------------------
# pallas_call wrappers
# ---------------------------------------------------------------------------
def patch_embed_call(patches, w, b, embed_dim):
    M, K = patches.shape
    D = embed_dim
    tm = _row_tile(M)
    return pl.pallas_call(
        patch_embed_kernel,
        grid=(pl.cdiv(M, tm),),
        in_specs=[_row_spec((tm, K), lambda i: (i, 0)),
                  _weight_spec((K, D)),
                  _weight_spec((1, D))],
        out_specs=pl.BlockSpec((tm, D), lambda i: (i, 0)),
        out_shape=jax.ShapeDtypeStruct((M, D), jnp.float32),
        compiler_params=pltpu.CompilerParams(
            dimension_semantics=("parallel",), vmem_limit_bytes=VMEM_LIMIT_BYTES),
        cost_estimate=pl.CostEstimate(
            flops=2 * M * K * D, transcendentals=0,
            bytes_accessed=M * K * 2 + K * D * 2 + D * 4 + M * D * 4),
    )(patches, w, b)


def qkv_call(x2d, ln1w, ln1b, wqkv, bqkv):
    R, D = x2d.shape
    threeD = wqkv.shape[1]
    tr = _row_tile(R)
    weights = (ln1w, ln1b, wqkv, bqkv)
    bytes_accessed = R * D * 4 + R * threeD * 2 + sum(
        int(w.size) * w.dtype.itemsize for w in weights)
    return pl.pallas_call(
        qkv_kernel,
        grid=(pl.cdiv(R, tr),),
        in_specs=[_row_spec((tr, D), lambda i: (i, 0))]
                 + [_weight_spec(w.shape) for w in weights],
        out_specs=pl.BlockSpec((tr, threeD), lambda i: (i, 0)),
        out_shape=jax.ShapeDtypeStruct((R, threeD), jnp.bfloat16),
        compiler_params=pltpu.CompilerParams(
            dimension_semantics=("parallel",), vmem_limit_bytes=VMEM_LIMIT_BYTES),
        cost_estimate=pl.CostEstimate(
            flops=2 * R * D * threeD, transcendentals=R,
            bytes_accessed=int(bytes_accessed)),
    )(x2d, *weights)


def attention_call(qkv3, seq_len, num_heads, embed_dim):
    B, S_pad, threeD = qkv3.shape
    H, hd = num_heads, embed_dim // num_heads
    kernel = functools.partial(attention_kernel, seq_len=seq_len,
                               num_heads=num_heads, embed_dim=embed_dim)
    in_spec = pl.BlockSpec((pl.Squeezed(), S_pad, threeD), lambda b: (b, 0, 0))
    out_spec = pl.BlockSpec((pl.Squeezed(), S_pad, embed_dim), lambda b: (b, 0, 0))
    return pl.pallas_call(
        kernel,
        grid=(B,),
        in_specs=[in_spec],
        out_specs=out_spec,
        out_shape=jax.ShapeDtypeStruct((B, S_pad, embed_dim), jnp.bfloat16),
        compiler_params=pltpu.CompilerParams(
            dimension_semantics=("parallel",), vmem_limit_bytes=VMEM_LIMIT_BYTES),
        cost_estimate=pl.CostEstimate(
            flops=4 * B * H * S_pad * S_pad * hd,
            transcendentals=B * H * S_pad * S_pad,
            bytes_accessed=B * S_pad * (threeD + embed_dim) * 2),
    )(qkv3)


def mlp_call(x2d, ctx2d, projw, projb, ln2w, ln2b, fc1w, fc1b, fc2w, fc2b):
    R, D = x2d.shape
    mlp_dim = fc1w.shape[1]
    tr = _row_tile(R)
    weights = (projw, projb, ln2w, ln2b, fc1w, fc1b, fc2w, fc2b)
    bytes_accessed = 2 * R * D * 4 + R * D * 2 + sum(
        int(w.size) * w.dtype.itemsize for w in weights)
    return pl.pallas_call(
        mlp_kernel,
        grid=(pl.cdiv(R, tr),),
        in_specs=[_row_spec((tr, D), lambda i: (i, 0)),
                  _row_spec((tr, D), lambda i: (i, 0))]
                 + [_weight_spec(w.shape) for w in weights],
        out_specs=pl.BlockSpec((tr, D), lambda i: (i, 0)),
        out_shape=jax.ShapeDtypeStruct((R, D), jnp.float32),
        compiler_params=pltpu.CompilerParams(
            dimension_semantics=("parallel",), vmem_limit_bytes=VMEM_LIMIT_BYTES),
        cost_estimate=pl.CostEstimate(
            flops=2 * R * D * (D + 2 * mlp_dim),
            transcendentals=R * mlp_dim,
            bytes_accessed=int(bytes_accessed)),
    )(x2d, ctx2d, *weights)


# ---------------------------------------------------------------------------
# Transformer block + full forward
# ---------------------------------------------------------------------------
def _prepare_block(raw, num_heads):
    """Fuse/scale/cast the PyTorch-shaped block params for the kernels."""
    (ln1w, ln1b, qkvw, qkvb, projw, projb,
     ln2w, ln2b, fc1w, fc1b, fc2w, fc2b) = raw
    D = projw.shape[0]
    hd = D // num_heads
    scale = 1.0 / math.sqrt(hd)
    # fold 1/sqrt(hd) into the q columns of the fused (D, 3D) weight and bias
    col_scale = jnp.concatenate(
        [jnp.full((1, D), scale, jnp.float32), jnp.ones((1, 2 * D), jnp.float32)],
        axis=1)
    wqkv = (qkvw * col_scale).astype(jnp.bfloat16)
    bqkv = qkvb * col_scale
    return (ln1w, ln1b, wqkv, bqkv,
            projw.astype(jnp.bfloat16), projb,
            ln2w, ln2b,
            fc1w.astype(jnp.bfloat16), fc1b,
            fc2w.astype(jnp.bfloat16), fc2b)


def transformer_block(x2d, blk, *, batch, seq_pad, seq_len, num_heads):
    (ln1w, ln1b, wqkv, bqkv, projw, projb,
     ln2w, ln2b, fc1w, fc1b, fc2w, fc2b) = blk
    R, D = x2d.shape

    qkv = qkv_call(x2d, ln1w, ln1b, wqkv, bqkv)            # (R, 3D) bf16
    ctx = attention_call(qkv.reshape(batch, seq_pad, 3 * D),
                         seq_len, num_heads, D)            # (B, S_pad, D) bf16
    ctx2d = ctx.reshape(R, D)                              # pure reshape, no transpose

    return mlp_call(x2d, ctx2d, projw, projb, ln2w, ln2b, fc1w, fc1b, fc2w, fc2b)


def vit_forward(x, params, *, patch_size, num_heads, num_classes):
    B, C, Himg, Wimg = x.shape
    p = patch_size
    Hp, Wp = Himg // p, Wimg // p
    N = Hp * Wp
    conv_w = params["conv_w"]
    D = conv_w.shape[0]

    # --- patch extraction (glue; stride==kernel conv == per-patch matmul) ---
    patches = (
        x.reshape(B, C, Hp, p, Wp, p)
        .transpose(0, 2, 4, 1, 3, 5)
        .reshape(B * N, C * p * p)
    ).astype(jnp.bfloat16)
    w = conv_w.reshape(D, C * p * p).T.astype(jnp.bfloat16)
    b = params["conv_b"].reshape(1, D).astype(jnp.float32)
    emb = patch_embed_call(patches, w, b, D)
    tokens = emb.reshape(B, N, D)

    # --- cls token + positional embedding, pad sequence (dropout = identity) ---
    cls = jnp.broadcast_to(params["cls_token"].astype(jnp.float32), (B, 1, D))
    seq = jnp.concatenate([cls, tokens], axis=1) + params["pos_embed"]
    S = 1 + N
    S_pad = _round_up(S, SEQ_ALIGN)
    if S_pad != S:
        seq = jnp.pad(seq, ((0, 0), (0, S_pad - S), (0, 0)))

    # --- transformer stack (residual stream kept in f32) ---
    x2d = seq.reshape(B * S_pad, D)
    for raw in params["blocks"]:
        blk = _prepare_block(raw, num_heads)
        x2d = transformer_block(x2d, blk, batch=B, seq_pad=S_pad,
                                seq_len=S, num_heads=num_heads)
    seq = x2d.reshape(B, S_pad, D)

    # --- final norm + classification head (only the cls row is needed) ---
    cls_out = seq[:, 0, :]                                  # (B, D) f32
    B_pad = _round_up(B, 8)                                 # sublane-aligned rows
    if B_pad != B:
        cls_out = jnp.pad(cls_out, ((0, B_pad - B), (0, 0)))
    NC_pad = _round_up(num_classes, 128)                    # lane-dense logits
    hw = jnp.zeros((D, NC_pad), jnp.bfloat16).at[:, :num_classes].set(
        params["head_w"].astype(jnp.bfloat16))
    hb = jnp.zeros((1, NC_pad), jnp.float32).at[:, :num_classes].set(params["head_b"])
    vmem = pl.BlockSpec(memory_space=pltpu.MemorySpace.VMEM)
    logits = pl.pallas_call(
        norm_head_kernel,
        in_specs=[vmem] * 5,
        out_specs=vmem,
        out_shape=jax.ShapeDtypeStruct((B_pad, NC_pad), jnp.float32),
        compiler_params=pltpu.CompilerParams(vmem_limit_bytes=VMEM_LIMIT_BYTES),
        cost_estimate=pl.CostEstimate(
            flops=2 * B_pad * D * NC_pad, transcendentals=B_pad,
            bytes_accessed=B_pad * D * 4 + D * NC_pad * 2 + NC_pad * 4
                           + B_pad * NC_pad * 4),
    )(cls_out, params["ln_w"], params["ln_b"], hw, hb)
    return logits[:B, :num_classes]


# ---------------------------------------------------------------------------
# Deterministic parameter initialization (shapes from the PyTorch __init__)
# ---------------------------------------------------------------------------
def init_params(key, *, img_size, patch_size, in_channels, num_classes,
                embed_dim, depth, mlp_dim):
    n_patches = (img_size // patch_size) ** 2
    D = embed_dim
    keys = iter(jax.random.split(key, 16 + depth * 8))

    def nrm(shape):
        return jax.random.normal(next(keys), shape, dtype=jnp.float32) * 0.02

    params = dict(
        conv_w=nrm((D, in_channels, patch_size, patch_size)),
        conv_b=nrm((D,)),
        cls_token=nrm((1, 1, D)),
        pos_embed=nrm((1, 1 + n_patches, D)),
        ln_w=jnp.ones((1, D), jnp.float32),
        ln_b=jnp.zeros((1, D), jnp.float32),
        head_w=nrm((D, num_classes)),
        head_b=jnp.zeros((1, num_classes), jnp.float32),
    )
    blocks = []
    for _ in range(depth):
        blocks.append((
            jnp.ones((1, D), jnp.float32),          # ln1_w
            jnp.zeros((1, D), jnp.float32),         # ln1_b
            nrm((D, 3 * D)),                        # qkv_w
            jnp.zeros((1, 3 * D), jnp.float32),     # qkv_b
            nrm((D, D)),                            # proj_w
            jnp.zeros((1, D), jnp.float32),         # proj_b
            jnp.ones((1, D), jnp.float32),          # ln2_w
            jnp.zeros((1, D), jnp.float32),         # ln2_b
            nrm((D, mlp_dim)),                      # fc1_w
            jnp.zeros((1, mlp_dim), jnp.float32),   # fc1_b
            nrm((mlp_dim, D)),                      # fc2_w
            jnp.zeros((1, D), jnp.float32),         # fc2_b
        ))
    params["blocks"] = blocks
    return params


# ---------------------------------------------------------------------------
if __name__ == "__main__":
    # Small, self-consistent ViT config.
    B, C, H = 2, 3, 16
    patch_size = 4
    embed_dim = 32
    depth = 2
    num_heads = 4
    mlp_dim = 64
    num_classes = 10

    key = jax.random.PRNGKey(0)
    kx, kp = jax.random.split(key)
    x = jax.random.normal(kx, (B, C, H, H), dtype=jnp.float32)
    params = init_params(
        kp,
        img_size=H,
        patch_size=patch_size,
        in_channels=C,
        num_classes=num_classes,
        embed_dim=embed_dim,
        depth=depth,
        mlp_dim=mlp_dim,
    )

    fwd = jax.jit(functools.partial(
        vit_forward,
        patch_size=patch_size,
        num_heads=num_heads,
        num_classes=num_classes,
    ))
    out = fwd(x, params)
    jax.block_until_ready(out)
    assert out.shape == (B, num_classes)
    assert bool(jnp.all(jnp.isfinite(out)))
    print("KERNEL_OK")
</pallas_src>

<mosaic_0001>
module attributes {stable_mosaic.version = 11 : i64} {
  func.func @qkv_kernel(%arg0: i32, %arg1: memref<128x32xf32, #tpu.memory_space<vmem>>, %arg2: memref<1x32xf32, #tpu.memory_space<vmem>>, %arg3: memref<1x32xf32, #tpu.memory_space<vmem>>, %arg4: memref<32x96xbf16, #tpu.memory_space<vmem>>, %arg5: memref<1x96xf32, #tpu.memory_space<vmem>>, %arg6: memref<128x96xbf16, #tpu.memory_space<vmem>>) attributes {dimension_semantics = [#tpu.dimension_semantics<parallel>], iteration_bounds = array<i64: 2>, scalar_prefetch = 0 : i64, scratch_operands = 0 : i64, tpu.core_type = #tpu.core_type<tc>, window_params = [{transform_indices = @transform_0, window_bounds = array<i64: 128, 32>}, {pipeline_mode = #tpu.pipeline_mode<synchronous>, transform_indices = @transform_1, window_bounds = array<i64: 1, 32>}, {pipeline_mode = #tpu.pipeline_mode<synchronous>, transform_indices = @transform_2, window_bounds = array<i64: 1, 32>}, {pipeline_mode = #tpu.pipeline_mode<synchronous>, transform_indices = @transform_3, window_bounds = array<i64: 32, 96>}, {pipeline_mode = #tpu.pipeline_mode<synchronous>, transform_indices = @transform_4, window_bounds = array<i64: 1, 96>}, {transform_indices = @transform_5, window_bounds = array<i64: 128, 96>}]} {
    %c0 = arith.constant 0 : index
    %c0_0 = arith.constant 0 : index
    %0 = vector.load %arg1[%c0, %c0_0] : memref<128x32xf32, #tpu.memory_space<vmem>>, vector<128x32xf32>
    %c0_1 = arith.constant 0 : index
    %c0_2 = arith.constant 0 : index
    %1 = vector.load %arg2[%c0_1, %c0_2] : memref<1x32xf32, #tpu.memory_space<vmem>>, vector<1x32xf32>
    %c0_3 = arith.constant 0 : index
    %c0_4 = arith.constant 0 : index
    %2 = vector.load %arg3[%c0_3, %c0_4] : memref<1x32xf32, #tpu.memory_space<vmem>>, vector<1x32xf32>
    %cst = arith.constant dense<0.000000e+00> : vector<128xf32>
    %3 = vector.multi_reduction <add>, %0, %cst [1] : vector<128x32xf32> to vector<128xf32>
    %4 = vector.shape_cast %3 : vector<128xf32> to vector<128x1xf32>
    %cst_5 = arith.constant 3.200000e+01 : f32
    %5 = vector.broadcast %cst_5 : f32 to vector<128x1xf32>
    %6 = arith.divf %4, %5 : vector<128x1xf32>
    %7 = vector.broadcast %6 : vector<128x1xf32> to vector<128x32xf32>
    %8 = arith.subf %0, %7 : vector<128x32xf32>
    %9 = arith.mulf %8, %8 : vector<128x32xf32>
    %cst_6 = arith.constant dense<0.000000e+00> : vector<128xf32>
    %10 = vector.multi_reduction <add>, %9, %cst_6 [1] : vector<128x32xf32> to vector<128xf32>
    %11 = vector.shape_cast %10 : vector<128xf32> to vector<128x1xf32>
    %cst_7 = arith.constant 3.200000e+01 : f32
    %12 = vector.broadcast %cst_7 : f32 to vector<128x1xf32>
    %13 = arith.divf %11, %12 : vector<128x1xf32>
    %14 = vector.broadcast %6 : vector<128x1xf32> to vector<128x32xf32>
    %15 = arith.subf %0, %14 : vector<128x32xf32>
    %cst_8 = arith.constant 9.99999974E-6 : f32
    %16 = vector.broadcast %cst_8 : f32 to vector<128x1xf32>
    %17 = arith.addf %13, %16 : vector<128x1xf32>
    %18 = math.rsqrt %17 : vector<128x1xf32>
    %19 = vector.broadcast %18 : vector<128x1xf32> to vector<128x32xf32>
    %20 = arith.mulf %15, %19 : vector<128x32xf32>
    %21 = vector.broadcast %1 : vector<1x32xf32> to vector<128x32xf32>
    %22 = arith.mulf %20, %21 : vector<128x32xf32>
    %23 = vector.broadcast %2 : vector<1x32xf32> to vector<128x32xf32>
    %24 = arith.addf %22, %23 : vector<128x32xf32>
    %25 = arith.truncf %24 : vector<128x32xf32> to vector<128x32xbf16>
    %c0_9 = arith.constant 0 : index
    %c0_10 = arith.constant 0 : index
    %26 = vector.load %arg4[%c0_9, %c0_10] : memref<32x96xbf16, #tpu.memory_space<vmem>>, vector<32x96xbf16>
    %cst_11 = arith.constant dense<0.000000e+00> : vector<128x96xf32>
    %27 = tpu.matmul %25, %26, %cst_11 {dimension_numbers = #tpu.dot_dimension_numbers<[1], [0], [0], [1], [0, 0, 1, 1], [], []>} : vector<128x32xbf16>, vector<32x96xbf16>, vector<128x96xf32> -> vector<128x96xf32>
    %c0_12 = arith.constant 0 : index
    %c0_13 = arith.constant 0 : index
    %28 = vector.load %arg5[%c0_12, %c0_13] : memref<1x96xf32, #tpu.memory_space<vmem>>, vector<1x96xf32>
    %29 = vector.broadcast %28 : vector<1x96xf32> to vector<128x96xf32>
    %30 = arith.addf %27, %29 : vector<128x96xf32>
    %31 = arith.truncf %30 : vector<128x96xf32> to vector<128x96xbf16>
    %c0_14 = arith.constant 0 : index
    %c0_15 = arith.constant 0 : index
    %32 = vector.load %arg6[%c0_14, %c0_15] : memref<128x96xbf16, #tpu.memory_space<vmem>>, vector<128x96xbf16>
    tpu.vector_store %arg6[%c0_14, %c0_15], %31 {strides = array<i32>} : memref<128x96xbf16, #tpu.memory_space<vmem>>, vector<128x96xbf16>,
    return
  }
  func.func @transform_0(%arg0: i32) -> (i32, i32) {
    %c0_i32 = arith.constant 0 : i32
    %c0_i32_0 = arith.constant 0 : i32
    return %arg0, %c0_i32 : i32, i32
  }
  func.func @transform_1(%arg0: i32) -> (i32, i32) {
    %c0_i32 = arith.constant 0 : i32
    %c0_i32_0 = arith.constant 0 : i32
    %c0_i32_1 = arith.constant 0 : i32
    return %c0_i32, %c0_i32_0 : i32, i32
  }
  func.func @transform_2(%arg0: i32) -> (i32, i32) {
    %c0_i32 = arith.constant 0 : i32
    %c0_i32_0 = arith.constant 0 : i32
    %c0_i32_1 = arith.constant 0 : i32
    return %c0_i32, %c0_i32_0 : i32, i32
  }
  func.func @transform_3(%arg0: i32) -> (i32, i32) {
    %c0_i32 = arith.constant 0 : i32
    %c0_i32_0 = arith.constant 0 : i32
    %c0_i32_1 = arith.constant 0 : i32
    return %c0_i32, %c0_i32_0 : i32, i32
  }
  func.func @transform_4(%arg0: i32) -> (i32, i32) {
    %c0_i32 = arith.constant 0 : i32
    %c0_i32_0 = arith.constant 0 : i32
    %c0_i32_1 = arith.constant 0 : i32
    return %c0_i32, %c0_i32_0 : i32, i32
  }
  func.func @transform_5(%arg0: i32) -> (i32, i32) {
    %c0_i32 = arith.constant 0 : i32
    %c0_i32_0 = arith.constant 0 : i32
    return %arg0, %c0_i32 : i32, i32
  }
}

module attributes {stable_mosaic.version = 11 : i64} {
  func.func @patch_embed_kernel(%arg0: i32, %arg1: memref<16x48xbf16, #tpu.memory_space<vmem>>, %arg2: memref<48x32xbf16, #tpu.memory_space<vmem>>, %arg3: memref<1x32xf32, #tpu.memory_space<vmem>>, %arg4: memref<16x32xf32, #tpu.memory_space<vmem>>) attributes {dimension_semantics = [#tpu.dimension_semantics<parallel>], iteration_bounds = array<i64: 2>, scalar_prefetch = 0 : i64, scratch_operands = 0 : i64, tpu.core_type = #tpu.core_type<tc>, window_params = [{transform_indices = @transform_0, window_bounds = array<i64: 16, 48>}, {pipeline_mode = #tpu.pipeline_mode<synchronous>, transform_indices = @transform_1, window_bounds = array<i64: 48, 32>}, {pipeline_mode = #tpu.pipeline_mode<synchronous>, transform_indices = @transform_2, window_bounds = array<i64: 1, 32>}, {transform_indices = @transform_3, window_bounds = array<i64: 16, 32>}]} {
    %c0 = arith.constant 0 : index
    %c0_0 = arith.constant 0 : index
    %0 = vector.load %arg1[%c0, %c0_0] : memref<16x48xbf16, #tpu.memory_space<vmem>>, vector<16x48xbf16>
    %c0_1 = arith.constant 0 : index
    %c0_2 = arith.constant 0 : index
    %1 = vector.load %arg2[%c0_1, %c0_2] : memref<48x32xbf16, #tpu.memory_space<vmem>>, vector<48x32xbf16>
    %cst = arith.constant dense<0.000000e+00> : vector<16x32xf32>
    %2 = tpu.matmul %0, %1, %cst {dimension_numbers = #tpu.dot_dimension_numbers<[1], [0], [0], [1], [0, 0, 1, 1], [], []>} : vector<16x48xbf16>, vector<48x32xbf16>, vector<16x32xf32> -> vector<16x32xf32>
    %c0_3 = arith.constant 0 : index
    %c0_4 = arith.constant 0 : index
    %3 = vector.load %arg3[%c0_3, %c0_4] : memref<1x32xf32, #tpu.memory_space<vmem>>, vector<1x32xf32>
    %4 = vector.broadcast %3 : vector<1x32xf32> to vector<16x32xf32>
    %5 = arith.addf %2, %4 : vector<16x32xf32>
    %c0_5 = arith.constant 0 : index
    %c0_6 = arith.constant 0 : index
    %6 = vector.load %arg4[%c0_5, %c0_6] : memref<16x32xf32, #tpu.memory_space<vmem>>, vector<16x32xf32>
    tpu.vector_store %arg4[%c0_5, %c0_6], %5 {strides = array<i32>} : memref<16x32xf32, #tpu.memory_space<vmem>>, vector<16x32xf32>,
    return
  }
  func.func @transform_0(%arg0: i32) -> (i32, i32) {
    %c0_i32 = arith.constant 0 : i32
    %c0_i32_0 = arith.constant 0 : i32
    return %arg0, %c0_i32 : i32, i32
  }
  func.func @transform_1(%arg0: i32) -> (i32, i32) {
    %c0_i32 = arith.constant 0 : i32
    %c0_i32_0 = arith.constant 0 : i32
    %c0_i32_1 = arith.constant 0 : i32
    return %c0_i32, %c0_i32_0 : i32, i32
  }
  func.func @transform_2(%arg0: i32) -> (i32, i32) {
    %c0_i32 = arith.constant 0 : i32
    %c0_i32_0 = arith.constant 0 : i32
    %c0_i32_1 = arith.constant 0 : i32
    return %c0_i32, %c0_i32_0 : i32, i32
  }
  func.func @transform_3(%arg0: i32) -> (i32, i32) {
    %c0_i32 = arith.constant 0 : i32
    %c0_i32_0 = arith.constant 0 : i32
    return %arg0, %c0_i32 : i32, i32
  }
}

module attributes {stable_mosaic.version = 11 : i64} {
  func.func @attention_kernel(%arg0: i32, %arg1: memref<1x128x96xbf16, #tpu.memory_space<vmem>>, %arg2: memref<1x128x32xbf16, #tpu.memory_space<vmem>>) attributes {dimension_semantics = [#tpu.dimension_semantics<parallel>], iteration_bounds = array<i64: 2>, scalar_prefetch = 0 : i64, scratch_operands = 0 : i64, tpu.core_type = #tpu.core_type<tc>, window_params = [{transform_indices = @transform_0, window_bounds = array<i64: 1, 128, 96>}, {transform_indices = @transform_1, window_bounds = array<i64: 1, 128, 32>}]} {
    %c0 = arith.constant 0 : index
    %c0_0 = arith.constant 0 : index
    %c0_1 = arith.constant 0 : index
    %0 = vector.load %arg1[%c0, %c0_0, %c0_1] : memref<1x128x96xbf16, #tpu.memory_space<vmem>>, vector<1x128x96xbf16>
    %1 = vector.shape_cast %0 : vector<1x128x96xbf16> to vector<128x96xbf16>
    %2 = tpu.iota {dimensions = array<i32: 1>} : vector<1x128xi32>
    %c17_i32 = arith.constant 17 : i32
    %3 = vector.broadcast %c17_i32 : i32 to vector<1x128xi32>
    %4 = arith.cmpi slt, %2, %3 : vector<1x128xi32>
    %5 = vector.extract_strided_slice %1 {offsets = [0, 0], sizes = [128, 8], strides = [1, 1]} : vector<128x96xbf16> to vector<128x8xbf16>
    %6 = vector.extract_strided_slice %1 {offsets = [0, 32], sizes = [128, 8], strides = [1, 1]} : vector<128x96xbf16> to vector<128x8xbf16>
    %7 = vector.extract_strided_slice %1 {offsets = [0, 64], sizes = [128, 8], strides = [1, 1]} : vector<128x96xbf16> to vector<128x8xbf16>
    %cst = arith.constant dense<0.000000e+00> : vector<128x128xf32>
    %8 = tpu.matmul %5, %6, %cst {dimension_numbers = #tpu.dot_dimension_numbers<[1], [1], [0], [0], [0, 0, 1, 0], [], []>} : vector<128x8xbf16>, vector<128x8xbf16>, vector<128x128xf32> -> vector<128x128xf32>
    %cst_2 = arith.constant -1.000000e+30 : f32
    %9 = vector.shape_cast %4 : vector<1x128xi1> to vector<1x128xi1>
    %10 = vector.broadcast %9 : vector<1x128xi1> to vector<128x128xi1>
    %11 = vector.broadcast %cst_2 : f32 to vector<128x128xf32>
    %12 = arith.select %10, %8, %11 : vector<128x128xi1>, vector<128x128xf32>
    %cst_3 = arith.constant dense<0xFF800000> : vector<128xf32>
    %13 = vector.multi_reduction <maximumf>, %12, %cst_3 [1] : vector<128x128xf32> to vector<128xf32>
    %14 = vector.shape_cast %13 : vector<128xf32> to vector<128x1xf32>
    %15 = vector.broadcast %14 : vector<128x1xf32> to vector<128x128xf32>
    %16 = arith.subf %12, %15 : vector<128x128xf32>
    %17 = math.exp %16 : vector<128x128xf32>
    %cst_4 = arith.constant dense<0.000000e+00> : vector<128xf32>
    %18 = vector.multi_reduction <add>, %17, %cst_4 [1] : vector<128x128xf32> to vector<128xf32>
    %19 = vector.shape_cast %18 : vector<128xf32> to vector<128x1xf32>
    %20 = tpu.reciprocal %19 {approx = true} : vector<128x1xf32> -> vector<128x1xf32>
    %21 = vector.broadcast %20 : vector<128x1xf32> to vector<128x128xf32>
    %22 = arith.mulf %17, %21 : vector<128x128xf32>
    %23 = arith.truncf %22 : vector<128x128xf32> to vector<128x128xbf16>
    %cst_5 = arith.constant dense<0.000000e+00> : vector<128x8xf32>
    %24 = tpu.matmul %23, %7, %cst_5 {dimension_numbers = #tpu.dot_dimension_numbers<[1], [0], [0], [1], [0, 0, 1, 1], [], []>} : vector<128x128xbf16>, vector<128x8xbf16>, vector<128x8xf32> -> vector<128x8xf32>
    %25 = arith.truncf %24 : vector<128x8xf32> to vector<128x8xbf16>
    %26 = vector.extract_strided_slice %1 {offsets = [0, 8], sizes = [128, 8], strides = [1, 1]} : vector<128x96xbf16> to vector<128x8xbf16>
    %27 = vector.extract_strided_slice %1 {offsets = [0, 40], sizes = [128, 8], strides = [1, 1]} : vector<128x96xbf16> to vector<128x8xbf16>
    %28 = vector.extract_strided_slice %1 {offsets = [0, 72], sizes = [128, 8], strides = [1, 1]} : vector<128x96xbf16> to vector<128x8xbf16>
    %cst_6 = arith.constant dense<0.000000e+00> : vector<128x128xf32>
    %29 = tpu.matmul %26, %27, %cst_6 {dimension_numbers = #tpu.dot_dimension_numbers<[1], [1], [0], [0], [0, 0, 1, 0], [], []>} : vector<128x8xbf16>, vector<128x8xbf16>, vector<128x128xf32> -> vector<128x128xf32>
    %cst_7 = arith.constant -1.000000e+30 : f32
    %30 = vector.shape_cast %4 : vector<1x128xi1> to vector<1x128xi1>
    %31 = vector.broadcast %30 : vector<1x128xi1> to vector<128x128xi1>
    %32 = vector.broadcast %cst_7 : f32 to vector<128x128xf32>
    %33 = arith.select %31, %29, %32 : vector<128x128xi1>, vector<128x128xf32>
    %cst_8 = arith.constant dense<0xFF800000> : vector<128xf32>
    %34 = vector.multi_reduction <maximumf>, %33, %cst_8 [1] : vector<128x128xf32> to vector<128xf32>
    %35 = vector.shape_cast %34 : vector<128xf32> to vector<128x1xf32>
    %36 = vector.broadcast %35 : vector<128x1xf32> to vector<128x128xf32>
    %37 = arith.subf %33, %36 : vector<128x128xf32>
    %38 = math.exp %37 : vector<128x128xf32>
    %cst_9 = arith.constant dense<0.000000e+00> : vector<128xf32>
    %39 = vector.multi_reduction <add>, %38, %cst_9 [1] : vector<128x128xf32> to vector<128xf32>
    %40 = vector.shape_cast %39 : vector<128xf32> to vector<128x1xf32>
    %41 = tpu.reciprocal %40 {approx = true} : vector<128x1xf32> -> vector<128x1xf32>
    %42 = vector.broadcast %41 : vector<128x1xf32> to vector<128x128xf32>
    %43 = arith.mulf %38, %42 : vector<128x128xf32>
    %44 = arith.truncf %43 : vector<128x128xf32> to vector<128x128xbf16>
    %cst_10 = arith.constant dense<0.000000e+00> : vector<128x8xf32>
    %45 = tpu.matmul %44, %28, %cst_10 {dimension_numbers = #tpu.dot_dimension_numbers<[1], [0], [0], [1], [0, 0, 1, 1], [], []>} : vector<128x128xbf16>, vector<128x8xbf16>, vector<128x8xf32> -> vector<128x8xf32>
    %46 = arith.truncf %45 : vector<128x8xf32> to vector<128x8xbf16>
    %47 = vector.extract_strided_slice %1 {offsets = [0, 16], sizes = [128, 8], strides = [1, 1]} : vector<128x96xbf16> to vector<128x8xbf16>
    %48 = vector.extract_strided_slice %1 {offsets = [0, 48], sizes = [128, 8], strides = [1, 1]} : vector<128x96xbf16> to vector<128x8xbf16>
    %49 = vector.extract_strided_slice %1 {offsets = [0, 80], sizes = [128, 8], strides = [1, 1]} : vector<128x96xbf16> to vector<128x8xbf16>
    %cst_11 = arith.constant dense<0.000000e+00> : vector<128x128xf32>
    %50 = tpu.matmul %47, %48, %cst_11 {dimension_numbers = #tpu.dot_dimension_numbers<[1], [1], [0], [0], [0, 0, 1, 0], [], []>} : vector<128x8xbf16>, vector<128x8xbf16>, vector<128x128xf32> -> vector<128x128xf32>
    %cst_12 = arith.constant -1.000000e+30 : f32
    %51 = vector.shape_cast %4 : vector<1x128xi1> to vector<1x128xi1>
    %52 = vector.broadcast %51 : vector<1x128xi1> to vector<128x128xi1>
    %53 = vector.broadcast %cst_12 : f32 to vector<128x128xf32>
    %54 = arith.select %52, %50, %53 : vector<128x128xi1>, vector<128x128xf32>
    %cst_13 = arith.constant dense<0xFF800000> : vector<128xf32>
    %55 = vector.multi_reduction <maximumf>, %54, %cst_13 [1] : vector<128x128xf32> to vector<128xf32>
    %56 = vector.shape_cast %55 : vector<128xf32> to vector<128x1xf32>
    %57 = vector.broadcast %56 : vector<128x1xf32> to vector<128x128xf32>
    %58 = arith.subf %54, %57 : vector<128x128xf32>
    %59 = math.exp %58 : vector<128x128xf32>
    %cst_14 = arith.constant dense<0.000000e+00> : vector<128xf32>
    %60 = vector.multi_reduction <add>, %59, %cst_14 [1] : vector<128x128xf32> to vector<128xf32>
    %61 = vector.shape_cast %60 : vector<128xf32> to vector<128x1xf32>
    %62 = tpu.reciprocal %61 {approx = true} : vector<128x1xf32> -> vector<128x1xf32>
    %63 = vector.broadcast %62 : vector<128x1xf32> to vector<128x128xf32>
    %64 = arith.mulf %59, %63 : vector<128x128xf32>
    %65 = arith.truncf %64 : vector<128x128xf32> to vector<128x128xbf16>
    %cst_15 = arith.constant dense<0.000000e+00> : vector<128x8xf32>
    %66 = tpu.matmul %65, %49, %cst_15 {dimension_numbers = #tpu.dot_dimension_numbers<[1], [0], [0], [1], [0, 0, 1, 1], [], []>} : vector<128x128xbf16>, vector<128x8xbf16>, vector<128x8xf32> -> vector<128x8xf32>
    %67 = arith.truncf %66 : vector<128x8xf32> to vector<128x8xbf16>
    %68 = vector.extract_strided_slice %1 {offsets = [0, 24], sizes = [128, 8], strides = [1, 1]} : vector<128x96xbf16> to vector<128x8xbf16>
    %69 = vector.extract_strided_slice %1 {offsets = [0, 56], sizes = [128, 8], strides = [1, 1]} : vector<128x96xbf16> to vector<128x8xbf16>
    %70 = vector.extract_strided_slice %1 {offsets = [0, 88], sizes = [128, 8], strides = [1, 1]} : vector<128x96xbf16> to vector<128x8xbf16>
    %cst_16 = arith.constant dense<0.000000e+00> : vector<128x128xf32>
    %71 = tpu.matmul %68, %69, %cst_16 {dimension_numbers = #tpu.dot_dimension_numbers<[1], [1], [0], [0], [0, 0, 1, 0], [], []>} : vector<128x8xbf16>, vector<128x8xbf16>, vector<128x128xf32> -> vector<128x128xf32>
    %cst_17 = arith.constant -1.000000e+30 : f32
    %72 = vector.shape_cast %4 : vector<1x128xi1> to vector<1x128xi1>
    %73 = vector.broadcast %72 : vector<1x128xi1> to vector<128x128xi1>
    %74 = vector.broadcast %cst_17 : f32 to vector<128x128xf32>
    %75 = arith.select %73, %71, %74 : vector<128x128xi1>, vector<128x128xf32>
    %cst_18 = arith.constant dense<0xFF800000> : vector<128xf32>
    %76 = vector.multi_reduction <maximumf>, %75, %cst_18 [1] : vector<128x128xf32> to vector<128xf32>
    %77 = vector.shape_cast %76 : vector<128xf32> to vector<128x1xf32>
    %78 = vector.broadcast %77 : vector<128x1xf32> to vector<128x128xf32>
    %79 = arith.subf %75, %78 : vector<128x128xf32>
    %80 = math.exp %79 : vector<128x128xf32>
    %cst_19 = arith.constant dense<0.000000e+00> : vector<128xf32>
    %81 = vector.multi_reduction <add>, %80, %cst_19 [1] : vector<128x128xf32> to vector<128xf32>
    %82 = vector.shape_cast %81 : vector<128xf32> to vector<128x1xf32>
    %83 = tpu.reciprocal %82 {approx = true} : vector<128x1xf32> -> vector<128x1xf32>
    %84 = vector.broadcast %83 : vector<128x1xf32> to vector<128x128xf32>
    %85 = arith.mulf %80, %84 : vector<128x128xf32>
    %86 = arith.truncf %85 : vector<128x128xf32> to vector<128x128xbf16>
    %cst_20 = arith.constant dense<0.000000e+00> : vector<128x8xf32>
    %87 = tpu.matmul %86, %70, %cst_20 {dimension_numbers = #tpu.dot_dimension_numbers<[1], [0], [0], [1], [0, 0, 1, 1], [], []>} : vector<128x128xbf16>, vector<128x8xbf16>, vector<128x8xf32> -> vector<128x8xf32>
    %88 = arith.truncf %87 : vector<128x8xf32> to vector<128x8xbf16>
    %89 = tpu.concatenate %25, %46, %67, %88 in 1 : vector<128x8xbf16>, vector<128x8xbf16>, vector<128x8xbf16>, vector<128x8xbf16> -> vector<128x32xbf16>
    %c0_21 = arith.constant 0 : index
    %c0_22 = arith.constant 0 : index
    %c0_23 = arith.constant 0 : index
    %90 = vector.load %arg2[%c0_21, %c0_22, %c0_23] : memref<1x128x32xbf16, #tpu.memory_space<vmem>>, vector<1x128x32xbf16>
    %91 = vector.shape_cast %90 : vector<1x128x32xbf16> to vector<128x32xbf16>
    %92 = vector.shape_cast %89 : vector<128x32xbf16> to vector<1x128x32xbf16>
    tpu.vector_store %arg2[%c0_21, %c0_22, %c0_23], %92 {strides = array<i32>} : memref<1x128x32xbf16, #tpu.memory_space<vmem>>, vector<1x128x32xbf16>,
    return
  }
  func.func @transform_0(%arg0: i32) -> (i32, i32, i32) {
    %c0_i32 = arith.constant 0 : i32
    %c0_i32_0 = arith.constant 0 : i32
    %c0_i32_1 = arith.constant 0 : i32
    return %arg0, %c0_i32, %c0_i32_0 : i32, i32, i32
  }
  func.func @transform_1(%arg0: i32) -> (i32, i32, i32) {
    %c0_i32 = arith.constant 0 : i32
    %c0_i32_0 = arith.constant 0 : i32
    %c0_i32_1 = arith.constant 0 : i32
    return %arg0, %c0_i32, %c0_i32_0 : i32, i32, i32
  }
}

module attributes {stable_mosaic.version = 11 : i64} {
  func.func @mlp_kernel(%arg0: i32, %arg1: memref<128x32xf32, #tpu.memory_space<vmem>>, %arg2: memref<128x32xbf16, #tpu.memory_space<vmem>>, %arg3: memref<32x32xbf16, #tpu.memory_space<vmem>>, %arg4: memref<1x32xf32, #tpu.memory_space<vmem>>, %arg5: memref<1x32xf32, #tpu.memory_space<vmem>>, %arg6: memref<1x32xf32, #tpu.memory_space<vmem>>, %arg7: memref<32x64xbf16, #tpu.memory_space<vmem>>, %arg8: memref<1x64xf32, #tpu.memory_space<vmem>>, %arg9: memref<64x32xbf16, #tpu.memory_space<vmem>>, %arg10: memref<1x32xf32, #tpu.memory_space<vmem>>, %arg11: memref<128x32xf32, #tpu.memory_space<vmem>>) attributes {dimension_semantics = [#tpu.dimension_semantics<parallel>], iteration_bounds = array<i64: 2>, scalar_prefetch = 0 : i64, scratch_operands = 0 : i64, tpu.core_type = #tpu.core_type<tc>, window_params = [{transform_indices = @transform_0, window_bounds = array<i64: 128, 32>}, {transform_indices = @transform_1, window_bounds = array<i64: 128, 32>}, {pipeline_mode = #tpu.pipeline_mode<synchronous>, transform_indices = @transform_2, window_bounds = array<i64: 32, 32>}, {pipeline_mode = #tpu.pipeline_mode<synchronous>, transform_indices = @transform_3, window_bounds = array<i64: 1, 32>}, {pipeline_mode = #tpu.pipeline_mode<synchronous>, transform_indices = @transform_4, window_bounds = array<i64: 1, 32>}, {pipeline_mode = #tpu.pipeline_mode<synchronous>, transform_indices = @transform_5, window_bounds = array<i64: 1, 32>}, {pipeline_mode = #tpu.pipeline_mode<synchronous>, transform_indices = @transform_6, window_bounds = array<i64: 32, 64>}, {pipeline_mode = #tpu.pipeline_mode<synchronous>, transform_indices = @transform_7, window_bounds = array<i64: 1, 64>}, {pipeline_mode = #tpu.pipeline_mode<synchronous>, transform_indices = @transform_8, window_bounds = array<i64: 64, 32>}, {pipeline_mode = #tpu.pipeline_mode<synchronous>, transform_indices = @transform_9, window_bounds = array<i64: 1, 32>}, {transform_indices = @transform_10, window_bounds = array<i64: 128, 32>}]} {
    %c0 = arith.constant 0 : index
    %c0_0 = arith.constant 0 : index
    %0 = vector.load %arg1[%c0, %c0_0] : memref<128x32xf32, #tpu.memory_space<vmem>>, vector<128x32xf32>
    %c0_1 = arith.constant 0 : index
    %c0_2 = arith.constant 0 : index
    %1 = vector.load %arg2[%c0_1, %c0_2] : memref<128x32xbf16, #tpu.memory_space<vmem>>, vector<128x32xbf16>
    %c0_3 = arith.constant 0 : index
    %c0_4 = arith.constant 0 : index
    %2 = vector.load %arg3[%c0_3, %c0_4] : memref<32x32xbf16, #tpu.memory_space<vmem>>, vector<32x32xbf16>
    %cst = arith.constant dense<0.000000e+00> : vector<128x32xf32>
    %3 = tpu.matmul %1, %2, %cst {dimension_numbers = #tpu.dot_dimension_numbers<[1], [0], [0], [1], [0, 0, 1, 1], [], []>} : vector<128x32xbf16>, vector<32x32xbf16>, vector<128x32xf32> -> vector<128x32xf32>
    %c0_5 = arith.constant 0 : index
    %c0_6 = arith.constant 0 : index
    %4 = vector.load %arg4[%c0_5, %c0_6] : memref<1x32xf32, #tpu.memory_space<vmem>>, vector<1x32xf32>
    %5 = vector.broadcast %4 : vector<1x32xf32> to vector<128x32xf32>
    %6 = arith.addf %3, %5 : vector<128x32xf32>
    %7 = arith.addf %0, %6 : vector<128x32xf32>
    %c0_7 = arith.constant 0 : index
    %c0_8 = arith.constant 0 : index
    %8 = vector.load %arg5[%c0_7, %c0_8] : memref<1x32xf32, #tpu.memory_space<vmem>>, vector<1x32xf32>
    %c0_9 = arith.constant 0 : index
    %c0_10 = arith.constant 0 : index
    %9 = vector.load %arg6[%c0_9, %c0_10] : memref<1x32xf32, #tpu.memory_space<vmem>>, vector<1x32xf32>
    %cst_11 = arith.constant dense<0.000000e+00> : vector<128xf32>
    %10 = vector.multi_reduction <add>, %7, %cst_11 [1] : vector<128x32xf32> to vector<128xf32>
    %11 = vector.shape_cast %10 : vector<128xf32> to vector<128x1xf32>
    %cst_12 = arith.constant 3.200000e+01 : f32
    %12 = vector.broadcast %cst_12 : f32 to vector<128x1xf32>
    %13 = arith.divf %11, %12 : vector<128x1xf32>
    %14 = vector.broadcast %13 : vector<128x1xf32> to vector<128x32xf32>
    %15 = arith.subf %7, %14 : vector<128x32xf32>
    %16 = arith.mulf %15, %15 : vector<128x32xf32>
    %cst_13 = arith.constant dense<0.000000e+00> : vector<128xf32>
    %17 = vector.multi_reduction <add>, %16, %cst_13 [1] : vector<128x32xf32> to vector<128xf32>
    %18 = vector.shape_cast %17 : vector<128xf32> to vector<128x1xf32>
    %cst_14 = arith.constant 3.200000e+01 : f32
    %19 = vector.broadcast %cst_14 : f32 to vector<128x1xf32>
    %20 = arith.divf %18, %19 : vector<128x1xf32>
    %21 = vector.broadcast %13 : vector<128x1xf32> to vector<128x32xf32>
    %22 = arith.subf %7, %21 : vector<128x32xf32>
    %cst_15 = arith.constant 9.99999974E-6 : f32
    %23 = vector.broadcast %cst_15 : f32 to vector<128x1xf32>
    %24 = arith.addf %20, %23 : vector<128x1xf32>
    %25 = math.rsqrt %24 : vector<128x1xf32>
    %26 = vector.broadcast %25 : vector<128x1xf32> to vector<128x32xf32>
    %27 = arith.mulf %22, %26 : vector<128x32xf32>
    %28 = vector.broadcast %8 : vector<1x32xf32> to vector<128x32xf32>
    %29 = arith.mulf %27, %28 : vector<128x32xf32>
    %30 = vector.broadcast %9 : vector<1x32xf32> to vector<128x32xf32>
    %31 = arith.addf %29, %30 : vector<128x32xf32>
    %32 = arith.truncf %31 : vector<128x32xf32> to vector<128x32xbf16>
    %c0_16 = arith.constant 0 : index
    %c0_17 = arith.constant 0 : index
    %33 = vector.load %arg7[%c0_16, %c0_17] : memref<32x64xbf16, #tpu.memory_space<vmem>>, vector<32x64xbf16>
    %cst_18 = arith.constant dense<0.000000e+00> : vector<128x64xf32>
    %34 = tpu.matmul %32, %33, %cst_18 {dimension_numbers = #tpu.dot_dimension_numbers<[1], [0], [0], [1], [0, 0, 1, 1], [], []>} : vector<128x32xbf16>, vector<32x64xbf16>, vector<128x64xf32> -> vector<128x64xf32>
    %c0_19 = arith.constant 0 : index
    %c0_20 = arith.constant 0 : index
    %35 = vector.load %arg8[%c0_19, %c0_20] : memref<1x64xf32, #tpu.memory_space<vmem>>, vector<1x64xf32>
    %36 = vector.broadcast %35 : vector<1x64xf32> to vector<128x64xf32>
    %37 = arith.addf %34, %36 : vector<128x64xf32>
    %38 = arith.mulf %37, %37 : vector<128x64xf32>
    %39 = arith.mulf %37, %38 : vector<128x64xf32>
    %cst_21 = arith.constant 4.471500e-02 : f32
    %40 = vector.broadcast %cst_21 : f32 to vector<128x64xf32>
    %41 = arith.mulf %40, %39 : vector<128x64xf32>
    %42 = arith.addf %37, %41 : vector<128x64xf32>
    %cst_22 = arith.constant 0.797884583 : f32
    %43 = vector.broadcast %cst_22 : f32 to vector<128x64xf32>
    %44 = arith.mulf %43, %42 : vector<128x64xf32>
    %45 = math.tanh %44 : vector<128x64xf32>
    %cst_23 = arith.constant 1.000000e+00 : f32
    %46 = vector.broadcast %cst_23 : f32 to vector<128x64xf32>
    %47 = arith.addf %46, %45 : vector<128x64xf32>
    %cst_24 = arith.constant 5.000000e-01 : f32
    %48 = vector.broadcast %cst_24 : f32 to vector<128x64xf32>
    %49 = arith.mulf %48, %47 : vector<128x64xf32>
    %50 = arith.mulf %37, %49 : vector<128x64xf32>
    %51 = arith.truncf %50 : vector<128x64xf32> to vector<128x64xbf16>
    %c0_25 = arith.constant 0 : index
    %c0_26 = arith.constant 0 : index
    %52 = vector.load %arg9[%c0_25, %c0_26] : memref<64x32xbf16, #tpu.memory_space<vmem>>, vector<64x32xbf16>
    %cst_27 = arith.constant dense<0.000000e+00> : vector<128x32xf32>
    %53 = tpu.matmul %51, %52, %cst_27 {dimension_numbers = #tpu.dot_dimension_numbers<[1], [0], [0], [1], [0, 0, 1, 1], [], []>} : vector<128x64xbf16>, vector<64x32xbf16>, vector<128x32xf32> -> vector<128x32xf32>
    %c0_28 = arith.constant 0 : index
    %c0_29 = arith.constant 0 : index
    %54 = vector.load %arg10[%c0_28, %c0_29] : memref<1x32xf32, #tpu.memory_space<vmem>>, vector<1x32xf32>
    %55 = vector.broadcast %54 : vector<1x32xf32> to vector<128x32xf32>
    %56 = arith.addf %53, %55 : vector<128x32xf32>
    %57 = arith.addf %7, %56 : vector<128x32xf32>
    %c0_30 = arith.constant 0 : index
    %c0_31 = arith.constant 0 : index
    %58 = vector.load %arg11[%c0_30, %c0_31] : memref<128x32xf32, #tpu.memory_space<vmem>>, vector<128x32xf32>
    tpu.vector_store %arg11[%c0_30, %c0_31], %57 {strides = array<i32>} : memref<128x32xf32, #tpu.memory_space<vmem>>, vector<128x32xf32>,
    return
  }
  func.func @transform_0(%arg0: i32) -> (i32, i32) {
    %c0_i32 = arith.constant 0 : i32
    %c0_i32_0 = arith.constant 0 : i32
    return %arg0, %c0_i32 : i32, i32
  }
  func.func @transform_1(%arg0: i32) -> (i32, i32) {
    %c0_i32 = arith.constant 0 : i32
    %c0_i32_0 = arith.constant 0 : i32
    return %arg0, %c0_i32 : i32, i32
  }
  func.func @transform_2(%arg0: i32) -> (i32, i32) {
    %c0_i32 = arith.constant 0 : i32
    %c0_i32_0 = arith.constant 0 : i32
    %c0_i32_1 = arith.constant 0 : i32
    return %c0_i32, %c0_i32_0 : i32, i32
  }
  func.func @transform_3(%arg0: i32) -> (i32, i32) {
    %c0_i32 = arith.constant 0 : i32
    %c0_i32_0 = arith.constant 0 : i32
    %c0_i32_1 = arith.constant 0 : i32
    return %c0_i32, %c0_i32_0 : i32, i32
  }
  func.func @transform_4(%arg0: i32) -> (i32, i32) {
    %c0_i32 = arith.constant 0 : i32
    %c0_i32_0 = arith.constant 0 : i32
    %c0_i32_1 = arith.constant 0 : i32
    return %c0_i32, %c0_i32_0 : i32, i32
  }
  func.func @transform_5(%arg0: i32) -> (i32, i32) {
    %c0_i32 = arith.constant 0 : i32
    %c0_i32_0 = arith.constant 0 : i32
    %c0_i32_1 = arith.constant 0 : i32
    return %c0_i32, %c0_i32_0 : i32, i32
  }
  func.func @transform_6(%arg0: i32) -> (i32, i32) {
    %c0_i32 = arith.constant 0 : i32
    %c0_i32_0 = arith.constant 0 : i32
    %c0_i32_1 = arith.constant 0 : i32
    return %c0_i32, %c0_i32_0 : i32, i32
  }
  func.func @transform_7(%arg0: i32) -> (i32, i32) {
    %c0_i32 = arith.constant 0 : i32
    %c0_i32_0 = arith.constant 0 : i32
    %c0_i32_1 = arith.constant 0 : i32
    return %c0_i32, %c0_i32_0 : i32, i32
  }
  func.func @transform_8(%arg0: i32) -> (i32, i32) {
    %c0_i32 = arith.constant 0 : i32
    %c0_i32_0 = arith.constant 0 : i32
    %c0_i32_1 = arith.constant 0 : i32
    return %c0_i32, %c0_i32_0 : i32, i32
  }
  func.func @transform_9(%arg0: i32) -> (i32, i32) {
    %c0_i32 = arith.constant 0 : i32
    %c0_i32_0 = arith.constant 0 : i32
    %c0_i32_1 = arith.constant 0 : i32
    return %c0_i32, %c0_i32_0 : i32, i32
  }
  func.func @transform_10(%arg0: i32) -> (i32, i32) {
    %c0_i32 = arith.constant 0 : i32
    %c0_i32_0 = arith.constant 0 : i32
    return %arg0, %c0_i32 : i32, i32
  }
}

module attributes {stable_mosaic.version = 11 : i64} {
  func.func @norm_head_kernel(%arg0: memref<8x32xf32, #tpu.memory_space<vmem>>, %arg1: memref<1x32xf32, #tpu.memory_space<vmem>>, %arg2: memref<1x32xf32, #tpu.memory_space<vmem>>, %arg3: memref<32x128xbf16, #tpu.memory_space<vmem>>, %arg4: memref<1x128xf32, #tpu.memory_space<vmem>>, %arg5: memref<8x128xf32, #tpu.memory_space<vmem>>) attributes {dimension_semantics = [], scalar_prefetch = 0 : i64, scratch_operands = 0 : i64, tpu.core_type = #tpu.core_type<tc>} {
    %c0 = arith.constant 0 : index
    %c0_0 = arith.constant 0 : index
    %0 = vector.load %arg0[%c0, %c0_0] : memref<8x32xf32, #tpu.memory_space<vmem>>, vector<8x32xf32>
    %c0_1 = arith.constant 0 : index
    %c0_2 = arith.constant 0 : index
    %1 = vector.load %arg1[%c0_1, %c0_2] : memref<1x32xf32, #tpu.memory_space<vmem>>, vector<1x32xf32>
    %c0_3 = arith.constant 0 : index
    %c0_4 = arith.constant 0 : index
    %2 = vector.load %arg2[%c0_3, %c0_4] : memref<1x32xf32, #tpu.memory_space<vmem>>, vector<1x32xf32>
    %cst = arith.constant dense<0.000000e+00> : vector<8xf32>
    %3 = vector.multi_reduction <add>, %0, %cst [1] : vector<8x32xf32> to vector<8xf32>
    %4 = vector.shape_cast %3 : vector<8xf32> to vector<8x1xf32>
    %cst_5 = arith.constant 3.200000e+01 : f32
    %5 = vector.broadcast %cst_5 : f32 to vector<8x1xf32>
    %6 = arith.divf %4, %5 : vector<8x1xf32>
    %7 = vector.broadcast %6 : vector<8x1xf32> to vector<8x32xf32>
    %8 = arith.subf %0, %7 : vector<8x32xf32>
    %9 = arith.mulf %8, %8 : vector<8x32xf32>
    %cst_6 = arith.constant dense<0.000000e+00> : vector<8xf32>
    %10 = vector.multi_reduction <add>, %9, %cst_6 [1] : vector<8x32xf32> to vector<8xf32>
    %11 = vector.shape_cast %10 : vector<8xf32> to vector<8x1xf32>
    %cst_7 = arith.constant 3.200000e+01 : f32
    %12 = vector.broadcast %cst_7 : f32 to vector<8x1xf32>
    %13 = arith.divf %11, %12 : vector<8x1xf32>
    %14 = vector.broadcast %6 : vector<8x1xf32> to vector<8x32xf32>
    %15 = arith.subf %0, %14 : vector<8x32xf32>
    %cst_8 = arith.constant 9.99999974E-6 : f32
    %16 = vector.broadcast %cst_8 : f32 to vector<8x1xf32>
    %17 = arith.addf %13, %16 : vector<8x1xf32>
    %18 = math.rsqrt %17 : vector<8x1xf32>
    %19 = vector.broadcast %18 : vector<8x1xf32> to vector<8x32xf32>
    %20 = arith.mulf %15, %19 : vector<8x32xf32>
    %21 = vector.broadcast %1 : vector<1x32xf32> to vector<8x32xf32>
    %22 = arith.mulf %20, %21 : vector<8x32xf32>
    %23 = vector.broadcast %2 : vector<1x32xf32> to vector<8x32xf32>
    %24 = arith.addf %22, %23 : vector<8x32xf32>
    %25 = arith.truncf %24 : vector<8x32xf32> to vector<8x32xbf16>
    %c0_9 = arith.constant 0 : index
    %c0_10 = arith.constant 0 : index
    %26 = vector.load %arg3[%c0_9, %c0_10] : memref<32x128xbf16, #tpu.memory_space<vmem>>, vector<32x128xbf16>
    %cst_11 = arith.constant dense<0.000000e+00> : vector<8x128xf32>
    %27 = tpu.matmul %25, %26, %cst_11 {dimension_numbers = #tpu.dot_dimension_numbers<[1], [0], [0], [1], [0, 0, 1, 1], [], []>} : vector<8x32xbf16>, vector<32x128xbf16>, vector<8x128xf32> -> vector<8x128xf32>
    %c0_12 = arith.constant 0 : index
    %c0_13 = arith.constant 0 : index
    %28 = vector.load %arg4[%c0_12, %c0_13] : memref<1x128xf32, #tpu.memory_space<vmem>>, vector<1x128xf32>
    %29 = vector.broadcast %28 : vector<1x128xf32> to vector<8x128xf32>
    %30 = arith.addf %27, %29 : vector<8x128xf32>
    %c0_14 = arith.constant 0 : index
    %c0_15 = arith.constant 0 : index
    %31 = vector.load %arg5[%c0_14, %c0_15] : memref<8x128xf32, #tpu.memory_space<vmem>>, vector<8x128xf32>
    tpu.vector_store %arg5[%c0_14, %c0_15], %30 {strides = array<i32>} : memref<8x128xf32, #tpu.memory_space<vmem>>, vector<8x128xf32>,
    return
  }
}

</mosaic_0001>

<llo_original>
// kernel: vit_forward.8
$region0: #{vit_forward.8}
  #allocation0 [shape = 'u32[]', space=smem, size = 0x4, offset = 0x4, fixed_abs, tag = 'smem constant byte address 0x4 - core index']
  #allocation1 [shape = 'u32[144,128]{1,0:T(1,128)}', space=vmem, size = 0x12000, scoped, tag = 'internal scratch']
  %s0 = inlined_call_operand.vmem [shape: bf16[32,48], index: 0, kind: input, shape index: {}]
  %s1 = inlined_call_operand.vmem [shape: bf16[48,32], index: 1, kind: input, shape index: {}]
  %s2 = inlined_call_operand.vmem [shape: f32[1,32], index: 2, kind: input, shape index: {}]
  %s3 = inlined_call_operand.vmem [shape: f32[32,32], index: 3, kind: output, shape index: {}]
  %s4 = sld [smem:[#allocation0]]
  $region45: #{vit_forward.8} parent=0
    _
  %s6 = ssub.s32 1, %s4
  %s7 = scalar_select 0, %s6, %s4
  loop: start=0, step=1, limit=4
  $region2: #{vit_forward.8} parent=0 // loop_pre_header
    _
  $region3: #{vit_forward.8} parent=0 // loop_header
    %s9 = sphi 0, %s13
    %p10 = scmp.ge.s32.totalorder %s9, 4
    %s19 = sphi 0, %s21
    %s22 = sphi 0, %s19
    %s23 = sphi 0, %s22
    %s39 = sphi 0, %s23
    %s43 = sphi 0, %s43
    %s45 = sphi 0, %s43
    %s46 = sphi 0, %s45
    %s60 = sphi 0, %s46
    %s64 = sphi 0, %s64
    %s66 = sphi 0, %s64
    %s67 = sphi 0, %s66
    %s81 = sphi 0, %s67
    %s87 = sphi 0, %s89
    %s90 = sphi 0, %s87
    %s91 = sphi 0, %s90
    %s107 = sphi 0, %s91
  $region4: #{vit_forward.8} parent=0 // loop_header_branch
    %12 = sbr.rel (%p10) target = $region8
  $region5: #{vit_forward.8} parent=0 // loop_body
    %s14 = ssub.s32 %s9, 1
    %s15 = ssub.s32 %s9, 2
    %s16 = sadd.s32 %s9, 1
    %s17 = ssub.s32 %s9, %s16
    %p18 = scmp.eq.s32.totalorder %s17, 0
    %s20 = sadd.s32 %s19, 1
    %s21 = scalar_select %p18, %s19, %s20
    %p24 = pneg %p18
    %p25 = scmp.eq.s32.totalorder %s9, 1
    %p26 = por %p24, %p25
    %p27 = scmp.ne.s32.totalorder %s19, %s22
    %p28 = scmp.eq.s32.totalorder %s9, 0
    %p29 = por %p27, %p28
    %p30 = scmp.ne.s32.totalorder %s19, %s22
    %p31 = scmp.eq.s32.totalorder %s14, 1
    %p32 = por %p30, %p31
    %p33 = scmp.ne.s32.totalorder %s22, %s23
    %p34 = scmp.eq.s32.totalorder %s14, 0
    %p35 = por %p33, %p34
    %p36 = scmp.ne.s32.totalorder %s22, %s23
    %p37 = scmp.eq.s32.totalorder %s15, 1
    %p38 = por %p36, %p37
    %p40 = scmp.ne.s32.totalorder %s23, %s39
    %p41 = scmp.eq.s32.totalorder %s15, 0
    %p42 = por %p40, %p41
    %s44 = sadd.s32 %s43, 1
    %p47 = scmp.eq.s32.totalorder %s9, 1
    %p48 = scmp.ne.s32.totalorder %s43, %s45
    %p49 = scmp.eq.s32.totalorder %s9, 0
    %p50 = por %p48, %p49
    %p51 = scmp.ne.s32.totalorder %s43, %s45
    %p52 = scmp.eq.s32.totalorder %s14, 1
    %p53 = por %p51, %p52
    %p54 = scmp.ne.s32.totalorder %s45, %s46
    %p55 = scmp.eq.s32.totalorder %s14, 0
    %p56 = por %p54, %p55
    %p57 = scmp.ne.s32.totalorder %s45, %s46
    %p58 = scmp.eq.s32.totalorder %s15, 1
    %p59 = por %p57, %p58
    %p61 = scmp.ne.s32.totalorder %s46, %s60
    %p62 = scmp.eq.s32.totalorder %s15, 0
    %p63 = por %p61, %p62
    %s65 = sadd.s32 %s64, 1
    %p68 = scmp.eq.s32.totalorder %s9, 1
    %p69 = scmp.ne.s32.totalorder %s64, %s66
    %p70 = scmp.eq.s32.totalorder %s9, 0
    %p71 = por %p69, %p70
    %p72 = scmp.ne.s32.totalorder %s64, %s66
    %p73 = scmp.eq.s32.totalorder %s14, 1
    %p74 = por %p72, %p73
    %p75 = scmp.ne.s32.totalorder %s66, %s67
    %p76 = scmp.eq.s32.totalorder %s14, 0
    %p77 = por %p75, %p76
    %p78 = scmp.ne.s32.totalorder %s66, %s67
    %p79 = scmp.eq.s32.totalorder %s15, 1
    %p80 = por %p78, %p79
    %p82 = scmp.ne.s32.totalorder %s67, %s81
    %p83 = scmp.eq.s32.totalorder %s15, 0
    %p84 = por %p82, %p83
    %s85 = ssub.s32 %s9, %s16
    %p86 = scmp.eq.s32.totalorder %s85, 0
    %s88 = sadd.s32 %s87, 1
    %s89 = scalar_select %p86, %s87, %s88
    %p92 = pneg %p86
    %p93 = scmp.eq.s32.totalorder %s9, 1
    %p94 = por %p92, %p93
    %p95 = scmp.ne.s32.totalorder %s87, %s90
    %p96 = scmp.eq.s32.totalorder %s9, 0
    %p97 = por %p95, %p96
    %p98 = scmp.ne.s32.totalorder %s87, %s90
    %p99 = scmp.eq.s32.totalorder %s14, 1
    %p100 = por %p98, %p99
    %p101 = scmp.ne.s32.totalorder %s90, %s91
    %p102 = scmp.eq.s32.totalorder %s14, 0
    %p103 = por %p101, %p102
    %p104 = scmp.ne.s32.totalorder %s90, %s91
    %p105 = scmp.eq.s32.totalorder %s15, 1
    %p106 = por %p104, %p105
    %p108 = scmp.ne.s32.totalorder %s91, %s107
    %p109 = scmp.eq.s32.totalorder %s15, 0
    %p110 = por %p108, %p109
    %p111 = scmp.le.s32.totalorder 1, %s9
    %p112 = scmp.lt.s32.totalorder %s9, 3
    %p113 = pnand %p111, %p112
    %p114 = pneg %p113
    // Predicated region
    $region9: #{vit_forward.8} parent=5 // pred_check
      _
    $region10: #{vit_forward.8} parent=5 // pred_check_branch
      %116 = sbr.rel (%p113) target = $region12
    $region11: #{vit_forward.8} parent=5 // pred_region
      %s117 = ssub.s32 %s9, 1
      // Predicated region
      $region13: #{vit_forward.8} parent=11 // pred_check
        %p118 = pneg %p56
      $region14: #{vit_forward.8} parent=11 // pred_check_branch
        %120 = sbr.rel (%p118) target = $region16
      $region15: #{vit_forward.8} parent=11 // pred_region
        _
      $region16: #{vit_forward.8} parent=11 // pred_fallthru
        _
      // Predicated region
      $region17: #{vit_forward.8} parent=11 // pred_check
        %p121 = pneg %p77
      $region18: #{vit_forward.8} parent=11 // pred_check_branch
        %123 = sbr.rel (%p121) target = $region20
      $region19: #{vit_forward.8} parent=11 // pred_region
        _
      $region20: #{vit_forward.8} parent=11 // pred_fallthru
        _
    $region12: #{vit_forward.8} parent=5 // pred_fallthru
      _
    %p124 = scmp.lt.s32.totalorder %s9, 2
    // Predicated region
    $region21: #{vit_forward.8} parent=5 // pred_check
      %p125 = pneg %p124
    $region22: #{vit_forward.8} parent=5 // pred_check_branch
      %127 = sbr.rel (%p125) target = $region24
    $region23: #{vit_forward.8} parent=5 // pred_region
      // Predicated region
      $region25: #{vit_forward.8} parent=23 // pred_check
        %p128 = pneg %p29
      $region26: #{vit_forward.8} parent=23 // pred_check_branch
        %130 = sbr.rel (%p128) target = $region28
      $region27: #{vit_forward.8} parent=23 // pred_region
        %s131 = smul.u32 2, %s9
        %p132 = scmp.lt.s32.totalorder %s131, 3
        %s133 = scalar_select %p132, %s131, 3
        %s134 = smul.addr %s133, 4
        %s135 = scalar_lea.vmem %s0, %s134
        %s136 = smul.u32 2, %s9
      $region28: #{vit_forward.8} parent=23 // pred_fallthru
        _
    $region24: #{vit_forward.8} parent=5 // pred_fallthru
      _
    %p137 = scmp.le.s32.totalorder 1, %s9
    %p138 = scmp.lt.s32.totalorder %s9, 3
    %p139 = pnand %p137, %p138
    %p140 = pneg %p139
    // Predicated region
    $region29: #{vit_forward.8} parent=5 // pred_check
      _
    $region30: #{vit_forward.8} parent=5 // pred_check_branch
      %142 = sbr.rel (%p139) target = $region32
    $region31: #{vit_forward.8} parent=5 // pred_region
      %s143 = ssub.s32 %s9, 1
      %s144 = smul.u32 2, %s14
      %p145 = scmp.lt.s32.totalorder %s144, 3
      %s146 = scalar_select %p145, %s144, 3
      %s147 = smul.addr %s146, 4
      %s148 = scalar_lea.vmem %s0, %s147
      %p149 = pneg %p35
      %p150 = pneg %p32
      %p151 = pneg %p56
      %p152 = pneg %p53
      %p153 = pneg %p77
      %p154 = pneg %p74
      %p155 = pneg %p103
      %p156 = pneg %p100
      %s157 = smul.u32 2, %s14
      %p158 = scmp.lt.s32.totalorder %s157, 3
      %s159 = scalar_select %p158, %s157, 3
      %s160 = smul.addr %s159, 8
      %s161 = scalar_lea.vmem %s3, %s160
      %s162 = smul.u32 2, %s14
      %p163 = scmp.lt.s32.totalorder %s162, 3
      %s164 = scalar_select %p163, %s162, 3
      %s165 = smul.addr %s164, 4
      %s166 = scalar_lea.vmem %s0, %s165
      %s167 = smul.u32 2, %s14
      %s168 = smul.u32 2, %s14
      %p169 = scmp.lt.s32.totalorder %s168, 3
      %s170 = scalar_select %p169, %s168, 3
      %s171 = smul.addr %s170, 8
      %s172 = scalar_lea.vmem %s3, %s171
      %s173 = smul.u32 2, %s14
      %v175 = vld [vmem:[%s166] sm:$0xf]
      %v176 = vld [vmem:[%s166 + $0x4] sm:$0xf]
      %v177 = vld [vmem:[%s1] sm:$0xf]
      %v178 = vld [vmem:[%s1 + $0x4] sm:$0xf]
      %v179 = vld [vmem:[%s1 + $0x8] sm:$0xf]
      %v180 = vld [vmem:[%s1 + $0xc] sm:$0xf]
      %v181 = vld [vmem:[%s1 + $0x10] sm:$0xf]
      %v182 = vld [vmem:[%s1 + $0x14] sm:$0xf]
      %v183 = vld [vmem:[%s2] sm:$0x1]
      %v185 = vlaneseq
      %v186 = vshrl.u32 %v185, 7
      %v187 = vsub.s32 0, %v186
      %v188 = vrot.slane %v183, %v187
      %v192 = vunpack.c.l.b16 %v175
      %v193 = vunpack.c.l.b16 %v176
      %v194 = vpack.c.b16 %v193, %v192
      %v201 = vunpack.c.l.b16 %v177
      %v202 = vunpack.c.l.b16 %v178
      %v203 = vunpack.c.l.b16 %v179
      %v204 = vunpack.c.l.b16 %v180
      %v205 = vunpack.c.l.b16 %v181
      %v206 = vunpack.c.l.b16 %v182
      %v207 = vpack.c.b16 %v202, %v201
      %v208 = vpack.c.b16 %v204, %v203
      %v209 = vpack.c.b16 %v206, %v205
      %vm213 = vcmask 392192
      %v215 = vsel %vm213, %v194, 0
      %217 = vmatprep.subr.bf16.mxu0 0
      %218 = vmatpush1.bf16.msra.mxu0 %v207
      %219 = vmatprep.subr.bf16.mxu0 0
      %220 = vmatpush1.bf16.msra.mxu0 %v208
      %221 = vmatprep.subr.bf16.mxu0 0
      %222 = vmatpush1.bf16.msra.mxu0 %v209
      %223 = vmatprep.subr.bf16.mxu0 0
      %224 = vmatpush1.bf16.msra.mxu0 0
      %225 = vmatprep.subr.bf16.mxu0 0
      %226 = vmatpush1.bf16.msra.mxu0 0
      %227 = vmatprep.subr.bf16.mxu0 0
      %228 = vmatpush1.bf16.msra.mxu0 0
      %229 = vmatprep.subr.bf16.mxu0 0
      %230 = vmatpush1.bf16.msra.mxu0 0
      %231 = vmatprep.subr.bf16.mxu0 0
      %232 = vmatpush1.bf16.msra.mxu0 0
      %233 = vmatprep.subr.bf16.mxu0 0
      %234 = vmatpush1.bf16.msra.mxu0 0
      %235 = vmatprep.subr.bf16.mxu0 0
      %236 = vmatpush1.bf16.msra.mxu0 0
      %237 = vmatprep.subr.bf16.mxu0 0
      %238 = vmatpush1.bf16.msra.mxu0 0
      %239 = vmatprep.subr.bf16.mxu0 0
      %240 = vmatpush1.bf16.msra.mxu0 0
      %241 = vmatprep.subr.bf16.mxu0 0
      %242 = vmatpush1.bf16.msra.mxu0 0
      %243 = vmatprep.subr.bf16.mxu0 0
      %244 = vmatpush1.bf16.msra.mxu0 0
      %245 = vmatprep.subr.bf16.mxu0 0
      %246 = vmatpush1.bf16.msra.mxu0 0
      %247 = vmatprep.subr.bf16.mxu0 0
      %248 = vmatpush1.bf16.msra.mxu0 0
      %249 = vmatprep.mubr.bf16.mxu0 0
      %250 = vmatmul.mubr.bf16.gmra.mrb[0].mxu0 %v215
      %v251 = vpop.f32.mrb[0].mxu0
      %v252 = vadd.f32 %v188, %v251
      %v253 = vpop.f32.mrb[0].mxu0
      %v254 = vpop.f32.mrb[0].mxu0
      %v255 = vadd.f32 %v188, %v254
      %v256 = vpop.f32.mrb[0].mxu0
      %257 = vdwg.mxu0
      %vm258 = vcmask 261120
      %259 = vst.msk [vmem:[%s172] sm:$0xff] %vm258, %v252
      %260 = vst.msk [vmem:[%s172 + $0x8] sm:$0xff] %vm258, %v255
      %s261 = smul.u32 2, %s14
      %p262 = scmp.lt.s32.totalorder %s261, 3
      %s263 = scalar_select %p262, %s261, 3
      %s264 = smul.addr %s263, 8
      %s265 = scalar_lea.vmem %s3, %s264
      // Predicated region
      $region33: #{vit_forward.8} parent=31 // pred_check
        %p266 = pneg %p100
      $region34: #{vit_forward.8} parent=31 // pred_check_branch
        %268 = sbr.rel (%p266) target = $region36
      $region35: #{vit_forward.8} parent=31 // pred_region
        %s269 = smul.u32 2, %s14
      $region36: #{vit_forward.8} parent=31 // pred_fallthru
        _
    $region32: #{vit_forward.8} parent=5 // pred_fallthru
      _
    %p270 = scmp.le.s32.totalorder 2, %s9
    // Predicated region
    $region37: #{vit_forward.8} parent=5 // pred_check
      %p271 = pneg %p270
    $region38: #{vit_forward.8} parent=5 // pred_check_branch
      %273 = sbr.rel (%p271) target = $region40
    $region39: #{vit_forward.8} parent=5 // pred_region
      %s274 = ssub.s32 %s9, 2
      // Predicated region
      $region41: #{vit_forward.8} parent=39 // pred_check
        %p275 = pneg %p106
      $region42: #{vit_forward.8} parent=39 // pred_check_branch
        %277 = sbr.rel (%p275) target = $region44
      $region43: #{vit_forward.8} parent=39 // pred_region
        %s278 = smul.u32 2, %s15
        %p279 = scmp.lt.s32.totalorder %s278, 3
        %s280 = scalar_select %p279, %s278, 3
        %s281 = smul.addr %s280, 8
        %s282 = scalar_lea.vmem %s3, %s281
      $region44: #{vit_forward.8} parent=39 // pred_fallthru
        _
    $region40: #{vit_forward.8} parent=5 // pred_fallthru
      _
  $region6: #{vit_forward.8} parent=0 // loop_footer
    %s13 = sadd.s32 1, %s9
  $region7: #{vit_forward.8} parent=0 // loop_footer_branch
    %8 = sbr.rel target = $region3
  $region8: #{vit_forward.8} parent=0 // loop_exit
    _

// kernel: vit_forward.9
$region0: #{vit_forward.9}
  #allocation0 [shape = 'u32[]', space=smem, size = 0x4, offset = 0x4, fixed_abs, tag = 'smem constant byte address 0x4 - core index']
  #allocation1 [shape = 'u32[144,128]{1,0:T(1,128)}', space=vmem, size = 0x12000, scoped, tag = 'internal scratch']
  %s0 = inlined_call_operand.vmem [shape: f32[256,32], index: 0, kind: input, shape index: {}]
  %s1 = inlined_call_operand.vmem [shape: f32[1,32], index: 1, kind: input, shape index: {}]
  %s2 = inlined_call_operand.vmem [shape: f32[1,32], index: 2, kind: input, shape index: {}]
  %s3 = inlined_call_operand.vmem [shape: bf16[32,96], index: 3, kind: input, shape index: {}]
  %s4 = inlined_call_operand.vmem [shape: f32[1,96], index: 4, kind: input, shape index: {}]
  %s5 = inlined_call_operand.vmem [shape: bf16[256,96], index: 5, kind: output, shape index: {}]
  %s6 = sld [smem:[#allocation0]]
  $region53: #{vit_forward.9} parent=0
    _
  %s8 = ssub.s32 1, %s6
  %s9 = scalar_select 0, %s8, %s6
  loop: start=0, step=1, limit=4
  $region2: #{vit_forward.9} parent=0 // loop_pre_header
    _
  $region3: #{vit_forward.9} parent=0 // loop_header
    %s11 = sphi 0, %s15
    %p12 = scmp.ge.s32.totalorder %s11, 4
    %s21 = sphi 0, %s23
    %s24 = sphi 0, %s21
    %s25 = sphi 0, %s24
    %s41 = sphi 0, %s25
    %s45 = sphi 0, %s45
    %s47 = sphi 0, %s45
    %s48 = sphi 0, %s47
    %s62 = sphi 0, %s48
    %s66 = sphi 0, %s66
    %s68 = sphi 0, %s66
    %s69 = sphi 0, %s68
    %s83 = sphi 0, %s69
    %s87 = sphi 0, %s87
    %s89 = sphi 0, %s87
    %s90 = sphi 0, %s89
    %s104 = sphi 0, %s90
    %s108 = sphi 0, %s108
    %s110 = sphi 0, %s108
    %s111 = sphi 0, %s110
    %s125 = sphi 0, %s111
    %s131 = sphi 0, %s133
    %s134 = sphi 0, %s131
    %s135 = sphi 0, %s134
    %s151 = sphi 0, %s135
  $region4: #{vit_forward.9} parent=0 // loop_header_branch
    %14 = sbr.rel (%p12) target = $region8
  $region5: #{vit_forward.9} parent=0 // loop_body
    %s16 = ssub.s32 %s11, 1
    %s17 = ssub.s32 %s11, 2
    %s18 = sadd.s32 %s11, 1
    %s19 = ssub.s32 %s11, %s18
    %p20 = scmp.eq.s32.totalorder %s19, 0
    %s22 = sadd.s32 %s21, 1
    %s23 = scalar_select %p20, %s21, %s22
    %p26 = pneg %p20
    %p27 = scmp.eq.s32.totalorder %s11, 1
    %p28 = por %p26, %p27
    %p29 = scmp.ne.s32.totalorder %s21, %s24
    %p30 = scmp.eq.s32.totalorder %s11, 0
    %p31 = por %p29, %p30
    %p32 = scmp.ne.s32.totalorder %s21, %s24
    %p33 = scmp.eq.s32.totalorder %s16, 1
    %p34 = por %p32, %p33
    %p35 = scmp.ne.s32.totalorder %s24, %s25
    %p36 = scmp.eq.s32.totalorder %s16, 0
    %p37 = por %p35, %p36
    %p38 = scmp.ne.s32.totalorder %s24, %s25
    %p39 = scmp.eq.s32.totalorder %s17, 1
    %p40 = por %p38, %p39
    %p42 = scmp.ne.s32.totalorder %s25, %s41
    %p43 = scmp.eq.s32.totalorder %s17, 0
    %p44 = por %p42, %p43
    %s46 = sadd.s32 %s45, 1
    %p49 = scmp.eq.s32.totalorder %s11, 1
    %p50 = scmp.ne.s32.totalorder %s45, %s47
    %p51 = scmp.eq.s32.totalorder %s11, 0
    %p52 = por %p50, %p51
    %p53 = scmp.ne.s32.totalorder %s45, %s47
    %p54 = scmp.eq.s32.totalorder %s16, 1
    %p55 = por %p53, %p54
    %p56 = scmp.ne.s32.totalorder %s47, %s48
    %p57 = scmp.eq.s32.totalorder %s16, 0
    %p58 = por %p56, %p57
    %p59 = scmp.ne.s32.totalorder %s47, %s48
    %p60 = scmp.eq.s32.totalorder %s17, 1
    %p61 = por %p59, %p60
    %p63 = scmp.ne.s32.totalorder %s48, %s62
    %p64 = scmp.eq.s32.totalorder %s17, 0
    %p65 = por %p63, %p64
    %s67 = sadd.s32 %s66, 1
    %p70 = scmp.eq.s32.totalorder %s11, 1
    %p71 = scmp.ne.s32.totalorder %s66, %s68
    %p72 = scmp.eq.s32.totalorder %s11, 0
    %p73 = por %p71, %p72
    %p74 = scmp.ne.s32.totalorder %s66, %s68
    %p75 = scmp.eq.s32.totalorder %s16, 1
    %p76 = por %p74, %p75
    %p77 = scmp.ne.s32.totalorder %s68, %s69
    %p78 = scmp.eq.s32.totalorder %s16, 0
    %p79 = por %p77, %p78
    %p80 = scmp.ne.s32.totalorder %s68, %s69
    %p81 = scmp.eq.s32.totalorder %s17, 1
    %p82 = por %p80, %p81
    %p84 = scmp.ne.s32.totalorder %s69, %s83
    %p85 = scmp.eq.s32.totalorder %s17, 0
    %p86 = por %p84, %p85
    %s88 = sadd.s32 %s87, 1
    %p91 = scmp.eq.s32.totalorder %s11, 1
    %p92 = scmp.ne.s32.totalorder %s87, %s89
    %p93 = scmp.eq.s32.totalorder %s11, 0
    %p94 = por %p92, %p93
    %p95 = scmp.ne.s32.totalorder %s87, %s89
    %p96 = scmp.eq.s32.totalorder %s16, 1
    %p97 = por %p95, %p96
    %p98 = scmp.ne.s32.totalorder %s89, %s90
    %p99 = scmp.eq.s32.totalorder %s16, 0
    %p100 = por %p98, %p99
    %p101 = scmp.ne.s32.totalorder %s89, %s90
    %p102 = scmp.eq.s32.totalorder %s17, 1
    %p103 = por %p101, %p102
    %p105 = scmp.ne.s32.totalorder %s90, %s104
    %p106 = scmp.eq.s32.totalorder %s17, 0
    %p107 = por %p105, %p106
    %s109 = sadd.s32 %s108, 1
    %p112 = scmp.eq.s32.totalorder %s11, 1
    %p113 = scmp.ne.s32.totalorder %s108, %s110
    %p114 = scmp.eq.s32.totalorder %s11, 0
    %p115 = por %p113, %p114
    %p116 = scmp.ne.s32.totalorder %s108, %s110
    %p117 = scmp.eq.s32.totalorder %s16, 1
    %p118 = por %p116, %p117
    %p119 = scmp.ne.s32.totalorder %s110, %s111
    %p120 = scmp.eq.s32.totalorder %s16, 0
    %p121 = por %p119, %p120
    %p122 = scmp.ne.s32.totalorder %s110, %s111
    %p123 = scmp.eq.s32.totalorder %s17, 1
    %p124 = por %p122, %p123
    %p126 = scmp.ne.s32.totalorder %s111, %s125
    %p127 = scmp.eq.s32.totalorder %s17, 0
    %p128 = por %p126, %p127
    %s129 = ssub.s32 %s11, %s18
    %p130 = scmp.eq.s32.totalorder %s129, 0
    %s132 = sadd.s32 %s131, 1
    %s133 = scalar_select %p130, %s131, %s132
    %p136 = pneg %p130
    %p137 = scmp.eq.s32.totalorder %s11, 1
    %p138 = por %p136, %p137
    %p139 = scmp.ne.s32.totalorder %s131, %s134
    %p140 = scmp.eq.s32.totalorder %s11, 0
    %p141 = por %p139, %p140
    %p142 = scmp.ne.s32.totalorder %s131, %s134
    %p143 = scmp.eq.s32.totalorder %s16, 1
    %p144 = por %p142, %p143
    %p145 = scmp.ne.s32.totalorder %s134, %s135
    %p146 = scmp.eq.s32.totalorder %s16, 0
    %p147 = por %p145, %p146
    %p148 = scmp.ne.s32.totalorder %s134, %s135
    %p149 = scmp.eq.s32.totalorder %s17, 1
    %p150 = por %p148, %p149
    %p152 = scmp.ne.s32.totalorder %s135, %s151
    %p153 = scmp.eq.s32.totalorder %s17, 0
    %p154 = por %p152, %p153
    %p155 = scmp.le.s32.totalorder 1, %s11
    %p156 = scmp.lt.s32.totalorder %s11, 3
    %p157 = pnand %p155, %p156
    %p158 = pneg %p157
    // Predicated region
    $region9: #{vit_forward.9} parent=5 // pred_check
      _
    $region10: #{vit_forward.9} parent=5 // pred_check_branch
      %160 = sbr.rel (%p157) target = $region12
    $region11: #{vit_forward.9} parent=5 // pred_region
      %s161 = ssub.s32 %s11, 1
      // Predicated region
      $region13: #{vit_forward.9} parent=11 // pred_check
        %p162 = pneg %p58
      $region14: #{vit_forward.9} parent=11 // pred_check_branch
        %164 = sbr.rel (%p162) target = $region16
      $region15: #{vit_forward.9} parent=11 // pred_region
        _
      $region16: #{vit_forward.9} parent=11 // pred_fallthru
        _
      // Predicated region
      $region17: #{vit_forward.9} parent=11 // pred_check
        %p165 = pneg %p79
      $region18: #{vit_forward.9} parent=11 // pred_check_branch
        %167 = sbr.rel (%p165) target = $region20
      $region19: #{vit_forward.9} parent=11 // pred_region
        _
      $region20: #{vit_forward.9} parent=11 // pred_fallthru
        _
      // Predicated region
      $region21: #{vit_forward.9} parent=11 // pred_check
        %p168 = pneg %p100
      $region22: #{vit_forward.9} parent=11 // pred_check_branch
        %170 = sbr.rel (%p168) target = $region24
      $region23: #{vit_forward.9} parent=11 // pred_region
        _
      $region24: #{vit_forward.9} parent=11 // pred_fallthru
        _
      // Predicated region
      $region25: #{vit_forward.9} parent=11 // pred_check
        %p171 = pneg %p121
      $region26: #{vit_forward.9} parent=11 // pred_check_branch
        %173 = sbr.rel (%p171) target = $region28
      $region27: #{vit_forward.9} parent=11 // pred_region
        _
      $region28: #{vit_forward.9} parent=11 // pred_fallthru
        _
    $region12: #{vit_forward.9} parent=5 // pred_fallthru
      _
    %p174 = scmp.lt.s32.totalorder %s11, 2
    // Predicated region
    $region29: #{vit_forward.9} parent=5 // pred_check
      %p175 = pneg %p174
    $region30: #{vit_forward.9} parent=5 // pred_check_branch
      %177 = sbr.rel (%p175) target = $region32
    $region31: #{vit_forward.9} parent=5 // pred_region
      // Predicated region
      $region33: #{vit_forward.9} parent=31 // pred_check
        %p178 = pneg %p31
      $region34: #{vit_forward.9} parent=31 // pred_check_branch
        %180 = sbr.rel (%p178) target = $region36
      $region35: #{vit_forward.9} parent=31 // pred_region
        %s181 = smul.u32 16, %s11
        %p182 = scmp.lt.s32.totalorder %s181, 31
        %s183 = scalar_select %p182, %s181, 31
        %s184 = smul.addr %s183, 8
        %s185 = scalar_lea.vmem %s0, %s184
        %s186 = smul.u32 16, %s11
      $region36: #{vit_forward.9} parent=31 // pred_fallthru
        _
    $region32: #{vit_forward.9} parent=5 // pred_fallthru
      _
    %p187 = scmp.le.s32.totalorder 1, %s11
    %p188 = scmp.lt.s32.totalorder %s11, 3
    %p189 = pnand %p187, %p188
    %p190 = pneg %p189
    // Predicated region
    $region37: #{vit_forward.9} parent=5 // pred_check
      _
    $region38: #{vit_forward.9} parent=5 // pred_check_branch
      %192 = sbr.rel (%p189) target = $region40
    $region39: #{vit_forward.9} parent=5 // pred_region
      %s193 = ssub.s32 %s11, 1
      %s194 = smul.u32 16, %s16
      %p195 = scmp.lt.s32.totalorder %s194, 31
      %s196 = scalar_select %p195, %s194, 31
      %s197 = smul.addr %s196, 8
      %s198 = scalar_lea.vmem %s0, %s197
      %p199 = pneg %p37
      %p200 = pneg %p34
      %p201 = pneg %p58
      %p202 = pneg %p55
      %p203 = pneg %p79
      %p204 = pneg %p76
      %p205 = pneg %p100
      %p206 = pneg %p97
      %p207 = pneg %p121
      %p208 = pneg %p118
      %p209 = pneg %p147
      %p210 = pneg %p144
      %s211 = smul.u32 16, %s16
      %p212 = scmp.lt.s32.totalorder %s211, 31
      %s213 = scalar_select %p212, %s211, 31
      %s214 = smul.addr %s213, 4
      %s215 = scalar_lea.vmem %s5, %s214
      %s216 = smul.u32 16, %s16
      %p217 = scmp.lt.s32.totalorder %s216, 31
      %s218 = scalar_select %p217, %s216, 31
      %s219 = smul.addr %s218, 8
      %s220 = scalar_lea.vmem %s0, %s219
      %s221 = smul.u32 16, %s16
      %s222 = smul.u32 16, %s16
      %p223 = scmp.lt.s32.totalorder %s222, 31
      %s224 = scalar_select %p223, %s222, 31
      %s225 = smul.addr %s224, 4
      %s226 = scalar_lea.vmem %s5, %s225
      %s227 = smul.u32 16, %s16
      %v229 = vld [vmem:[%s220] sm:$0xff]
      %v230 = vld [vmem:[%s220 + $0x8] sm:$0xff]
      %v231 = vld [vmem:[%s220 + $0x10] sm:$0xff]
      %v232 = vld [vmem:[%s220 + $0x18] sm:$0xff]
      %v233 = vld [vmem:[%s220 + $0x20] sm:$0xff]
      %v234 = vld [vmem:[%s220 + $0x28] sm:$0xff]
      %v235 = vld [vmem:[%s220 + $0x30] sm:$0xff]
      %v236 = vld [vmem:[%s220 + $0x38] sm:$0xff]
      %v237 = vld [vmem:[%s220 + $0x40] sm:$0xff]
      %v238 = vld [vmem:[%s220 + $0x48] sm:$0xff]
      %v239 = vld [vmem:[%s220 + $0x50] sm:$0xff]
      %v240 = vld [vmem:[%s220 + $0x58] sm:$0xff]
      %v241 = vld [vmem:[%s220 + $0x60] sm:$0xff]
      %v242 = vld [vmem:[%s220 + $0x68] sm:$0xff]
      %v243 = vld [vmem:[%s220 + $0x70] sm:$0xff]
      %v244 = vld [vmem:[%s220 + $0x78] sm:$0xff]
      %v245 = vld [vmem:[%s1] sm:$0x1]
      %v246 = vld [vmem:[%s2] sm:$0x1]
      %vm247 = vcmask 261120
      %v248 = vsel %vm247, %v229, 0.0
      %249 = vadd.xlane.f32.xlu0 %v248
      %v250 = vpop.xlane.xlu0 %249
      %v251 = vsel %vm247, %v230, 0.0
      %252 = vadd.xlane.f32.xlu0 %v251
      %v253 = vpop.xlane.xlu0 %252
      %v254 = vsel %vm247, %v231, 0.0
      %255 = vadd.xlane.f32.xlu0 %v254
      %v256 = vpop.xlane.xlu0 %255
      %v257 = vsel %vm247, %v232, 0.0
      %258 = vadd.xlane.f32.xlu0 %v257
      %v259 = vpop.xlane.xlu0 %258
      %v260 = vsel %vm247, %v233, 0.0
      %261 = vadd.xlane.f32.xlu0 %v260
      %v262 = vpop.xlane.xlu0 %261
      %v263 = vsel %vm247, %v234, 0.0
      %264 = vadd.xlane.f32.xlu0 %v263
      %v265 = vpop.xlane.xlu0 %264
      %v266 = vsel %vm247, %v235, 0.0
      %267 = vadd.xlane.f32.xlu0 %v266
      %v268 = vpop.xlane.xlu0 %267
      %v269 = vsel %vm247, %v236, 0.0
      %270 = vadd.xlane.f32.xlu0 %v269
      %v271 = vpop.xlane.xlu0 %270
      %v272 = vsel %vm247, %v237, 0.0
      %273 = vadd.xlane.f32.xlu0 %v272
      %v274 = vpop.xlane.xlu0 %273
      %v275 = vsel %vm247, %v238, 0.0
      %276 = vadd.xlane.f32.xlu0 %v275
      %v277 = vpop.xlane.xlu0 %276
      %v278 = vsel %vm247, %v239, 0.0
      %279 = vadd.xlane.f32.xlu0 %v278
      %v280 = vpop.xlane.xlu0 %279
      %v281 = vsel %vm247, %v240, 0.0
      %282 = vadd.xlane.f32.xlu0 %v281
      %v283 = vpop.xlane.xlu0 %282
      %v284 = vsel %vm247, %v241, 0.0
      %285 = vadd.xlane.f32.xlu0 %v284
      %v286 = vpop.xlane.xlu0 %285
      %v287 = vsel %vm247, %v242, 0.0
      %288 = vadd.xlane.f32.xlu0 %v287
      %v289 = vpop.xlane.xlu0 %288
      %v290 = vsel %vm247, %v243, 0.0
      %291 = vadd.xlane.f32.xlu0 %v290
      %v292 = vpop.xlane.xlu0 %291
      %v293 = vsel %vm247, %v244, 0.0
      %294 = vadd.xlane.f32.xlu0 %v293
      %v295 = vpop.xlane.xlu0 %294
      %v296 = vrcp.pop 32.0
      %v297 = vmul.f32 %v250, %v296
      %v298 = vmul.f32 %v253, %v296
      %v299 = vmul.f32 %v256, %v296
      %v300 = vmul.f32 %v259, %v296
      %v301 = vmul.f32 %v262, %v296
      %v302 = vmul.f32 %v265, %v296
      %v303 = vmul.f32 %v268, %v296
      %v304 = vmul.f32 %v271, %v296
      %v305 = vmul.f32 %v274, %v296
      %v306 = vmul.f32 %v277, %v296
      %v307 = vmul.f32 %v280, %v296
      %v308 = vmul.f32 %v283, %v296
      %v309 = vmul.f32 %v286, %v296
      %v310 = vmul.f32 %v289, %v296
      %v311 = vmul.f32 %v292, %v296
      %v312 = vmul.f32 %v295, %v296
      %v313 = vsub.f32 %v229, %v297
      %v314 = vsub.f32 %v230, %v298
      %v315 = vsub.f32 %v231, %v299
      %v316 = vsub.f32 %v232, %v300
      %v317 = vsub.f32 %v233, %v301
      %v318 = vsub.f32 %v234, %v302
      %v319 = vsub.f32 %v235, %v303
      %v320 = vsub.f32 %v236, %v304
      %v321 = vsub.f32 %v237, %v305
      %v322 = vsub.f32 %v238, %v306
      %v323 = vsub.f32 %v239, %v307
      %v324 = vsub.f32 %v240, %v308
      %v325 = vsub.f32 %v241, %v309
      %v326 = vsub.f32 %v242, %v310
      %v327 = vsub.f32 %v243, %v311
      %v328 = vsub.f32 %v244, %v312
      %v329 = vmul.f32 %v313, %v313
      %v330 = vmul.f32 %v314, %v314
      %v331 = vmul.f32 %v315, %v315
      %v332 = vmul.f32 %v316, %v316
      %v333 = vmul.f32 %v317, %v317
      %v334 = vmul.f32 %v318, %v318
      %v335 = vmul.f32 %v319, %v319
      %v336 = vmul.f32 %v320, %v320
      %v337 = vmul.f32 %v321, %v321
      %v338 = vmul.f32 %v322, %v322
      %v339 = vmul.f32 %v323, %v323
      %v340 = vmul.f32 %v324, %v324
      %v341 = vmul.f32 %v325, %v325
      %v342 = vmul.f32 %v326, %v326
      %v343 = vmul.f32 %v327, %v327
      %v344 = vmul.f32 %v328, %v328
      %v345 = vsel %vm247, %v329, 0.0
      %346 = vadd.xlane.f32.xlu0 %v345
      %v347 = vpop.xlane.xlu0 %346
      %v348 = vsel %vm247, %v330, 0.0
      %349 = vadd.xlane.f32.xlu0 %v348
      %v350 = vpop.xlane.xlu0 %349
      %v351 = vsel %vm247, %v331, 0.0
      %352 = vadd.xlane.f32.xlu0 %v351
      %v353 = vpop.xlane.xlu0 %352
      %v354 = vsel %vm247, %v332, 0.0
      %355 = vadd.xlane.f32.xlu0 %v354
      %v356 = vpop.xlane.xlu0 %355
      %v357 = vsel %vm247, %v333, 0.0
      %358 = vadd.xlane.f32.xlu0 %v357
      %v359 = vpop.xlane.xlu0 %358
      %v360 = vsel %vm247, %v334, 0.0
      %361 = vadd.xlane.f32.xlu0 %v360
      %v362 = vpop.xlane.xlu0 %361
      %v363 = vsel %vm247, %v335, 0.0
      %364 = vadd.xlane.f32.xlu0 %v363
      %v365 = vpop.xlane.xlu0 %364
      %v366 = vsel %vm247, %v336, 0.0
      %367 = vadd.xlane.f32.xlu0 %v366
      %v368 = vpop.xlane.xlu0 %367
      %v369 = vsel %vm247, %v337, 0.0
      %370 = vadd.xlane.f32.xlu0 %v369
      %v371 = vpop.xlane.xlu0 %370
      %v372 = vsel %vm247, %v338, 0.0
      %373 = vadd.xlane.f32.xlu0 %v372
      %v374 = vpop.xlane.xlu0 %373
      %v375 = vsel %vm247, %v339, 0.0
      %376 = vadd.xlane.f32.xlu0 %v375
      %v377 = vpop.xlane.xlu0 %376
      %v378 = vsel %vm247, %v340, 0.0
      %379 = vadd.xlane.f32.xlu0 %v378
      %v380 = vpop.xlane.xlu0 %379
      %v381 = vsel %vm247, %v341, 0.0
      %382 = vadd.xlane.f32.xlu0 %v381
      %v383 = vpop.xlane.xlu0 %382
      %v384 = vsel %vm247, %v342, 0.0
      %385 = vadd.xlane.f32.xlu0 %v384
      %v386 = vpop.xlane.xlu0 %385
      %v387 = vsel %vm247, %v343, 0.0
      %388 = vadd.xlane.f32.xlu0 %v387
      %v389 = vpop.xlane.xlu0 %388
      %v390 = vsel %vm247, %v344, 0.0
      %391 = vadd.xlane.f32.xlu0 %v390
      %v392 = vpop.xlane.xlu0 %391
      %v393 = vmul.f32 %v347, %v296
      %v394 = vmul.f32 %v350, %v296
      %v395 = vmul.f32 %v353, %v296
      %v396 = vmul.f32 %v356, %v296
      %v397 = vmul.f32 %v359, %v296
      %v398 = vmul.f32 %v362, %v296
      %v399 = vmul.f32 %v365, %v296
      %v400 = vmul.f32 %v368, %v296
      %v401 = vmul.f32 %v371, %v296
      %v402 = vmul.f32 %v374, %v296
      %v403 = vmul.f32 %v377, %v296
      %v404 = vmul.f32 %v380, %v296
      %v405 = vmul.f32 %v383, %v296
      %v406 = vmul.f32 %v386, %v296
      %v407 = vmul.f32 %v389, %v296
      %v408 = vmul.f32 %v392, %v296
      %v409 = vadd.f32 %v393, 1e-05
      %v410 = vadd.f32 %v394, 1e-05
      %v411 = vadd.f32 %v395, 1e-05
      %v412 = vadd.f32 %v396, 1e-05
      %v413 = vadd.f32 %v397, 1e-05
      %v414 = vadd.f32 %v398, 1e-05
      %v415 = vadd.f32 %v399, 1e-05
      %v416 = vadd.f32 %v400, 1e-05
      %v417 = vadd.f32 %v401, 1e-05
      %v418 = vadd.f32 %v402, 1e-05
      %v419 = vadd.f32 %v403, 1e-05
      %v420 = vadd.f32 %v404, 1e-05
      %v421 = vadd.f32 %v405, 1e-05
      %v422 = vadd.f32 %v406, 1e-05
      %v423 = vadd.f32 %v407, 1e-05
      %v424 = vadd.f32 %v408, 1e-05
      %v425 = vrsqrt.pop %v409
      %v426 = vrsqrt.pop %v410
      %v427 = vrsqrt.pop %v411
      %v428 = vrsqrt.pop %v412
      %v429 = vrsqrt.pop %v413
      %v430 = vrsqrt.pop %v414
      %v431 = vrsqrt.pop %v415
      %v432 = vrsqrt.pop %v416
      %v433 = vrsqrt.pop %v417
      %v434 = vrsqrt.pop %v418
      %v435 = vrsqrt.pop %v419
      %v436 = vrsqrt.pop %v420
      %v437 = vrsqrt.pop %v421
      %v438 = vrsqrt.pop %v422
      %v439 = vrsqrt.pop %v423
      %v440 = vrsqrt.pop %v424
      %v441 = vmul.f32 %v313, %v425
      %v442 = vmul.f32 %v314, %v426
      %v443 = vmul.f32 %v315, %v427
      %v444 = vmul.f32 %v316, %v428
      %v445 = vmul.f32 %v317, %v429
      %v446 = vmul.f32 %v318, %v430
      %v447 = vmul.f32 %v319, %v431
      %v448 = vmul.f32 %v320, %v432
      %v449 = vmul.f32 %v321, %v433
      %v450 = vmul.f32 %v322, %v434
      %v451 = vmul.f32 %v323, %v435
      %v452 = vmul.f32 %v324, %v436
      %v453 = vmul.f32 %v325, %v437
      %v454 = vmul.f32 %v326, %v438
      %v455 = vmul.f32 %v327, %v439
      %v456 = vmul.f32 %v328, %v440
      %v458 = vlaneseq
      %v459 = vshrl.u32 %v458, 7
      %v460 = vsub.s32 0, %v459
      %v461 = vrot.slane %v245, %v460
      %v463 = vmul.f32 %v441, %v461
      %v464 = vmul.f32 %v442, %v461
      %v465 = vmul.f32 %v443, %v461
      %v466 = vmul.f32 %v444, %v461
      %v467 = vmul.f32 %v445, %v461
      %v468 = vmul.f32 %v446, %v461
      %v469 = vmul.f32 %v447, %v461
      %v470 = vmul.f32 %v448, %v461
      %v471 = vmul.f32 %v449, %v461
      %v472 = vmul.f32 %v450, %v461
      %v473 = vmul.f32 %v451, %v461
      %v474 = vmul.f32 %v452, %v461
      %v475 = vmul.f32 %v453, %v461
      %v476 = vmul.f32 %v454, %v461
      %v477 = vmul.f32 %v455, %v461
      %v478 = vmul.f32 %v456, %v461
      %v480 = vlaneseq
      %v481 = vshrl.u32 %v480, 7
      %v482 = vsub.s32 0, %v481
      %v483 = vrot.slane %v246, %v482
      %v485 = vadd.f32 %v463, %v483
      %v486 = vadd.f32 %v464, %v483
      %v487 = vadd.f32 %v465, %v483
      %v488 = vadd.f32 %v466, %v483
      %v489 = vadd.f32 %v467, %v483
      %v490 = vadd.f32 %v468, %v483
      %v491 = vadd.f32 %v469, %v483
      %v492 = vadd.f32 %v470, %v483
      %v493 = vadd.f32 %v471, %v483
      %v494 = vadd.f32 %v472, %v483
      %v495 = vadd.f32 %v473, %v483
      %v496 = vadd.f32 %v474, %v483
      %v497 = vadd.f32 %v475, %v483
      %v498 = vadd.f32 %v476, %v483
      %v499 = vadd.f32 %v477, %v483
      %v500 = vadd.f32 %v478, %v483
      %v501 = vpack.c.bf16 %v486, %v485
      %v502 = vpack.c.bf16 %v488, %v487
      %v503 = vpack.c.bf16 %v490, %v489
      %v504 = vpack.c.bf16 %v492, %v491
      %v505 = vpack.c.bf16 %v494, %v493
      %v506 = vpack.c.bf16 %v496, %v495
      %v507 = vpack.c.bf16 %v498, %v497
      %v508 = vpack.c.bf16 %v500, %v499
      %v509 = vld [vmem:[%s3] sm:$0xf]
      %v510 = vld [vmem:[%s3 + $0x4] sm:$0xf]
      %v511 = vld [vmem:[%s3 + $0x8] sm:$0xf]
      %v512 = vld [vmem:[%s3 + $0xc] sm:$0xf]
      %v513 = vld [vmem:[%s4] sm:$0x1]
      %v515 = vlaneseq
      %v516 = vshrl.u32 %v515, 7
      %v517 = vsub.s32 0, %v516
      %v518 = vrot.slane %v513, %v517
      %v524 = vunpack.c.l.b16 %v509
      %v525 = vunpack.c.l.b16 %v510
      %v526 = vunpack.c.l.b16 %v511
      %v527 = vunpack.c.l.b16 %v512
      %v528 = vpack.c.b16 %v525, %v524
      %v529 = vpack.c.b16 %v527, %v526
      %v533 = vsel %vm247, %v501, 0
      %v536 = vsel %vm247, %v502, 0
      %v539 = vsel %vm247, %v503, 0
      %v542 = vsel %vm247, %v504, 0
      %v545 = vsel %vm247, %v505, 0
      %v548 = vsel %vm247, %v506, 0
      %v551 = vsel %vm247, %v507, 0
      %v554 = vsel %vm247, %v508, 0
      %556 = vmatprep.subr.bf16.mxu0 0
      %557 = vmatpush1.bf16.msra.mxu0 %v528
      %558 = vmatprep.subr.bf16.mxu0 0
      %559 = vmatpush1.bf16.msra.mxu0 %v529
      %560 = vmatprep.subr.bf16.mxu0 0
      %561 = vmatpush1.bf16.msra.mxu0 0
      %562 = vmatprep.subr.bf16.mxu0 0
      %563 = vmatpush1.bf16.msra.mxu0 0
      %564 = vmatprep.subr.bf16.mxu0 0
      %565 = vmatpush1.bf16.msra.mxu0 0
      %566 = vmatprep.subr.bf16.mxu0 0
      %567 = vmatpush1.bf16.msra.mxu0 0
      %568 = vmatprep.subr.bf16.mxu0 0
      %569 = vmatpush1.bf16.msra.mxu0 0
      %570 = vmatprep.subr.bf16.mxu0 0
      %571 = vmatpush1.bf16.msra.mxu0 0
      %572 = vmatprep.subr.bf16.mxu0 0
      %573 = vmatpush1.bf16.msra.mxu0 0
      %574 = vmatprep.subr.bf16.mxu0 0
      %575 = vmatpush1.bf16.msra.mxu0 0
      %576 = vmatprep.subr.bf16.mxu0 0
      %577 = vmatpush1.bf16.msra.mxu0 0
      %578 = vmatprep.subr.bf16.mxu0 0
      %579 = vmatpush1.bf16.msra.mxu0 0
      %580 = vmatprep.subr.bf16.mxu0 0
      %581 = vmatpush1.bf16.msra.mxu0 0
      %582 = vmatprep.subr.bf16.mxu0 0
      %583 = vmatpush1.bf16.msra.mxu0 0
      %584 = vmatprep.subr.bf16.mxu0 0
      %585 = vmatpush1.bf16.msra.mxu0 0
      %586 = vmatprep.subr.bf16.mxu0 0
      %587 = vmatpush1.bf16.msra.mxu0 0
      %588 = vmatprep.mubr.bf16.mxu0 0
      %589 = vmatmul.mubr.bf16.gmra.mrb[0].mxu0 %v533
      %v590 = vpop.f32.mrb[0].mxu0
      %v591 = vadd.f32 %v518, %v590
      %v592 = vpop.f32.mrb[0].mxu0
      %v593 = vpop.f32.mrb[0].mxu0
      %v594 = vadd.f32 %v518, %v593
      %v595 = vpop.f32.mrb[0].mxu0
      %596 = vmatprep.mubr.bf16.mxu0 0
      %597 = vmatmul.mubr.bf16.gmra.mrb[0].mxu0 %v536
      %v598 = vpop.f32.mrb[0].mxu0
      %v599 = vadd.f32 %v518, %v598
      %v600 = vpop.f32.mrb[0].mxu0
      %v601 = vpop.f32.mrb[0].mxu0
      %v602 = vadd.f32 %v518, %v601
      %v603 = vpop.f32.mrb[0].mxu0
      %604 = vmatprep.mubr.bf16.mxu0 0
      %605 = vmatmul.mubr.bf16.gmra.mrb[0].mxu0 %v539
      %v606 = vpop.f32.mrb[0].mxu0
      %v607 = vadd.f32 %v518, %v606
      %v608 = vpop.f32.mrb[0].mxu0
      %v609 = vpop.f32.mrb[0].mxu0
      %v610 = vadd.f32 %v518, %v609
      %v611 = vpop.f32.mrb[0].mxu0
      %612 = vmatprep.mubr.bf16.mxu0 0
      %613 = vmatmul.mubr.bf16.gmra.mrb[0].mxu0 %v542
      %v614 = vpop.f32.mrb[0].mxu0
      %v615 = vadd.f32 %v518, %v614
      %v616 = vpop.f32.mrb[0].mxu0
      %v617 = vpop.f32.mrb[0].mxu0
      %v618 = vadd.f32 %v518, %v617
      %v619 = vpop.f32.mrb[0].mxu0
      %620 = vmatprep.mubr.bf16.mxu0 0
      %621 = vmatmul.mubr.bf16.gmra.mrb[0].mxu0 %v545
      %v622 = vpop.f32.mrb[0].mxu0
      %v623 = vadd.f32 %v518, %v622
      %v624 = vpop.f32.mrb[0].mxu0
      %v625 = vpop.f32.mrb[0].mxu0
      %v626 = vadd.f32 %v518, %v625
      %v627 = vpop.f32.mrb[0].mxu0
      %628 = vmatprep.mubr.bf16.mxu0 0
      %629 = vmatmul.mubr.bf16.gmra.mrb[0].mxu0 %v548
      %v630 = vpop.f32.mrb[0].mxu0
      %v631 = vadd.f32 %v518, %v630
      %v632 = vpop.f32.mrb[0].mxu0
      %v633 = vpop.f32.mrb[0].mxu0
      %v634 = vadd.f32 %v518, %v633
      %v635 = vpop.f32.mrb[0].mxu0
      %636 = vmatprep.mubr.bf16.mxu0 0
      %637 = vmatmul.mubr.bf16.gmra.mrb[0].mxu0 %v551
      %v638 = vpop.f32.mrb[0].mxu0
      %v639 = vadd.f32 %v518, %v638
      %v640 = vpop.f32.mrb[0].mxu0
      %v641 = vpop.f32.mrb[0].mxu0
      %v642 = vadd.f32 %v518, %v641
      %v643 = vpop.f32.mrb[0].mxu0
      %644 = vmatprep.mubr.bf16.mxu0 0
      %645 = vmatmul.mubr.bf16.gmra.mrb[0].mxu0 %v554
      %v646 = vpop.f32.mrb[0].mxu0
      %v647 = vadd.f32 %v518, %v646
      %v648 = vpop.f32.mrb[0].mxu0
      %v649 = vpop.f32.mrb[0].mxu0
      %v650 = vadd.f32 %v518, %v649
      %v651 = vpop.f32.mrb[0].mxu0
      %652 = vdwg.mxu0
      %v653 = vpack.c.bf16 %v594, %v591
      %v654 = vpack.c.bf16 %v602, %v599
      %v655 = vpack.c.bf16 %v610, %v607
      %v656 = vpack.c.bf16 %v618, %v615
      %v657 = vpack.c.bf16 %v626, %v623
      %v658 = vpack.c.bf16 %v634, %v631
      %v659 = vpack.c.bf16 %v642, %v639
      %v660 = vpack.c.bf16 %v650, %v647
      %v669 = vunpack.c.l.b16 %v653
      %v670 = vunpack.c.h.b16 %v653
      %v671 = vunpack.c.l.b16 %v654
      %v672 = vunpack.c.h.b16 %v654
      %v673 = vunpack.c.l.b16 %v655
      %v674 = vunpack.c.h.b16 %v655
      %v675 = vunpack.c.l.b16 %v656
      %v676 = vunpack.c.h.b16 %v656
      %v677 = vunpack.c.l.b16 %v657
      %v678 = vunpack.c.h.b16 %v657
      %v679 = vunpack.c.l.b16 %v658
      %v680 = vunpack.c.h.b16 %v658
      %v681 = vunpack.c.l.b16 %v659
      %v682 = vunpack.c.h.b16 %v659
      %v683 = vunpack.c.l.b16 %v660
      %v684 = vunpack.c.h.b16 %v660
      %v685 = vpack.c.b16 %v669, %v669
      %v686 = vpack.c.b16 %v670, %v670
      %v687 = vpack.c.b16 %v671, %v671
      %v688 = vpack.c.b16 %v672, %v672
      %v689 = vpack.c.b16 %v673, %v673
      %v690 = vpack.c.b16 %v674, %v674
      %v691 = vpack.c.b16 %v675, %v675
      %v692 = vpack.c.b16 %v676, %v676
      %v693 = vpack.c.b16 %v677, %v677
      %v694 = vpack.c.b16 %v678, %v678
      %v695 = vpack.c.b16 %v679, %v679
      %v696 = vpack.c.b16 %v680, %v680
      %v697 = vpack.c.b16 %v681, %v681
      %v698 = vpack.c.b16 %v682, %v682
      %v699 = vpack.c.b16 %v683, %v683
      %v700 = vpack.c.b16 %v684, %v684
      %vm717 = vcmask 781312
      %718 = vst.msk [vmem:[%s226] sm:$0xf] %vm717, %v685
      %719 = vst.msk [vmem:[%s226 + $0x4] sm:$0xf] %vm717, %v686
      %720 = vst.msk [vmem:[%s226 + $0x8] sm:$0xf] %vm717, %v687
      %721 = vst.msk [vmem:[%s226 + $0xc] sm:$0xf] %vm717, %v688
      %722 = vst.msk [vmem:[%s226 + $0x10] sm:$0xf] %vm717, %v689
      %723 = vst.msk [vmem:[%s226 + $0x14] sm:$0xf] %vm717, %v690
      %724 = vst.msk [vmem:[%s226 + $0x18] sm:$0xf] %vm717, %v691
      %725 = vst.msk [vmem:[%s226 + $0x1c] sm:$0xf] %vm717, %v692
      %726 = vst.msk [vmem:[%s226 + $0x20] sm:$0xf] %vm717, %v693
      %727 = vst.msk [vmem:[%s226 + $0x24] sm:$0xf] %vm717, %v694
      %728 = vst.msk [vmem:[%s226 + $0x28] sm:$0xf] %vm717, %v695
      %729 = vst.msk [vmem:[%s226 + $0x2c] sm:$0xf] %vm717, %v696
      %730 = vst.msk [vmem:[%s226 + $0x30] sm:$0xf] %vm717, %v697
      %731 = vst.msk [vmem:[%s226 + $0x34] sm:$0xf] %vm717, %v698
      %732 = vst.msk [vmem:[%s226 + $0x38] sm:$0xf] %vm717, %v699
      %733 = vst.msk [vmem:[%s226 + $0x3c] sm:$0xf] %vm717, %v700
      %s734 = smul.u32 16, %s16
      %p735 = scmp.lt.s32.totalorder %s734, 31
      %s736 = scalar_select %p735, %s734, 31
      %s737 = smul.addr %s736, 4
      %s738 = scalar_lea.vmem %s5, %s737
      // Predicated region
      $region41: #{vit_forward.9} parent=39 // pred_check
        %p739 = pneg %p144
      $region42: #{vit_forward.9} parent=39 // pred_check_branch
        %741 = sbr.rel (%p739) target = $region44
      $region43: #{vit_forward.9} parent=39 // pred_region
        %s742 = smul.u32 16, %s16
      $region44: #{vit_forward.9} parent=39 // pred_fallthru
        _
    $region40: #{vit_forward.9} parent=5 // pred_fallthru
      _
    %p743 = scmp.le.s32.totalorder 2, %s11
    // Predicated region
    $region45: #{vit_forward.9} parent=5 // pred_check
      %p744 = pneg %p743
    $region46: #{vit_forward.9} parent=5 // pred_check_branch
      %746 = sbr.rel (%p744) target = $region48
    $region47: #{vit_forward.9} parent=5 // pred_region
      %s747 = ssub.s32 %s11, 2
      // Predicated region
      $region49: #{vit_forward.9} parent=47 // pred_check
        %p748 = pneg %p150
      $region50: #{vit_forward.9} parent=47 // pred_check_branch
        %750 = sbr.rel (%p748) target = $region52
      $region51: #{vit_forward.9} parent=47 // pred_region
        %s751 = smul.u32 16, %s17
        %p752 = scmp.lt.s32.totalorder %s751, 31
        %s753 = scalar_select %p752, %s751, 31
        %s754 = smul.addr %s753, 4
        %s755 = scalar_lea.vmem %s5, %s754
      $region52: #{vit_forward.9} parent=47 // pred_fallthru
        _
    $region48: #{vit_forward.9} parent=5 // pred_fallthru
      _
  $region6: #{vit_forward.9} parent=0 // loop_footer
    %s15 = sadd.s32 1, %s11
  $region7: #{vit_forward.9} parent=0 // loop_footer_branch
    %10 = sbr.rel target = $region3
  $region8: #{vit_forward.9} parent=0 // loop_exit
    _

// kernel: vit_forward.10
$region0: #{vit_forward.10}
  #allocation0 [shape = 'u32[]', space=smem, size = 0x4, offset = 0x4, fixed_abs, tag = 'smem constant byte address 0x4 - core index']
  #allocation1 [shape = 'u32[144,128]{1,0:T(1,128)}', space=vmem, size = 0x12000, scoped, tag = 'internal scratch']
  %s0 = inlined_call_operand.vmem [shape: bf16[2,128,96], index: 0, kind: input, shape index: {}]
  %s1 = inlined_call_operand.vmem [shape: bf16[2,128,32], index: 1, kind: output, shape index: {}]
  %s2 = sld [smem:[#allocation0]]
  $region37: #{vit_forward.10} parent=0
    _
  %s4 = ssub.s32 1, %s2
  %s5 = scalar_select 0, %s4, %s2
  loop: start=0, step=1, limit=4
  $region2: #{vit_forward.10} parent=0 // loop_pre_header
    _
  $region3: #{vit_forward.10} parent=0 // loop_header
    %s7 = sphi 0, %s11
    %p8 = scmp.ge.s32.totalorder %s7, 4
    %s17 = sphi 0, %s19
    %s20 = sphi 0, %s17
    %s21 = sphi 0, %s20
    %s37 = sphi 0, %s21
    %s43 = sphi 0, %s45
    %s46 = sphi 0, %s43
    %s47 = sphi 0, %s46
    %s63 = sphi 0, %s47
  $region4: #{vit_forward.10} parent=0 // loop_header_branch
    %10 = sbr.rel (%p8) target = $region8
  $region5: #{vit_forward.10} parent=0 // loop_body
    %s12 = ssub.s32 %s7, 1
    %s13 = ssub.s32 %s7, 2
    %s14 = sadd.s32 %s7, 1
    %s15 = ssub.s32 %s7, %s14
    %p16 = scmp.eq.s32.totalorder %s15, 0
    %s18 = sadd.s32 %s17, 1
    %s19 = scalar_select %p16, %s17, %s18
    %p22 = pneg %p16
    %p23 = scmp.eq.s32.totalorder %s7, 1
    %p24 = por %p22, %p23
    %p25 = scmp.ne.s32.totalorder %s17, %s20
    %p26 = scmp.eq.s32.totalorder %s7, 0
    %p27 = por %p25, %p26
    %p28 = scmp.ne.s32.totalorder %s17, %s20
    %p29 = scmp.eq.s32.totalorder %s12, 1
    %p30 = por %p28, %p29
    %p31 = scmp.ne.s32.totalorder %s20, %s21
    %p32 = scmp.eq.s32.totalorder %s12, 0
    %p33 = por %p31, %p32
    %p34 = scmp.ne.s32.totalorder %s20, %s21
    %p35 = scmp.eq.s32.totalorder %s13, 1
    %p36 = por %p34, %p35
    %p38 = scmp.ne.s32.totalorder %s21, %s37
    %p39 = scmp.eq.s32.totalorder %s13, 0
    %p40 = por %p38, %p39
    %s41 = ssub.s32 %s7, %s14
    %p42 = scmp.eq.s32.totalorder %s41, 0
    %s44 = sadd.s32 %s43, 1
    %s45 = scalar_select %p42, %s43, %s44
    %p48 = pneg %p42
    %p49 = scmp.eq.s32.totalorder %s7, 1
    %p50 = por %p48, %p49
    %p51 = scmp.ne.s32.totalorder %s43, %s46
    %p52 = scmp.eq.s32.totalorder %s7, 0
    %p53 = por %p51, %p52
    %p54 = scmp.ne.s32.totalorder %s43, %s46
    %p55 = scmp.eq.s32.totalorder %s12, 1
    %p56 = por %p54, %p55
    %p57 = scmp.ne.s32.totalorder %s46, %s47
    %p58 = scmp.eq.s32.totalorder %s12, 0
    %p59 = por %p57, %p58
    %p60 = scmp.ne.s32.totalorder %s46, %s47
    %p61 = scmp.eq.s32.totalorder %s13, 1
    %p62 = por %p60, %p61
    %p64 = scmp.ne.s32.totalorder %s47, %s63
    %p65 = scmp.eq.s32.totalorder %s13, 0
    %p66 = por %p64, %p65
    %p67 = scmp.le.s32.totalorder 1, %s7
    %p68 = scmp.lt.s32.totalorder %s7, 3
    %p69 = pnand %p67, %p68
    %p70 = pneg %p69
    // Predicated region
    $region9: #{vit_forward.10} parent=5 // pred_check
      _
    $region10: #{vit_forward.10} parent=5 // pred_check_branch
      %72 = sbr.rel (%p69) target = $region12
    $region11: #{vit_forward.10} parent=5 // pred_region
      %s73 = ssub.s32 %s7, 1
    $region12: #{vit_forward.10} parent=5 // pred_fallthru
      _
    %p74 = scmp.lt.s32.totalorder %s7, 2
    // Predicated region
    $region13: #{vit_forward.10} parent=5 // pred_check
      %p75 = pneg %p74
    $region14: #{vit_forward.10} parent=5 // pred_check_branch
      %77 = sbr.rel (%p75) target = $region16
    $region15: #{vit_forward.10} parent=5 // pred_region
      // Predicated region
      $region17: #{vit_forward.10} parent=15 // pred_check
        %p78 = pneg %p27
      $region18: #{vit_forward.10} parent=15 // pred_check_branch
        %80 = sbr.rel (%p78) target = $region20
      $region19: #{vit_forward.10} parent=15 // pred_region
        %p81 = scmp.lt.s32.totalorder %s7, 1
        %s82 = scalar_select %p81, %s7, 1
        %s83 = smul.addr %s82, 16
        %s84 = smul.addr %s83, 4
        %s85 = scalar_lea.vmem %s0, %s84
      $region20: #{vit_forward.10} parent=15 // pred_fallthru
        _
    $region16: #{vit_forward.10} parent=5 // pred_fallthru
      _
    %p86 = scmp.le.s32.totalorder 1, %s7
    %p87 = scmp.lt.s32.totalorder %s7, 3
    %p88 = pnand %p86, %p87
    %p89 = pneg %p88
    // Predicated region
    $region21: #{vit_forward.10} parent=5 // pred_check
      _
    $region22: #{vit_forward.10} parent=5 // pred_check_branch
      %91 = sbr.rel (%p88) target = $region24
    $region23: #{vit_forward.10} parent=5 // pred_region
      %s92 = ssub.s32 %s7, 1
      %p93 = scmp.lt.s32.totalorder %s12, 1
      %s94 = scalar_select %p93, %s12, 1
      %s95 = smul.addr %s94, 16
      %s96 = smul.addr %s95, 4
      %s97 = scalar_lea.vmem %s0, %s96
      %p98 = pneg %p33
      %p99 = pneg %p30
      %p100 = pneg %p59
      %p101 = pneg %p56
      %p102 = scmp.lt.s32.totalorder %s12, 1
      %s103 = scalar_select %p102, %s12, 1
      %s104 = smul.addr %s103, 16
      %s105 = smul.addr %s104, 4
      %s106 = scalar_lea.vmem %s1, %s105
      %p107 = scmp.lt.s32.totalorder %s12, 1
      %s108 = scalar_select %p107, %s12, 1
      %s109 = smul.addr %s108, 16
      %s110 = smul.addr %s109, 4
      %s111 = scalar_lea.vmem %s0, %s110
      %p112 = scmp.lt.s32.totalorder %s12, 1
      %s113 = scalar_select %p112, %s12, 1
      %s114 = smul.addr %s113, 16
      %s115 = smul.addr %s114, 4
      %s116 = scalar_lea.vmem %s1, %s115
      %v118 = vld [vmem:[%s111] sm:$0xf]
      %v119 = vld [vmem:[%s111 + $0x4] sm:$0xf]
      %v120 = vld [vmem:[%s111 + $0x8] sm:$0xf]
      %v121 = vld [vmem:[%s111 + $0xc] sm:$0xf]
      %v122 = vld [vmem:[%s111 + $0x10] sm:$0xf]
      %v123 = vld [vmem:[%s111 + $0x14] sm:$0xf]
      %v124 = vld [vmem:[%s111 + $0x18] sm:$0xf]
      %v125 = vld [vmem:[%s111 + $0x1c] sm:$0xf]
      %v126 = vld [vmem:[%s111 + $0x20] sm:$0xf]
      %v127 = vld [vmem:[%s111 + $0x24] sm:$0xf]
      %v128 = vld [vmem:[%s111 + $0x28] sm:$0xf]
      %v129 = vld [vmem:[%s111 + $0x2c] sm:$0xf]
      %v130 = vld [vmem:[%s111 + $0x30] sm:$0xf]
      %v131 = vld [vmem:[%s111 + $0x34] sm:$0xf]
      %v132 = vld [vmem:[%s111 + $0x38] sm:$0xf]
      %v133 = vld [vmem:[%s111 + $0x3c] sm:$0xf]
      %v134 = vlaneseq
      %v135 = vand.u32 %v134, 127
      %vm136 = vcmp.lt.s32.totalorder %v135, 17
      %v153 = vunpack.c.l.b16 %v118
      %v154 = vunpack.c.l.b16 %v119
      %v155 = vunpack.c.l.b16 %v120
      %v156 = vunpack.c.l.b16 %v121
      %v157 = vunpack.c.l.b16 %v122
      %v158 = vunpack.c.l.b16 %v123
      %v159 = vunpack.c.l.b16 %v124
      %v160 = vunpack.c.l.b16 %v125
      %v161 = vunpack.c.l.b16 %v126
      %v162 = vunpack.c.l.b16 %v127
      %v163 = vunpack.c.l.b16 %v128
      %v164 = vunpack.c.l.b16 %v129
      %v165 = vunpack.c.l.b16 %v130
      %v166 = vunpack.c.l.b16 %v131
      %v167 = vunpack.c.l.b16 %v132
      %v168 = vunpack.c.l.b16 %v133
      %v169 = vpack.c.b16 %v154, %v153
      %v170 = vpack.c.b16 %v156, %v155
      %v171 = vpack.c.b16 %v158, %v157
      %v172 = vpack.c.b16 %v160, %v159
      %v173 = vpack.c.b16 %v162, %v161
      %v174 = vpack.c.b16 %v164, %v163
      %v175 = vpack.c.b16 %v166, %v165
      %v176 = vpack.c.b16 %v168, %v167
      %177 = vrot.lane.b32.xlu0 %v169, 96
      %v178 = vpop.permute.xlu0 %177
      %179 = vrot.lane.b32.xlu0 %v170, 96
      %v180 = vpop.permute.xlu0 %179
      %181 = vrot.lane.b32.xlu0 %v171, 96
      %v182 = vpop.permute.xlu0 %181
      %183 = vrot.lane.b32.xlu0 %v172, 96
      %v184 = vpop.permute.xlu0 %183
      %185 = vrot.lane.b32.xlu0 %v173, 96
      %v186 = vpop.permute.xlu0 %185
      %187 = vrot.lane.b32.xlu0 %v174, 96
      %v188 = vpop.permute.xlu0 %187
      %189 = vrot.lane.b32.xlu0 %v175, 96
      %v190 = vpop.permute.xlu0 %189
      %191 = vrot.lane.b32.xlu0 %v176, 96
      %v192 = vpop.permute.xlu0 %191
      %vm193 = vcmask 64512
      %v195 = vsel %vm193, %v169, 0
      %v198 = vsel %vm193, %v170, 0
      %v201 = vsel %vm193, %v171, 0
      %v204 = vsel %vm193, %v172, 0
      %v207 = vsel %vm193, %v173, 0
      %v210 = vsel %vm193, %v174, 0
      %v213 = vsel %vm193, %v175, 0
      %v216 = vsel %vm193, %v176, 0
      %v219 = vsel %vm193, %v178, 0
      %v222 = vsel %vm193, %v180, 0
      %v225 = vsel %vm193, %v182, 0
      %v228 = vsel %vm193, %v184, 0
      %v231 = vsel %vm193, %v186, 0
      %v234 = vsel %vm193, %v188, 0
      %v237 = vsel %vm193, %v190, 0
      %v240 = vsel %vm193, %v192, 0
      %242 = vmatprep.subr.bf16.mxu0 0
      %243 = vmatpush1.bf16.xpose.msra.mxu0 %v219
      %244 = vmatprep.subr.bf16.mxu0 0
      %245 = vmatpush1.bf16.xpose.msra.mxu0 %v222
      %246 = vmatprep.subr.bf16.mxu0 0
      %247 = vmatpush1.bf16.xpose.msra.mxu0 %v225
      %248 = vmatprep.subr.bf16.mxu0 0
      %249 = vmatpush1.bf16.xpose.msra.mxu0 %v228
      %250 = vmatprep.subr.bf16.mxu0 0
      %251 = vmatpush1.bf16.xpose.msra.mxu0 %v231
      %252 = vmatprep.subr.bf16.mxu0 0
      %253 = vmatpush1.bf16.xpose.msra.mxu0 %v234
      %254 = vmatprep.subr.bf16.mxu0 0
      %255 = vmatpush1.bf16.xpose.msra.mxu0 %v237
      %256 = vmatprep.subr.bf16.mxu0 0
      %257 = vmatpush1.bf16.xpose.msra.mxu0 %v240
      %258 = vmatprep.subr.bf16.mxu0 0
      %259 = vmatpush1.bf16.xpose.msra.mxu0 0
      %260 = vmatprep.subr.bf16.mxu0 0
      %261 = vmatpush1.bf16.xpose.msra.mxu0 0
      %262 = vmatprep.subr.bf16.mxu0 0
      %263 = vmatpush1.bf16.xpose.msra.mxu0 0
      %264 = vmatprep.subr.bf16.mxu0 0
      %265 = vmatpush1.bf16.xpose.msra.mxu0 0
      %266 = vmatprep.subr.bf16.mxu0 0
      %267 = vmatpush1.bf16.xpose.msra.mxu0 0
      %268 = vmatprep.subr.bf16.mxu0 0
      %269 = vmatpush1.bf16.xpose.msra.mxu0 0
      %270 = vmatprep.subr.bf16.mxu0 0
      %271 = vmatpush1.bf16.xpose.msra.mxu0 0
      %272 = vmatprep.subr.bf16.mxu0 0
      %273 = vmatpush1.bf16.xpose.msra.mxu0 0
      %274 = vmatprep.mubr.bf16.mxu0 0
      %275 = vmatmul.mubr.bf16.gmra.mrb[0].mxu0 %v195
      %v276 = vpop.f32.mrb[0].mxu0
      %v277 = vadd.f32 0.0, %v276
      %v278 = vpop.f32.mrb[0].mxu0
      %v279 = vpop.f32.mrb[0].mxu0
      %v280 = vadd.f32 0.0, %v279
      %v281 = vpop.f32.mrb[0].mxu0
      %282 = vmatprep.mubr.bf16.mxu0 0
      %283 = vmatmul.mubr.bf16.gmra.mrb[0].mxu0 %v198
      %v284 = vpop.f32.mrb[0].mxu0
      %v285 = vadd.f32 0.0, %v284
      %v286 = vpop.f32.mrb[0].mxu0
      %v287 = vpop.f32.mrb[0].mxu0
      %v288 = vadd.f32 0.0, %v287
      %v289 = vpop.f32.mrb[0].mxu0
      %290 = vmatprep.mubr.bf16.mxu0 0
      %291 = vmatmul.mubr.bf16.gmra.mrb[0].mxu0 %v201
      %v292 = vpop.f32.mrb[0].mxu0
      %v293 = vadd.f32 0.0, %v292
      %v294 = vpop.f32.mrb[0].mxu0
      %v295 = vpop.f32.mrb[0].mxu0
      %v296 = vadd.f32 0.0, %v295
      %v297 = vpop.f32.mrb[0].mxu0
      %298 = vmatprep.mubr.bf16.mxu0 0
      %299 = vmatmul.mubr.bf16.gmra.mrb[0].mxu0 %v204
      %v300 = vpop.f32.mrb[0].mxu0
      %v301 = vadd.f32 0.0, %v300
      %v302 = vpop.f32.mrb[0].mxu0
      %v303 = vpop.f32.mrb[0].mxu0
      %v304 = vadd.f32 0.0, %v303
      %v305 = vpop.f32.mrb[0].mxu0
      %306 = vmatprep.mubr.bf16.mxu0 0
      %307 = vmatmul.mubr.bf16.gmra.mrb[0].mxu0 %v207
      %v308 = vpop.f32.mrb[0].mxu0
      %v309 = vadd.f32 0.0, %v308
      %v310 = vpop.f32.mrb[0].mxu0
      %v311 = vpop.f32.mrb[0].mxu0
      %v312 = vadd.f32 0.0, %v311
      %v313 = vpop.f32.mrb[0].mxu0
      %314 = vmatprep.mubr.bf16.mxu0 0
      %315 = vmatmul.mubr.bf16.gmra.mrb[0].mxu0 %v210
      %v316 = vpop.f32.mrb[0].mxu0
      %v317 = vadd.f32 0.0, %v316
      %v318 = vpop.f32.mrb[0].mxu0
      %v319 = vpop.f32.mrb[0].mxu0
      %v320 = vadd.f32 0.0, %v319
      %v321 = vpop.f32.mrb[0].mxu0
      %322 = vmatprep.mubr.bf16.mxu0 0
      %323 = vmatmul.mubr.bf16.gmra.mrb[0].mxu0 %v213
      %v324 = vpop.f32.mrb[0].mxu0
      %v325 = vadd.f32 0.0, %v324
      %v326 = vpop.f32.mrb[0].mxu0
      %v327 = vpop.f32.mrb[0].mxu0
      %v328 = vadd.f32 0.0, %v327
      %v329 = vpop.f32.mrb[0].mxu0
      %330 = vmatprep.mubr.bf16.mxu0 0
      %331 = vmatmul.mubr.bf16.gmra.mrb[0].mxu0 %v216
      %v332 = vpop.f32.mrb[0].mxu0
      %v333 = vadd.f32 0.0, %v332
      %v334 = vpop.f32.mrb[0].mxu0
      %v335 = vpop.f32.mrb[0].mxu0
      %v336 = vadd.f32 0.0, %v335
      %v337 = vpop.f32.mrb[0].mxu0
      %338 = vdwg.mxu0
      %v339 = vsel %vm136, 1, 0
      %vm340 = vcmp.eq.s32.totalorder %v339, 1
      %v341 = vsel %vm340, %v277, -1e+30
      %v342 = vsel %vm340, %v280, -1e+30
      %v343 = vsel %vm340, %v285, -1e+30
      %v344 = vsel %vm340, %v288, -1e+30
      %v345 = vsel %vm340, %v293, -1e+30
      %v346 = vsel %vm340, %v296, -1e+30
      %v347 = vsel %vm340, %v301, -1e+30
      %v348 = vsel %vm340, %v304, -1e+30
      %v349 = vsel %vm340, %v309, -1e+30
      %v350 = vsel %vm340, %v312, -1e+30
      %v351 = vsel %vm340, %v317, -1e+30
      %v352 = vsel %vm340, %v320, -1e+30
      %v353 = vsel %vm340, %v325, -1e+30
      %v354 = vsel %vm340, %v328, -1e+30
      %v355 = vsel %vm340, %v333, -1e+30
      %v356 = vsel %vm340, %v336, -1e+30
      %357 = vmax.xlane.f32.xlu0 %v341
      %v358 = vpop.xlane.xlu0 %357
      %359 = vmax.xlane.f32.xlu0 %v342
      %v360 = vpop.xlane.xlu0 %359
      %361 = vmax.xlane.f32.xlu0 %v343
      %v362 = vpop.xlane.xlu0 %361
      %363 = vmax.xlane.f32.xlu0 %v344
      %v364 = vpop.xlane.xlu0 %363
      %365 = vmax.xlane.f32.xlu0 %v345
      %v366 = vpop.xlane.xlu0 %365
      %367 = vmax.xlane.f32.xlu0 %v346
      %v368 = vpop.xlane.xlu0 %367
      %369 = vmax.xlane.f32.xlu0 %v347
      %v370 = vpop.xlane.xlu0 %369
      %371 = vmax.xlane.f32.xlu0 %v348
      %v372 = vpop.xlane.xlu0 %371
      %373 = vmax.xlane.f32.xlu0 %v349
      %v374 = vpop.xlane.xlu0 %373
      %375 = vmax.xlane.f32.xlu0 %v350
      %v376 = vpop.xlane.xlu0 %375
      %377 = vmax.xlane.f32.xlu0 %v351
      %v378 = vpop.xlane.xlu0 %377
      %379 = vmax.xlane.f32.xlu0 %v352
      %v380 = vpop.xlane.xlu0 %379
      %381 = vmax.xlane.f32.xlu0 %v353
      %v382 = vpop.xlane.xlu0 %381
      %383 = vmax.xlane.f32.xlu0 %v354
      %v384 = vpop.xlane.xlu0 %383
      %385 = vmax.xlane.f32.xlu0 %v355
      %v386 = vpop.xlane.xlu0 %385
      %387 = vmax.xlane.f32.xlu0 %v356
      %v388 = vpop.xlane.xlu0 %387
      %v389 = vsub.f32 %v341, %v358
      %v390 = vsub.f32 %v342, %v360
      %v391 = vsub.f32 %v343, %v362
      %v392 = vsub.f32 %v344, %v364
      %v393 = vsub.f32 %v345, %v366
      %v394 = vsub.f32 %v346, %v368
      %v395 = vsub.f32 %v347, %v370
      %v396 = vsub.f32 %v348, %v372
      %v397 = vsub.f32 %v349, %v374
      %v398 = vsub.f32 %v350, %v376
      %v399 = vsub.f32 %v351, %v378
      %v400 = vsub.f32 %v352, %v380
      %v401 = vsub.f32 %v353, %v382
      %v402 = vsub.f32 %v354, %v384
      %v403 = vsub.f32 %v355, %v386
      %v404 = vsub.f32 %v356, %v388
      %v405 = vmul.f32 %v389, 1.442695
      %v406 = vpow.pop %v405
      %v407 = vmul.f32 %v390, 1.442695
      %v408 = vpow.pop %v407
      %v409 = vmul.f32 %v391, 1.442695
      %v410 = vpow.pop %v409
      %v411 = vmul.f32 %v392, 1.442695
      %v412 = vpow.pop %v411
      %v413 = vmul.f32 %v393, 1.442695
      %v414 = vpow.pop %v413
      %v415 = vmul.f32 %v394, 1.442695
      %v416 = vpow.pop %v415
      %v417 = vmul.f32 %v395, 1.442695
      %v418 = vpow.pop %v417
      %v419 = vmul.f32 %v396, 1.442695
      %v420 = vpow.pop %v419
      %v421 = vmul.f32 %v397, 1.442695
      %v422 = vpow.pop %v421
      %v423 = vmul.f32 %v398, 1.442695
      %v424 = vpow.pop %v423
      %v425 = vmul.f32 %v399, 1.442695
      %v426 = vpow.pop %v425
      %v427 = vmul.f32 %v400, 1.442695
      %v428 = vpow.pop %v427
      %v429 = vmul.f32 %v401, 1.442695
      %v430 = vpow.pop %v429
      %v431 = vmul.f32 %v402, 1.442695
      %v432 = vpow.pop %v431
      %v433 = vmul.f32 %v403, 1.442695
      %v434 = vpow.pop %v433
      %v435 = vmul.f32 %v404, 1.442695
      %v436 = vpow.pop %v435
      %437 = vadd.xlane.f32.xlu0 %v406
      %v438 = vpop.xlane.xlu0 %437
      %439 = vadd.xlane.f32.xlu0 %v408
      %v440 = vpop.xlane.xlu0 %439
      %441 = vadd.xlane.f32.xlu0 %v410
      %v442 = vpop.xlane.xlu0 %441
      %443 = vadd.xlane.f32.xlu0 %v412
      %v444 = vpop.xlane.xlu0 %443
      %445 = vadd.xlane.f32.xlu0 %v414
      %v446 = vpop.xlane.xlu0 %445
      %447 = vadd.xlane.f32.xlu0 %v416
      %v448 = vpop.xlane.xlu0 %447
      %449 = vadd.xlane.f32.xlu0 %v418
      %v450 = vpop.xlane.xlu0 %449
      %451 = vadd.xlane.f32.xlu0 %v420
      %v452 = vpop.xlane.xlu0 %451
      %453 = vadd.xlane.f32.xlu0 %v422
      %v454 = vpop.xlane.xlu0 %453
      %455 = vadd.xlane.f32.xlu0 %v424
      %v456 = vpop.xlane.xlu0 %455
      %457 = vadd.xlane.f32.xlu0 %v426
      %v458 = vpop.xlane.xlu0 %457
      %459 = vadd.xlane.f32.xlu0 %v428
      %v460 = vpop.xlane.xlu0 %459
      %461 = vadd.xlane.f32.xlu0 %v430
      %v462 = vpop.xlane.xlu0 %461
      %463 = vadd.xlane.f32.xlu0 %v432
      %v464 = vpop.xlane.xlu0 %463
      %465 = vadd.xlane.f32.xlu0 %v434
      %v466 = vpop.xlane.xlu0 %465
      %467 = vadd.xlane.f32.xlu0 %v436
      %v468 = vpop.xlane.xlu0 %467
      %v469 = vrcp.pop %v438
      %v470 = vrcp.pop %v440
      %v471 = vrcp.pop %v442
      %v472 = vrcp.pop %v444
      %v473 = vrcp.pop %v446
      %v474 = vrcp.pop %v448
      %v475 = vrcp.pop %v450
      %v476 = vrcp.pop %v452
      %v477 = vrcp.pop %v454
      %v478 = vrcp.pop %v456
      %v479 = vrcp.pop %v458
      %v480 = vrcp.pop %v460
      %v481 = vrcp.pop %v462
      %v482 = vrcp.pop %v464
      %v483 = vrcp.pop %v466
      %v484 = vrcp.pop %v468
      %v485 = vmul.f32 %v406, %v469
      %v486 = vmul.f32 %v408, %v470
      %v487 = vmul.f32 %v410, %v471
      %v488 = vmul.f32 %v412, %v472
      %v489 = vmul.f32 %v414, %v473
      %v490 = vmul.f32 %v416, %v474
      %v491 = vmul.f32 %v418, %v475
      %v492 = vmul.f32 %v420, %v476
      %v493 = vmul.f32 %v422, %v477
      %v494 = vmul.f32 %v424, %v478
      %v495 = vmul.f32 %v426, %v479
      %v496 = vmul.f32 %v428, %v480
      %v497 = vmul.f32 %v430, %v481
      %v498 = vmul.f32 %v432, %v482
      %v499 = vmul.f32 %v434, %v483
      %v500 = vmul.f32 %v436, %v484
      %v501 = vpack.c.bf16 %v486, %v485
      %v502 = vpack.c.bf16 %v488, %v487
      %v503 = vpack.c.bf16 %v490, %v489
      %v504 = vpack.c.bf16 %v492, %v491
      %v505 = vpack.c.bf16 %v494, %v493
      %v506 = vpack.c.bf16 %v496, %v495
      %v507 = vpack.c.bf16 %v498, %v497
      %v508 = vpack.c.bf16 %v500, %v499
      %509 = vrot.lane.b32.xlu0 %v169, 64
      %v510 = vpop.permute.xlu0 %509
      %511 = vrot.lane.b32.xlu0 %v170, 64
      %v512 = vpop.permute.xlu0 %511
      %513 = vrot.lane.b32.xlu0 %v171, 64
      %v514 = vpop.permute.xlu0 %513
      %515 = vrot.lane.b32.xlu0 %v172, 64
      %v516 = vpop.permute.xlu0 %515
      %517 = vrot.lane.b32.xlu0 %v173, 64
      %v518 = vpop.permute.xlu0 %517
      %519 = vrot.lane.b32.xlu0 %v174, 64
      %v520 = vpop.permute.xlu0 %519
      %521 = vrot.lane.b32.xlu0 %v175, 64
      %v522 = vpop.permute.xlu0 %521
      %523 = vrot.lane.b32.xlu0 %v176, 64
      %v524 = vpop.permute.xlu0 %523
      %533 = vmatprep.subr.bf16.mxu0 0
      %534 = vmatpush1.bf16.msra.mxu0 %v510
      %535 = vmatprep.subr.bf16.mxu0 0
      %536 = vmatpush1.bf16.msra.mxu0 %v512
      %537 = vmatprep.subr.bf16.mxu0 0
      %538 = vmatpush1.bf16.msra.mxu0 %v514
      %539 = vmatprep.subr.bf16.mxu0 0
      %540 = vmatpush1.bf16.msra.mxu0 %v516
      %541 = vmatprep.subr.bf16.mxu0 0
      %542 = vmatpush1.bf16.msra.mxu0 %v518
      %543 = vmatprep.subr.bf16.mxu0 0
      %544 = vmatpush1.bf16.msra.mxu0 %v520
      %545 = vmatprep.subr.bf16.mxu0 0
      %546 = vmatpush1.bf16.msra.mxu0 %v522
      %547 = vmatprep.subr.bf16.mxu0 0
      %548 = vmatpush1.bf16.msra.mxu0 %v524
      %549 = vmatprep.subr.bf16.mxu0 0
      %550 = vmatpush1.bf16.msra.mxu0 0
      %551 = vmatprep.subr.bf16.mxu0 0
      %552 = vmatpush1.bf16.msra.mxu0 0
      %553 = vmatprep.subr.bf16.mxu0 0
      %554 = vmatpush1.bf16.msra.mxu0 0
      %555 = vmatprep.subr.bf16.mxu0 0
      %556 = vmatpush1.bf16.msra.mxu0 0
      %557 = vmatprep.subr.bf16.mxu0 0
      %558 = vmatpush1.bf16.msra.mxu0 0
      %559 = vmatprep.subr.bf16.mxu0 0
      %560 = vmatpush1.bf16.msra.mxu0 0
      %561 = vmatprep.subr.bf16.mxu0 0
      %562 = vmatpush1.bf16.msra.mxu0 0
      %563 = vmatprep.subr.bf16.mxu0 0
      %564 = vmatpush1.bf16.msra.mxu0 0
      %565 = vmatprep.mubr.bf16.mxu0 0
      %566 = vmatmul.mubr.bf16.gmra.mrb[0].mxu0 %v501
      %v567 = vpop.f32.mrb[0].mxu0
      %v568 = vadd.f32 0.0, %v567
      %v569 = vpop.f32.mrb[0].mxu0
      %v570 = vpop.f32.mrb[0].mxu0
      %v571 = vadd.f32 0.0, %v570
      %v572 = vpop.f32.mrb[0].mxu0
      %573 = vmatprep.mubr.bf16.mxu0 0
      %574 = vmatmul.mubr.bf16.gmra.mrb[0].mxu0 %v502
      %v575 = vpop.f32.mrb[0].mxu0
      %v576 = vadd.f32 0.0, %v575
      %v577 = vpop.f32.mrb[0].mxu0
      %v578 = vpop.f32.mrb[0].mxu0
      %v579 = vadd.f32 0.0, %v578
      %v580 = vpop.f32.mrb[0].mxu0
      %581 = vmatprep.mubr.bf16.mxu0 0
      %582 = vmatmul.mubr.bf16.gmra.mrb[0].mxu0 %v503
      %v583 = vpop.f32.mrb[0].mxu0
      %v584 = vadd.f32 0.0, %v583
      %v585 = vpop.f32.mrb[0].mxu0
      %v586 = vpop.f32.mrb[0].mxu0
      %v587 = vadd.f32 0.0, %v586
      %v588 = vpop.f32.mrb[0].mxu0
      %589 = vmatprep.mubr.bf16.mxu0 0
      %590 = vmatmul.mubr.bf16.gmra.mrb[0].mxu0 %v504
      %v591 = vpop.f32.mrb[0].mxu0
      %v592 = vadd.f32 0.0, %v591
      %v593 = vpop.f32.mrb[0].mxu0
      %v594 = vpop.f32.mrb[0].mxu0
      %v595 = vadd.f32 0.0, %v594
      %v596 = vpop.f32.mrb[0].mxu0
      %597 = vmatprep.mubr.bf16.mxu0 0
      %598 = vmatmul.mubr.bf16.gmra.mrb[0].mxu0 %v505
      %v599 = vpop.f32.mrb[0].mxu0
      %v600 = vadd.f32 0.0, %v599
      %v601 = vpop.f32.mrb[0].mxu0
      %v602 = vpop.f32.mrb[0].mxu0
      %v603 = vadd.f32 0.0, %v602
      %v604 = vpop.f32.mrb[0].mxu0
      %605 = vmatprep.mubr.bf16.mxu0 0
      %606 = vmatmul.mubr.bf16.gmra.mrb[0].mxu0 %v506
      %v607 = vpop.f32.mrb[0].mxu0
      %v608 = vadd.f32 0.0, %v607
      %v609 = vpop.f32.mrb[0].mxu0
      %v610 = vpop.f32.mrb[0].mxu0
      %v611 = vadd.f32 0.0, %v610
      %v612 = vpop.f32.mrb[0].mxu0
      %613 = vmatprep.mubr.bf16.mxu0 0
      %614 = vmatmul.mubr.bf16.gmra.mrb[0].mxu0 %v507
      %v615 = vpop.f32.mrb[0].mxu0
      %v616 = vadd.f32 0.0, %v615
      %v617 = vpop.f32.mrb[0].mxu0
      %v618 = vpop.f32.mrb[0].mxu0
      %v619 = vadd.f32 0.0, %v618
      %v620 = vpop.f32.mrb[0].mxu0
      %621 = vmatprep.mubr.bf16.mxu0 0
      %622 = vmatmul.mubr.bf16.gmra.mrb[0].mxu0 %v508
      %v623 = vpop.f32.mrb[0].mxu0
      %v624 = vadd.f32 0.0, %v623
      %v625 = vpop.f32.mrb[0].mxu0
      %v626 = vpop.f32.mrb[0].mxu0
      %v627 = vadd.f32 0.0, %v626
      %v628 = vpop.f32.mrb[0].mxu0
      %629 = vdwg.mxu0
      %v630 = vpack.c.bf16 %v571, %v568
      %v631 = vpack.c.bf16 %v579, %v576
      %v632 = vpack.c.bf16 %v587, %v584
      %v633 = vpack.c.bf16 %v595, %v592
      %v634 = vpack.c.bf16 %v603, %v600
      %v635 = vpack.c.bf16 %v611, %v608
      %v636 = vpack.c.bf16 %v619, %v616
      %v637 = vpack.c.bf16 %v627, %v624
      %638 = vrot.lane.b32.xlu0 %v169, 120
      %v639 = vpop.permute.xlu0 %638
      %640 = vrot.lane.b32.xlu0 %v170, 120
      %v641 = vpop.permute.xlu0 %640
      %642 = vrot.lane.b32.xlu0 %v171, 120
      %v643 = vpop.permute.xlu0 %642
      %644 = vrot.lane.b32.xlu0 %v172, 120
      %v645 = vpop.permute.xlu0 %644
      %646 = vrot.lane.b32.xlu0 %v173, 120
      %v647 = vpop.permute.xlu0 %646
      %648 = vrot.lane.b32.xlu0 %v174, 120
      %v649 = vpop.permute.xlu0 %648
      %650 = vrot.lane.b32.xlu0 %v175, 120
      %v651 = vpop.permute.xlu0 %650
      %652 = vrot.lane.b32.xlu0 %v176, 120
      %v653 = vpop.permute.xlu0 %652
      %654 = vrot.lane.b32.xlu0 %v169, 88
      %v655 = vpop.permute.xlu0 %654
      %656 = vrot.lane.b32.xlu0 %v170, 88
      %v657 = vpop.permute.xlu0 %656
      %658 = vrot.lane.b32.xlu0 %v171, 88
      %v659 = vpop.permute.xlu0 %658
      %660 = vrot.lane.b32.xlu0 %v172, 88
      %v661 = vpop.permute.xlu0 %660
      %662 = vrot.lane.b32.xlu0 %v173, 88
      %v663 = vpop.permute.xlu0 %662
      %664 = vrot.lane.b32.xlu0 %v174, 88
      %v665 = vpop.permute.xlu0 %664
      %666 = vrot.lane.b32.xlu0 %v175, 88
      %v667 = vpop.permute.xlu0 %666
      %668 = vrot.lane.b32.xlu0 %v176, 88
      %v669 = vpop.permute.xlu0 %668
      %v671 = vsel %vm193, %v639, 0
      %v674 = vsel %vm193, %v641, 0
      %v677 = vsel %vm193, %v643, 0
      %v680 = vsel %vm193, %v645, 0
      %v683 = vsel %vm193, %v647, 0
      %v686 = vsel %vm193, %v649, 0
      %v689 = vsel %vm193, %v651, 0
      %v692 = vsel %vm193, %v653, 0
      %v695 = vsel %vm193, %v655, 0
      %v698 = vsel %vm193, %v657, 0
      %v701 = vsel %vm193, %v659, 0
      %v704 = vsel %vm193, %v661, 0
      %v707 = vsel %vm193, %v663, 0
      %v710 = vsel %vm193, %v665, 0
      %v713 = vsel %vm193, %v667, 0
      %v716 = vsel %vm193, %v669, 0
      %718 = vmatprep.subr.bf16.mxu0 0
      %719 = vmatpush1.bf16.xpose.msra.mxu0 %v695
      %720 = vmatprep.subr.bf16.mxu0 0
      %721 = vmatpush1.bf16.xpose.msra.mxu0 %v698
      %722 = vmatprep.subr.bf16.mxu0 0
      %723 = vmatpush1.bf16.xpose.msra.mxu0 %v701
      %724 = vmatprep.subr.bf16.mxu0 0
      %725 = vmatpush1.bf16.xpose.msra.mxu0 %v704
      %726 = vmatprep.subr.bf16.mxu0 0
      %727 = vmatpush1.bf16.xpose.msra.mxu0 %v707
      %728 = vmatprep.subr.bf16.mxu0 0
      %729 = vmatpush1.bf16.xpose.msra.mxu0 %v710
      %730 = vmatprep.subr.bf16.mxu0 0
      %731 = vmatpush1.bf16.xpose.msra.mxu0 %v713
      %732 = vmatprep.subr.bf16.mxu0 0
      %733 = vmatpush1.bf16.xpose.msra.mxu0 %v716
      %734 = vmatprep.subr.bf16.mxu0 0
      %735 = vmatpush1.bf16.xpose.msra.mxu0 0
      %736 = vmatprep.subr.bf16.mxu0 0
      %737 = vmatpush1.bf16.xpose.msra.mxu0 0
      %738 = vmatprep.subr.bf16.mxu0 0
      %739 = vmatpush1.bf16.xpose.msra.mxu0 0
      %740 = vmatprep.subr.bf16.mxu0 0
      %741 = vmatpush1.bf16.xpose.msra.mxu0 0
      %742 = vmatprep.subr.bf16.mxu0 0
      %743 = vmatpush1.bf16.xpose.msra.mxu0 0
      %744 = vmatprep.subr.bf16.mxu0 0
      %745 = vmatpush1.bf16.xpose.msra.mxu0 0
      %746 = vmatprep.subr.bf16.mxu0 0
      %747 = vmatpush1.bf16.xpose.msra.mxu0 0
      %748 = vmatprep.subr.bf16.mxu0 0
      %749 = vmatpush1.bf16.xpose.msra.mxu0 0
      %750 = vmatprep.mubr.bf16.mxu0 0
      %751 = vmatmul.mubr.bf16.gmra.mrb[0].mxu0 %v671
      %v752 = vpop.f32.mrb[0].mxu0
      %v753 = vadd.f32 0.0, %v752
      %v754 = vpop.f32.mrb[0].mxu0
      %v755 = vpop.f32.mrb[0].mxu0
      %v756 = vadd.f32 0.0, %v755
      %v757 = vpop.f32.mrb[0].mxu0
      %758 = vmatprep.mubr.bf16.mxu0 0
      %759 = vmatmul.mubr.bf16.gmra.mrb[0].mxu0 %v674
      %v760 = vpop.f32.mrb[0].mxu0
      %v761 = vadd.f32 0.0, %v760
      %v762 = vpop.f32.mrb[0].mxu0
      %v763 = vpop.f32.mrb[0].mxu0
      %v764 = vadd.f32 0.0, %v763
      %v765 = vpop.f32.mrb[0].mxu0
      %766 = vmatprep.mubr.bf16.mxu0 0
      %767 = vmatmul.mubr.bf16.gmra.mrb[0].mxu0 %v677
      %v768 = vpop.f32.mrb[0].mxu0
      %v769 = vadd.f32 0.0, %v768
      %v770 = vpop.f32.mrb[0].mxu0
      %v771 = vpop.f32.mrb[0].mxu0
      %v772 = vadd.f32 0.0, %v771
      %v773 = vpop.f32.mrb[0].mxu0
      %774 = vmatprep.mubr.bf16.mxu0 0
      %775 = vmatmul.mubr.bf16.gmra.mrb[0].mxu0 %v680
      %v776 = vpop.f32.mrb[0].mxu0
      %v777 = vadd.f32 0.0, %v776
      %v778 = vpop.f32.mrb[0].mxu0
      %v779 = vpop.f32.mrb[0].mxu0
      %v780 = vadd.f32 0.0, %v779
      %v781 = vpop.f32.mrb[0].mxu0
      %782 = vmatprep.mubr.bf16.mxu0 0
      %783 = vmatmul.mubr.bf16.gmra.mrb[0].mxu0 %v683
      %v784 = vpop.f32.mrb[0].mxu0
      %v785 = vadd.f32 0.0, %v784
      %v786 = vpop.f32.mrb[0].mxu0
      %v787 = vpop.f32.mrb[0].mxu0
      %v788 = vadd.f32 0.0, %v787
      %v789 = vpop.f32.mrb[0].mxu0
      %790 = vmatprep.mubr.bf16.mxu0 0
      %791 = vmatmul.mubr.bf16.gmra.mrb[0].mxu0 %v686
      %v792 = vpop.f32.mrb[0].mxu0
      %v793 = vadd.f32 0.0, %v792
      %v794 = vpop.f32.mrb[0].mxu0
      %v795 = vpop.f32.mrb[0].mxu0
      %v796 = vadd.f32 0.0, %v795
      %v797 = vpop.f32.mrb[0].mxu0
      %798 = vmatprep.mubr.bf16.mxu0 0
      %799 = vmatmul.mubr.bf16.gmra.mrb[0].mxu0 %v689
      %v800 = vpop.f32.mrb[0].mxu0
      %v801 = vadd.f32 0.0, %v800
      %v802 = vpop.f32.mrb[0].mxu0
      %v803 = vpop.f32.mrb[0].mxu0
      %v804 = vadd.f32 0.0, %v803
      %v805 = vpop.f32.mrb[0].mxu0
      %806 = vmatprep.mubr.bf16.mxu0 0
      %807 = vmatmul.mubr.bf16.gmra.mrb[0].mxu0 %v692
      %v808 = vpop.f32.mrb[0].mxu0
      %v809 = vadd.f32 0.0, %v808
      %v810 = vpop.f32.mrb[0].mxu0
      %v811 = vpop.f32.mrb[0].mxu0
      %v812 = vadd.f32 0.0, %v811
      %v813 = vpop.f32.mrb[0].mxu0
      %814 = vdwg.mxu0
      %v815 = vsel %vm340, %v753, -1e+30
      %v816 = vsel %vm340, %v756, -1e+30
      %v817 = vsel %vm340, %v761, -1e+30
      %v818 = vsel %vm340, %v764, -1e+30
      %v819 = vsel %vm340, %v769, -1e+30
      %v820 = vsel %vm340, %v772, -1e+30
      %v821 = vsel %vm340, %v777, -1e+30
      %v822 = vsel %vm340, %v780, -1e+30
      %v823 = vsel %vm340, %v785, -1e+30
      %v824 = vsel %vm340, %v788, -1e+30
      %v825 = vsel %vm340, %v793, -1e+30
      %v826 = vsel %vm340, %v796, -1e+30
      %v827 = vsel %vm340, %v801, -1e+30
      %v828 = vsel %vm340, %v804, -1e+30
      %v829 = vsel %vm340, %v809, -1e+30
      %v830 = vsel %vm340, %v812, -1e+30
      %831 = vmax.xlane.f32.xlu0 %v815
      %v832 = vpop.xlane.xlu0 %831
      %833 = vmax.xlane.f32.xlu0 %v816
      %v834 = vpop.xlane.xlu0 %833
      %835 = vmax.xlane.f32.xlu0 %v817
      %v836 = vpop.xlane.xlu0 %835
      %837 = vmax.xlane.f32.xlu0 %v818
      %v838 = vpop.xlane.xlu0 %837
      %839 = vmax.xlane.f32.xlu0 %v819
      %v840 = vpop.xlane.xlu0 %839
      %841 = vmax.xlane.f32.xlu0 %v820
      %v842 = vpop.xlane.xlu0 %841
      %843 = vmax.xlane.f32.xlu0 %v821
      %v844 = vpop.xlane.xlu0 %843
      %845 = vmax.xlane.f32.xlu0 %v822
      %v846 = vpop.xlane.xlu0 %845
      %847 = vmax.xlane.f32.xlu0 %v823
      %v848 = vpop.xlane.xlu0 %847
      %849 = vmax.xlane.f32.xlu0 %v824
      %v850 = vpop.xlane.xlu0 %849
      %851 = vmax.xlane.f32.xlu0 %v825
      %v852 = vpop.xlane.xlu0 %851
      %853 = vmax.xlane.f32.xlu0 %v826
      %v854 = vpop.xlane.xlu0 %853
      %855 = vmax.xlane.f32.xlu0 %v827
      %v856 = vpop.xlane.xlu0 %855
      %857 = vmax.xlane.f32.xlu0 %v828
      %v858 = vpop.xlane.xlu0 %857
      %859 = vmax.xlane.f32.xlu0 %v829
      %v860 = vpop.xlane.xlu0 %859
      %861 = vmax.xlane.f32.xlu0 %v830
      %v862 = vpop.xlane.xlu0 %861
      %v863 = vsub.f32 %v815, %v832
      %v864 = vsub.f32 %v816, %v834
      %v865 = vsub.f32 %v817, %v836
      %v866 = vsub.f32 %v818, %v838
      %v867 = vsub.f32 %v819, %v840
      %v868 = vsub.f32 %v820, %v842
      %v869 = vsub.f32 %v821, %v844
      %v870 = vsub.f32 %v822, %v846
      %v871 = vsub.f32 %v823, %v848
      %v872 = vsub.f32 %v824, %v850
      %v873 = vsub.f32 %v825, %v852
      %v874 = vsub.f32 %v826, %v854
      %v875 = vsub.f32 %v827, %v856
      %v876 = vsub.f32 %v828, %v858
      %v877 = vsub.f32 %v829, %v860
      %v878 = vsub.f32 %v830, %v862
      %v879 = vmul.f32 %v863, 1.442695
      %v880 = vpow.pop %v879
      %v881 = vmul.f32 %v864, 1.442695
      %v882 = vpow.pop %v881
      %v883 = vmul.f32 %v865, 1.442695
      %v884 = vpow.pop %v883
      %v885 = vmul.f32 %v866, 1.442695
      %v886 = vpow.pop %v885
      %v887 = vmul.f32 %v867, 1.442695
      %v888 = vpow.pop %v887
      %v889 = vmul.f32 %v868, 1.442695
      %v890 = vpow.pop %v889
      %v891 = vmul.f32 %v869, 1.442695
      %v892 = vpow.pop %v891
      %v893 = vmul.f32 %v870, 1.442695
      %v894 = vpow.pop %v893
      %v895 = vmul.f32 %v871, 1.442695
      %v896 = vpow.pop %v895
      %v897 = vmul.f32 %v872, 1.442695
      %v898 = vpow.pop %v897
      %v899 = vmul.f32 %v873, 1.442695
      %v900 = vpow.pop %v899
      %v901 = vmul.f32 %v874, 1.442695
      %v902 = vpow.pop %v901
      %v903 = vmul.f32 %v875, 1.442695
      %v904 = vpow.pop %v903
      %v905 = vmul.f32 %v876, 1.442695
      %v906 = vpow.pop %v905
      %v907 = vmul.f32 %v877, 1.442695
      %v908 = vpow.pop %v907
      %v909 = vmul.f32 %v878, 1.442695
      %v910 = vpow.pop %v909
      %911 = vadd.xlane.f32.xlu0 %v880
      %v912 = vpop.xlane.xlu0 %911
      %913 = vadd.xlane.f32.xlu0 %v882
      %v914 = vpop.xlane.xlu0 %913
      %915 = vadd.xlane.f32.xlu0 %v884
      %v916 = vpop.xlane.xlu0 %915
      %917 = vadd.xlane.f32.xlu0 %v886
      %v918 = vpop.xlane.xlu0 %917
      %919 = vadd.xlane.f32.xlu0 %v888
      %v920 = vpop.xlane.xlu0 %919
      %921 = vadd.xlane.f32.xlu0 %v890
      %v922 = vpop.xlane.xlu0 %921
      %923 = vadd.xlane.f32.xlu0 %v892
      %v924 = vpop.xlane.xlu0 %923
      %925 = vadd.xlane.f32.xlu0 %v894
      %v926 = vpop.xlane.xlu0 %925
      %927 = vadd.xlane.f32.xlu0 %v896
      %v928 = vpop.xlane.xlu0 %927
      %929 = vadd.xlane.f32.xlu0 %v898
      %v930 = vpop.xlane.xlu0 %929
      %931 = vadd.xlane.f32.xlu0 %v900
      %v932 = vpop.xlane.xlu0 %931
      %933 = vadd.xlane.f32.xlu0 %v902
      %v934 = vpop.xlane.xlu0 %933
      %935 = vadd.xlane.f32.xlu0 %v904
      %v936 = vpop.xlane.xlu0 %935
      %937 = vadd.xlane.f32.xlu0 %v906
      %v938 = vpop.xlane.xlu0 %937
      %939 = vadd.xlane.f32.xlu0 %v908
      %v940 = vpop.xlane.xlu0 %939
      %941 = vadd.xlane.f32.xlu0 %v910
      %v942 = vpop.xlane.xlu0 %941
      %v943 = vrcp.pop %v912
      %v944 = vrcp.pop %v914
      %v945 = vrcp.pop %v916
      %v946 = vrcp.pop %v918
      %v947 = vrcp.pop %v920
      %v948 = vrcp.pop %v922
      %v949 = vrcp.pop %v924
      %v950 = vrcp.pop %v926
      %v951 = vrcp.pop %v928
      %v952 = vrcp.pop %v930
      %v953 = vrcp.pop %v932
      %v954 = vrcp.pop %v934
      %v955 = vrcp.pop %v936
      %v956 = vrcp.pop %v938
      %v957 = vrcp.pop %v940
      %v958 = vrcp.pop %v942
      %v959 = vmul.f32 %v880, %v943
      %v960 = vmul.f32 %v882, %v944
      %v961 = vmul.f32 %v884, %v945
      %v962 = vmul.f32 %v886, %v946
      %v963 = vmul.f32 %v888, %v947
      %v964 = vmul.f32 %v890, %v948
      %v965 = vmul.f32 %v892, %v949
      %v966 = vmul.f32 %v894, %v950
      %v967 = vmul.f32 %v896, %v951
      %v968 = vmul.f32 %v898, %v952
      %v969 = vmul.f32 %v900, %v953
      %v970 = vmul.f32 %v902, %v954
      %v971 = vmul.f32 %v904, %v955
      %v972 = vmul.f32 %v906, %v956
      %v973 = vmul.f32 %v908, %v957
      %v974 = vmul.f32 %v910, %v958
      %v975 = vpack.c.bf16 %v960, %v959
      %v976 = vpack.c.bf16 %v962, %v961
      %v977 = vpack.c.bf16 %v964, %v963
      %v978 = vpack.c.bf16 %v966, %v965
      %v979 = vpack.c.bf16 %v968, %v967
      %v980 = vpack.c.bf16 %v970, %v969
      %v981 = vpack.c.bf16 %v972, %v971
      %v982 = vpack.c.bf16 %v974, %v973
      %983 = vrot.lane.b32.xlu0 %v169, 56
      %v984 = vpop.permute.xlu0 %983
      %985 = vrot.lane.b32.xlu0 %v170, 56
      %v986 = vpop.permute.xlu0 %985
      %987 = vrot.lane.b32.xlu0 %v171, 56
      %v988 = vpop.permute.xlu0 %987
      %989 = vrot.lane.b32.xlu0 %v172, 56
      %v990 = vpop.permute.xlu0 %989
      %991 = vrot.lane.b32.xlu0 %v173, 56
      %v992 = vpop.permute.xlu0 %991
      %993 = vrot.lane.b32.xlu0 %v174, 56
      %v994 = vpop.permute.xlu0 %993
      %995 = vrot.lane.b32.xlu0 %v175, 56
      %v996 = vpop.permute.xlu0 %995
      %997 = vrot.lane.b32.xlu0 %v176, 56
      %v998 = vpop.permute.xlu0 %997
      %1007 = vmatprep.subr.bf16.mxu0 0
      %1008 = vmatpush1.bf16.msra.mxu0 %v984
      %1009 = vmatprep.subr.bf16.mxu0 0
      %1010 = vmatpush1.bf16.msra.mxu0 %v986
      %1011 = vmatprep.subr.bf16.mxu0 0
      %1012 = vmatpush1.bf16.msra.mxu0 %v988
      %1013 = vmatprep.subr.bf16.mxu0 0
      %1014 = vmatpush1.bf16.msra.mxu0 %v990
      %1015 = vmatprep.subr.bf16.mxu0 0
      %1016 = vmatpush1.bf16.msra.mxu0 %v992
      %1017 = vmatprep.subr.bf16.mxu0 0
      %1018 = vmatpush1.bf16.msra.mxu0 %v994
      %1019 = vmatprep.subr.bf16.mxu0 0
      %1020 = vmatpush1.bf16.msra.mxu0 %v996
      %1021 = vmatprep.subr.bf16.mxu0 0
      %1022 = vmatpush1.bf16.msra.mxu0 %v998
      %1023 = vmatprep.subr.bf16.mxu0 0
      %1024 = vmatpush1.bf16.msra.mxu0 0
      %1025 = vmatprep.subr.bf16.mxu0 0
      %1026 = vmatpush1.bf16.msra.mxu0 0
      %1027 = vmatprep.subr.bf16.mxu0 0
      %1028 = vmatpush1.bf16.msra.mxu0 0
      %1029 = vmatprep.subr.bf16.mxu0 0
      %1030 = vmatpush1.bf16.msra.mxu0 0
      %1031 = vmatprep.subr.bf16.mxu0 0
      %1032 = vmatpush1.bf16.msra.mxu0 0
      %1033 = vmatprep.subr.bf16.mxu0 0
      %1034 = vmatpush1.bf16.msra.mxu0 0
      %1035 = vmatprep.subr.bf16.mxu0 0
      %1036 = vmatpush1.bf16.msra.mxu0 0
      %1037 = vmatprep.subr.bf16.mxu0 0
      %1038 = vmatpush1.bf16.msra.mxu0 0
      %1039 = vmatprep.mubr.bf16.mxu0 0
      %1040 = vmatmul.mubr.bf16.gmra.mrb[0].mxu0 %v975
      %v1041 = vpop.f32.mrb[0].mxu0
      %v1042 = vadd.f32 0.0, %v1041
      %v1043 = vpop.f32.mrb[0].mxu0
      %v1044 = vpop.f32.mrb[0].mxu0
      %v1045 = vadd.f32 0.0, %v1044
      %v1046 = vpop.f32.mrb[0].mxu0
      %1047 = vmatprep.mubr.bf16.mxu0 0
      %1048 = vmatmul.mubr.bf16.gmra.mrb[0].mxu0 %v976
      %v1049 = vpop.f32.mrb[0].mxu0
      %v1050 = vadd.f32 0.0, %v1049
      %v1051 = vpop.f32.mrb[0].mxu0
      %v1052 = vpop.f32.mrb[0].mxu0
      %v1053 = vadd.f32 0.0, %v1052
      %v1054 = vpop.f32.mrb[0].mxu0
      %1055 = vmatprep.mubr.bf16.mxu0 0
      %1056 = vmatmul.mubr.bf16.gmra.mrb[0].mxu0 %v977
      %v1057 = vpop.f32.mrb[0].mxu0
      %v1058 = vadd.f32 0.0, %v1057
      %v1059 = vpop.f32.mrb[0].mxu0
      %v1060 = vpop.f32.mrb[0].mxu0
      %v1061 = vadd.f32 0.0, %v1060
      %v1062 = vpop.f32.mrb[0].mxu0
      %1063 = vmatprep.mubr.bf16.mxu0 0
      %1064 = vmatmul.mubr.bf16.gmra.mrb[0].mxu0 %v978
      %v1065 = vpop.f32.mrb[0].mxu0
      %v1066 = vadd.f32 0.0, %v1065
      %v1067 = vpop.f32.mrb[0].mxu0
      %v1068 = vpop.f32.mrb[0].mxu0
      %v1069 = vadd.f32 0.0, %v1068
      %v1070 = vpop.f32.mrb[0].mxu0
      %1071 = vmatprep.mubr.bf16.mxu0 0
      %1072 = vmatmul.mubr.bf16.gmra.mrb[0].mxu0 %v979
      %v1073 = vpop.f32.mrb[0].mxu0
      %v1074 = vadd.f32 0.0, %v1073
      %v1075 = vpop.f32.mrb[0].mxu0
      %v1076 = vpop.f32.mrb[0].mxu0
      %v1077 = vadd.f32 0.0, %v1076
      %v1078 = vpop.f32.mrb[0].mxu0
      %1079 = vmatprep.mubr.bf16.mxu0 0
      %1080 = vmatmul.mubr.bf16.gmra.mrb[0].mxu0 %v980
      %v1081 = vpop.f32.mrb[0].mxu0
      %v1082 = vadd.f32 0.0, %v1081
      %v1083 = vpop.f32.mrb[0].mxu0
      %v1084 = vpop.f32.mrb[0].mxu0
      %v1085 = vadd.f32 0.0, %v1084
      %v1086 = vpop.f32.mrb[0].mxu0
      %1087 = vmatprep.mubr.bf16.mxu0 0
      %1088 = vmatmul.mubr.bf16.gmra.mrb[0].mxu0 %v981
      %v1089 = vpop.f32.mrb[0].mxu0
      %v1090 = vadd.f32 0.0, %v1089
      %v1091 = vpop.f32.mrb[0].mxu0
      %v1092 = vpop.f32.mrb[0].mxu0
      %v1093 = vadd.f32 0.0, %v1092
      %v1094 = vpop.f32.mrb[0].mxu0
      %1095 = vmatprep.mubr.bf16.mxu0 0
      %1096 = vmatmul.mubr.bf16.gmra.mrb[0].mxu0 %v982
      %v1097 = vpop.f32.mrb[0].mxu0
      %v1098 = vadd.f32 0.0, %v1097
      %v1099 = vpop.f32.mrb[0].mxu0
      %v1100 = vpop.f32.mrb[0].mxu0
      %v1101 = vadd.f32 0.0, %v1100
      %v1102 = vpop.f32.mrb[0].mxu0
      %1103 = vdwg.mxu0
      %v1104 = vpack.c.bf16 %v1045, %v1042
      %v1105 = vpack.c.bf16 %v1053, %v1050
      %v1106 = vpack.c.bf16 %v1061, %v1058
      %v1107 = vpack.c.bf16 %v1069, %v1066
      %v1108 = vpack.c.bf16 %v1077, %v1074
      %v1109 = vpack.c.bf16 %v1085, %v1082
      %v1110 = vpack.c.bf16 %v1093, %v1090
      %v1111 = vpack.c.bf16 %v1101, %v1098
      %1112 = vrot.lane.b32.xlu0 %v169, 112
      %v1113 = vpop.permute.xlu0 %1112
      %1114 = vrot.lane.b32.xlu0 %v170, 112
      %v1115 = vpop.permute.xlu0 %1114
      %1116 = vrot.lane.b32.xlu0 %v171, 112
      %v1117 = vpop.permute.xlu0 %1116
      %1118 = vrot.lane.b32.xlu0 %v172, 112
      %v1119 = vpop.permute.xlu0 %1118
      %1120 = vrot.lane.b32.xlu0 %v173, 112
      %v1121 = vpop.permute.xlu0 %1120
      %1122 = vrot.lane.b32.xlu0 %v174, 112
      %v1123 = vpop.permute.xlu0 %1122
      %1124 = vrot.lane.b32.xlu0 %v175, 112
      %v1125 = vpop.permute.xlu0 %1124
      %1126 = vrot.lane.b32.xlu0 %v176, 112
      %v1127 = vpop.permute.xlu0 %1126
      %1128 = vrot.lane.b32.xlu0 %v169, 80
      %v1129 = vpop.permute.xlu0 %1128
      %1130 = vrot.lane.b32.xlu0 %v170, 80
      %v1131 = vpop.permute.xlu0 %1130
      %1132 = vrot.lane.b32.xlu0 %v171, 80
      %v1133 = vpop.permute.xlu0 %1132
      %1134 = vrot.lane.b32.xlu0 %v172, 80
      %v1135 = vpop.permute.xlu0 %1134
      %1136 = vrot.lane.b32.xlu0 %v173, 80
      %v1137 = vpop.permute.xlu0 %1136
      %1138 = vrot.lane.b32.xlu0 %v174, 80
      %v1139 = vpop.permute.xlu0 %1138
      %1140 = vrot.lane.b32.xlu0 %v175, 80
      %v1141 = vpop.permute.xlu0 %1140
      %1142 = vrot.lane.b32.xlu0 %v176, 80
      %v1143 = vpop.permute.xlu0 %1142
      %v1145 = vsel %vm193, %v1113, 0
      %v1148 = vsel %vm193, %v1115, 0
      %v1151 = vsel %vm193, %v1117, 0
      %v1154 = vsel %vm193, %v1119, 0
      %v1157 = vsel %vm193, %v1121, 0
      %v1160 = vsel %vm193, %v1123, 0
      %v1163 = vsel %vm193, %v1125, 0
      %v1166 = vsel %vm193, %v1127, 0
      %v1169 = vsel %vm193, %v1129, 0
      %v1172 = vsel %vm193, %v1131, 0
      %v1175 = vsel %vm193, %v1133, 0
      %v1178 = vsel %vm193, %v1135, 0
      %v1181 = vsel %vm193, %v1137, 0
      %v1184 = vsel %vm193, %v1139, 0
      %v1187 = vsel %vm193, %v1141, 0
      %v1190 = vsel %vm193, %v1143, 0
      %1192 = vmatprep.subr.bf16.mxu0 0
      %1193 = vmatpush1.bf16.xpose.msra.mxu0 %v1169
      %1194 = vmatprep.subr.bf16.mxu0 0
      %1195 = vmatpush1.bf16.xpose.msra.mxu0 %v1172
      %1196 = vmatprep.subr.bf16.mxu0 0
      %1197 = vmatpush1.bf16.xpose.msra.mxu0 %v1175
      %1198 = vmatprep.subr.bf16.mxu0 0
      %1199 = vmatpush1.bf16.xpose.msra.mxu0 %v1178
      %1200 = vmatprep.subr.bf16.mxu0 0
      %1201 = vmatpush1.bf16.xpose.msra.mxu0 %v1181
      %1202 = vmatprep.subr.bf16.mxu0 0
      %1203 = vmatpush1.bf16.xpose.msra.mxu0 %v1184
      %1204 = vmatprep.subr.bf16.mxu0 0
      %1205 = vmatpush1.bf16.xpose.msra.mxu0 %v1187
      %1206 = vmatprep.subr.bf16.mxu0 0
      %1207 = vmatpush1.bf16.xpose.msra.mxu0 %v1190
      %1208 = vmatprep.subr.bf16.mxu0 0
      %1209 = vmatpush1.bf16.xpose.msra.mxu0 0
      %1210 = vmatprep.subr.bf16.mxu0 0
      %1211 = vmatpush1.bf16.xpose.msra.mxu0 0
      %1212 = vmatprep.subr.bf16.mxu0 0
      %1213 = vmatpush1.bf16.xpose.msra.mxu0 0
      %1214 = vmatprep.subr.bf16.mxu0 0
      %1215 = vmatpush1.bf16.xpose.msra.mxu0 0
      %1216 = vmatprep.subr.bf16.mxu0 0
      %1217 = vmatpush1.bf16.xpose.msra.mxu0 0
      %1218 = vmatprep.subr.bf16.mxu0 0
      %1219 = vmatpush1.bf16.xpose.msra.mxu0 0
      %1220 = vmatprep.subr.bf16.mxu0 0
      %1221 = vmatpush1.bf16.xpose.msra.mxu0 0
      %1222 = vmatprep.subr.bf16.mxu0 0
      %1223 = vmatpush1.bf16.xpose.msra.mxu0 0
      %1224 = vmatprep.mubr.bf16.mxu0 0
      %1225 = vmatmul.mubr.bf16.gmra.mrb[0].mxu0 %v1145
      %v1226 = vpop.f32.mrb[0].mxu0
      %v1227 = vadd.f32 0.0, %v1226
      %v1228 = vpop.f32.mrb[0].mxu0
      %v1229 = vpop.f32.mrb[0].mxu0
      %v1230 = vadd.f32 0.0, %v1229
      %v1231 = vpop.f32.mrb[0].mxu0
      %1232 = vmatprep.mubr.bf16.mxu0 0
      %1233 = vmatmul.mubr.bf16.gmra.mrb[0].mxu0 %v1148
      %v1234 = vpop.f32.mrb[0].mxu0
      %v1235 = vadd.f32 0.0, %v1234
      %v1236 = vpop.f32.mrb[0].mxu0
      %v1237 = vpop.f32.mrb[0].mxu0
      %v1238 = vadd.f32 0.0, %v1237
      %v1239 = vpop.f32.mrb[0].mxu0
      %1240 = vmatprep.mubr.bf16.mxu0 0
      %1241 = vmatmul.mubr.bf16.gmra.mrb[0].mxu0 %v1151
      %v1242 = vpop.f32.mrb[0].mxu0
      %v1243 = vadd.f32 0.0, %v1242
      %v1244 = vpop.f32.mrb[0].mxu0
      %v1245 = vpop.f32.mrb[0].mxu0
      %v1246 = vadd.f32 0.0, %v1245
      %v1247 = vpop.f32.mrb[0].mxu0
      %1248 = vmatprep.mubr.bf16.mxu0 0
      %1249 = vmatmul.mubr.bf16.gmra.mrb[0].mxu0 %v1154
      %v1250 = vpop.f32.mrb[0].mxu0
      %v1251 = vadd.f32 0.0, %v1250
      %v1252 = vpop.f32.mrb[0].mxu0
      %v1253 = vpop.f32.mrb[0].mxu0
      %v1254 = vadd.f32 0.0, %v1253
      %v1255 = vpop.f32.mrb[0].mxu0
      %1256 = vmatprep.mubr.bf16.mxu0 0
      %1257 = vmatmul.mubr.bf16.gmra.mrb[0].mxu0 %v1157
      %v1258 = vpop.f32.mrb[0].mxu0
      %v1259 = vadd.f32 0.0, %v1258
      %v1260 = vpop.f32.mrb[0].mxu0
      %v1261 = vpop.f32.mrb[0].mxu0
      %v1262 = vadd.f32 0.0, %v1261
      %v1263 = vpop.f32.mrb[0].mxu0
      %1264 = vmatprep.mubr.bf16.mxu0 0
      %1265 = vmatmul.mubr.bf16.gmra.mrb[0].mxu0 %v1160
      %v1266 = vpop.f32.mrb[0].mxu0
      %v1267 = vadd.f32 0.0, %v1266
      %v1268 = vpop.f32.mrb[0].mxu0
      %v1269 = vpop.f32.mrb[0].mxu0
      %v1270 = vadd.f32 0.0, %v1269
      %v1271 = vpop.f32.mrb[0].mxu0
      %1272 = vmatprep.mubr.bf16.mxu0 0
      %1273 = vmatmul.mubr.bf16.gmra.mrb[0].mxu0 %v1163
      %v1274 = vpop.f32.mrb[0].mxu0
      %v1275 = vadd.f32 0.0, %v1274
      %v1276 = vpop.f32.mrb[0].mxu0
      %v1277 = vpop.f32.mrb[0].mxu0
      %v1278 = vadd.f32 0.0, %v1277
      %v1279 = vpop.f32.mrb[0].mxu0
      %1280 = vmatprep.mubr.bf16.mxu0 0
      %1281 = vmatmul.mubr.bf16.gmra.mrb[0].mxu0 %v1166
      %v1282 = vpop.f32.mrb[0].mxu0
      %v1283 = vadd.f32 0.0, %v1282
      %v1284 = vpop.f32.mrb[0].mxu0
      %v1285 = vpop.f32.mrb[0].mxu0
      %v1286 = vadd.f32 0.0, %v1285
      %v1287 = vpop.f32.mrb[0].mxu0
      %1288 = vdwg.mxu0
      %v1289 = vsel %vm340, %v1227, -1e+30
      %v1290 = vsel %vm340, %v1230, -1e+30
      %v1291 = vsel %vm340, %v1235, -1e+30
      %v1292 = vsel %vm340, %v1238, -1e+30
      %v1293 = vsel %vm340, %v1243, -1e+30
      %v1294 = vsel %vm340, %v1246, -1e+30
      %v1295 = vsel %vm340, %v1251, -1e+30
      %v1296 = vsel %vm340, %v1254, -1e+30
      %v1297 = vsel %vm340, %v1259, -1e+30
      %v1298 = vsel %vm340, %v1262, -1e+30
      %v1299 = vsel %vm340, %v1267, -1e+30
      %v1300 = vsel %vm340, %v1270, -1e+30
      %v1301 = vsel %vm340, %v1275, -1e+30
      %v1302 = vsel %vm340, %v1278, -1e+30
      %v1303 = vsel %vm340, %v1283, -1e+30
      %v1304 = vsel %vm340, %v1286, -1e+30
      %1305 = vmax.xlane.f32.xlu0 %v1289
      %v1306 = vpop.xlane.xlu0 %1305
      %1307 = vmax.xlane.f32.xlu0 %v1290
      %v1308 = vpop.xlane.xlu0 %1307
      %1309 = vmax.xlane.f32.xlu0 %v1291
      %v1310 = vpop.xlane.xlu0 %1309
      %1311 = vmax.xlane.f32.xlu0 %v1292
      %v1312 = vpop.xlane.xlu0 %1311
      %1313 = vmax.xlane.f32.xlu0 %v1293
      %v1314 = vpop.xlane.xlu0 %1313
      %1315 = vmax.xlane.f32.xlu0 %v1294
      %v1316 = vpop.xlane.xlu0 %1315
      %1317 = vmax.xlane.f32.xlu0 %v1295
      %v1318 = vpop.xlane.xlu0 %1317
      %1319 = vmax.xlane.f32.xlu0 %v1296
      %v1320 = vpop.xlane.xlu0 %1319
      %1321 = vmax.xlane.f32.xlu0 %v1297
      %v1322 = vpop.xlane.xlu0 %1321
      %1323 = vmax.xlane.f32.xlu0 %v1298
      %v1324 = vpop.xlane.xlu0 %1323
      %1325 = vmax.xlane.f32.xlu0 %v1299
      %v1326 = vpop.xlane.xlu0 %1325
      %1327 = vmax.xlane.f32.xlu0 %v1300
      %v1328 = vpop.xlane.xlu0 %1327
      %1329 = vmax.xlane.f32.xlu0 %v1301
      %v1330 = vpop.xlane.xlu0 %1329
      %1331 = vmax.xlane.f32.xlu0 %v1302
      %v1332 = vpop.xlane.xlu0 %1331
      %1333 = vmax.xlane.f32.xlu0 %v1303
      %v1334 = vpop.xlane.xlu0 %1333
      %1335 = vmax.xlane.f32.xlu0 %v1304
      %v1336 = vpop.xlane.xlu0 %1335
      %v1337 = vsub.f32 %v1289, %v1306
      %v1338 = vsub.f32 %v1290, %v1308
      %v1339 = vsub.f32 %v1291, %v1310
      %v1340 = vsub.f32 %v1292, %v1312
      %v1341 = vsub.f32 %v1293, %v1314
      %v1342 = vsub.f32 %v1294, %v1316
      %v1343 = vsub.f32 %v1295, %v1318
      %v1344 = vsub.f32 %v1296, %v1320
      %v1345 = vsub.f32 %v1297, %v1322
      %v1346 = vsub.f32 %v1298, %v1324
      %v1347 = vsub.f32 %v1299, %v1326
      %v1348 = vsub.f32 %v1300, %v1328
      %v1349 = vsub.f32 %v1301, %v1330
      %v1350 = vsub.f32 %v1302, %v1332
      %v1351 = vsub.f32 %v1303, %v1334
      %v1352 = vsub.f32 %v1304, %v1336
      %v1353 = vmul.f32 %v1337, 1.442695
      %v1354 = vpow.pop %v1353
      %v1355 = vmul.f32 %v1338, 1.442695
      %v1356 = vpow.pop %v1355
      %v1357 = vmul.f32 %v1339, 1.442695
      %v1358 = vpow.pop %v1357
      %v1359 = vmul.f32 %v1340, 1.442695
      %v1360 = vpow.pop %v1359
      %v1361 = vmul.f32 %v1341, 1.442695
      %v1362 = vpow.pop %v1361
      %v1363 = vmul.f32 %v1342, 1.442695
      %v1364 = vpow.pop %v1363
      %v1365 = vmul.f32 %v1343, 1.442695
      %v1366 = vpow.pop %v1365
      %v1367 = vmul.f32 %v1344, 1.442695
      %v1368 = vpow.pop %v1367
      %v1369 = vmul.f32 %v1345, 1.442695
      %v1370 = vpow.pop %v1369
      %v1371 = vmul.f32 %v1346, 1.442695
      %v1372 = vpow.pop %v1371
      %v1373 = vmul.f32 %v1347, 1.442695
      %v1374 = vpow.pop %v1373
      %v1375 = vmul.f32 %v1348, 1.442695
      %v1376 = vpow.pop %v1375
      %v1377 = vmul.f32 %v1349, 1.442695
      %v1378 = vpow.pop %v1377
      %v1379 = vmul.f32 %v1350, 1.442695
      %v1380 = vpow.pop %v1379
      %v1381 = vmul.f32 %v1351, 1.442695
      %v1382 = vpow.pop %v1381
      %v1383 = vmul.f32 %v1352, 1.442695
      %v1384 = vpow.pop %v1383
      %1385 = vadd.xlane.f32.xlu0 %v1354
      %v1386 = vpop.xlane.xlu0 %1385
      %1387 = vadd.xlane.f32.xlu0 %v1356
      %v1388 = vpop.xlane.xlu0 %1387
      %1389 = vadd.xlane.f32.xlu0 %v1358
      %v1390 = vpop.xlane.xlu0 %1389
      %1391 = vadd.xlane.f32.xlu0 %v1360
      %v1392 = vpop.xlane.xlu0 %1391
      %1393 = vadd.xlane.f32.xlu0 %v1362
      %v1394 = vpop.xlane.xlu0 %1393
      %1395 = vadd.xlane.f32.xlu0 %v1364
      %v1396 = vpop.xlane.xlu0 %1395
      %1397 = vadd.xlane.f32.xlu0 %v1366
      %v1398 = vpop.xlane.xlu0 %1397
      %1399 = vadd.xlane.f32.xlu0 %v1368
      %v1400 = vpop.xlane.xlu0 %1399
      %1401 = vadd.xlane.f32.xlu0 %v1370
      %v1402 = vpop.xlane.xlu0 %1401
      %1403 = vadd.xlane.f32.xlu0 %v1372
      %v1404 = vpop.xlane.xlu0 %1403
      %1405 = vadd.xlane.f32.xlu0 %v1374
      %v1406 = vpop.xlane.xlu0 %1405
      %1407 = vadd.xlane.f32.xlu0 %v1376
      %v1408 = vpop.xlane.xlu0 %1407
      %1409 = vadd.xlane.f32.xlu0 %v1378
      %v1410 = vpop.xlane.xlu0 %1409
      %1411 = vadd.xlane.f32.xlu0 %v1380
      %v1412 = vpop.xlane.xlu0 %1411
      %1413 = vadd.xlane.f32.xlu0 %v1382
      %v1414 = vpop.xlane.xlu0 %1413
      %1415 = vadd.xlane.f32.xlu0 %v1384
      %v1416 = vpop.xlane.xlu0 %1415
      %v1417 = vrcp.pop %v1386
      %v1418 = vrcp.pop %v1388
      %v1419 = vrcp.pop %v1390
      %v1420 = vrcp.pop %v1392
      %v1421 = vrcp.pop %v1394
      %v1422 = vrcp.pop %v1396
      %v1423 = vrcp.pop %v1398
      %v1424 = vrcp.pop %v1400
      %v1425 = vrcp.pop %v1402
      %v1426 = vrcp.pop %v1404
      %v1427 = vrcp.pop %v1406
      %v1428 = vrcp.pop %v1408
      %v1429 = vrcp.pop %v1410
      %v1430 = vrcp.pop %v1412
      %v1431 = vrcp.pop %v1414
      %v1432 = vrcp.pop %v1416
      %v1433 = vmul.f32 %v1354, %v1417
      %v1434 = vmul.f32 %v1356, %v1418
      %v1435 = vmul.f32 %v1358, %v1419
      %v1436 = vmul.f32 %v1360, %v1420
      %v1437 = vmul.f32 %v1362, %v1421
      %v1438 = vmul.f32 %v1364, %v1422
      %v1439 = vmul.f32 %v1366, %v1423
      %v1440 = vmul.f32 %v1368, %v1424
      %v1441 = vmul.f32 %v1370, %v1425
      %v1442 = vmul.f32 %v1372, %v1426
      %v1443 = vmul.f32 %v1374, %v1427
      %v1444 = vmul.f32 %v1376, %v1428
      %v1445 = vmul.f32 %v1378, %v1429
      %v1446 = vmul.f32 %v1380, %v1430
      %v1447 = vmul.f32 %v1382, %v1431
      %v1448 = vmul.f32 %v1384, %v1432
      %v1449 = vpack.c.bf16 %v1434, %v1433
      %v1450 = vpack.c.bf16 %v1436, %v1435
      %v1451 = vpack.c.bf16 %v1438, %v1437
      %v1452 = vpack.c.bf16 %v1440, %v1439
      %v1453 = vpack.c.bf16 %v1442, %v1441
      %v1454 = vpack.c.bf16 %v1444, %v1443
      %v1455 = vpack.c.bf16 %v1446, %v1445
      %v1456 = vpack.c.bf16 %v1448, %v1447
      %1457 = vrot.lane.b32.xlu0 %v169, 48
      %v1458 = vpop.permute.xlu0 %1457
      %1459 = vrot.lane.b32.xlu0 %v170, 48
      %v1460 = vpop.permute.xlu0 %1459
      %1461 = vrot.lane.b32.xlu0 %v171, 48
      %v1462 = vpop.permute.xlu0 %1461
      %1463 = vrot.lane.b32.xlu0 %v172, 48
      %v1464 = vpop.permute.xlu0 %1463
      %1465 = vrot.lane.b32.xlu0 %v173, 48
      %v1466 = vpop.permute.xlu0 %1465
      %1467 = vrot.lane.b32.xlu0 %v174, 48
      %v1468 = vpop.permute.xlu0 %1467
      %1469 = vrot.lane.b32.xlu0 %v175, 48
      %v1470 = vpop.permute.xlu0 %1469
      %1471 = vrot.lane.b32.xlu0 %v176, 48
      %v1472 = vpop.permute.xlu0 %1471
      %1481 = vmatprep.subr.bf16.mxu0 0
      %1482 = vmatpush1.bf16.msra.mxu0 %v1458
      %1483 = vmatprep.subr.bf16.mxu0 0
      %1484 = vmatpush1.bf16.msra.mxu0 %v1460
      %1485 = vmatprep.subr.bf16.mxu0 0
      %1486 = vmatpush1.bf16.msra.mxu0 %v1462
      %1487 = vmatprep.subr.bf16.mxu0 0
      %1488 = vmatpush1.bf16.msra.mxu0 %v1464
      %1489 = vmatprep.subr.bf16.mxu0 0
      %1490 = vmatpush1.bf16.msra.mxu0 %v1466
      %1491 = vmatprep.subr.bf16.mxu0 0
      %1492 = vmatpush1.bf16.msra.mxu0 %v1468
      %1493 = vmatprep.subr.bf16.mxu0 0
      %1494 = vmatpush1.bf16.msra.mxu0 %v1470
      %1495 = vmatprep.subr.bf16.mxu0 0
      %1496 = vmatpush1.bf16.msra.mxu0 %v1472
      %1497 = vmatprep.subr.bf16.mxu0 0
      %1498 = vmatpush1.bf16.msra.mxu0 0
      %1499 = vmatprep.subr.bf16.mxu0 0
      %1500 = vmatpush1.bf16.msra.mxu0 0
      %1501 = vmatprep.subr.bf16.mxu0 0
      %1502 = vmatpush1.bf16.msra.mxu0 0
      %1503 = vmatprep.subr.bf16.mxu0 0
      %1504 = vmatpush1.bf16.msra.mxu0 0
      %1505 = vmatprep.subr.bf16.mxu0 0
      %1506 = vmatpush1.bf16.msra.mxu0 0
      %1507 = vmatprep.subr.bf16.mxu0 0
      %1508 = vmatpush1.bf16.msra.mxu0 0
      %1509 = vmatprep.subr.bf16.mxu0 0
      %1510 = vmatpush1.bf16.msra.mxu0 0
      %1511 = vmatprep.subr.bf16.mxu0 0
      %1512 = vmatpush1.bf16.msra.mxu0 0
      %1513 = vmatprep.mubr.bf16.mxu0 0
      %1514 = vmatmul.mubr.bf16.gmra.mrb[0].mxu0 %v1449
      %v1515 = vpop.f32.mrb[0].mxu0
      %v1516 = vadd.f32 0.0, %v1515
      %v1517 = vpop.f32.mrb[0].mxu0
      %v1518 = vpop.f32.mrb[0].mxu0
      %v1519 = vadd.f32 0.0, %v1518
      %v1520 = vpop.f32.mrb[0].mxu0
      %1521 = vmatprep.mubr.bf16.mxu0 0
      %1522 = vmatmul.mubr.bf16.gmra.mrb[0].mxu0 %v1450
      %v1523 = vpop.f32.mrb[0].mxu0
      %v1524 = vadd.f32 0.0, %v1523
      %v1525 = vpop.f32.mrb[0].mxu0
      %v1526 = vpop.f32.mrb[0].mxu0
      %v1527 = vadd.f32 0.0, %v1526
      %v1528 = vpop.f32.mrb[0].mxu0
      %1529 = vmatprep.mubr.bf16.mxu0 0
      %1530 = vmatmul.mubr.bf16.gmra.mrb[0].mxu0 %v1451
      %v1531 = vpop.f32.mrb[0].mxu0
      %v1532 = vadd.f32 0.0, %v1531
      %v1533 = vpop.f32.mrb[0].mxu0
      %v1534 = vpop.f32.mrb[0].mxu0
      %v1535 = vadd.f32 0.0, %v1534
      %v1536 = vpop.f32.mrb[0].mxu0
      %1537 = vmatprep.mubr.bf16.mxu0 0
      %1538 = vmatmul.mubr.bf16.gmra.mrb[0].mxu0 %v1452
      %v1539 = vpop.f32.mrb[0].mxu0
      %v1540 = vadd.f32 0.0, %v1539
      %v1541 = vpop.f32.mrb[0].mxu0
      %v1542 = vpop.f32.mrb[0].mxu0
      %v1543 = vadd.f32 0.0, %v1542
      %v1544 = vpop.f32.mrb[0].mxu0
      %1545 = vmatprep.mubr.bf16.mxu0 0
      %1546 = vmatmul.mubr.bf16.gmra.mrb[0].mxu0 %v1453
      %v1547 = vpop.f32.mrb[0].mxu0
      %v1548 = vadd.f32 0.0, %v1547
      %v1549 = vpop.f32.mrb[0].mxu0
      %v1550 = vpop.f32.mrb[0].mxu0
      %v1551 = vadd.f32 0.0, %v1550
      %v1552 = vpop.f32.mrb[0].mxu0
      %1553 = vmatprep.mubr.bf16.mxu0 0
      %1554 = vmatmul.mubr.bf16.gmra.mrb[0].mxu0 %v1454
      %v1555 = vpop.f32.mrb[0].mxu0
      %v1556 = vadd.f32 0.0, %v1555
      %v1557 = vpop.f32.mrb[0].mxu0
      %v1558 = vpop.f32.mrb[0].mxu0
      %v1559 = vadd.f32 0.0, %v1558
      %v1560 = vpop.f32.mrb[0].mxu0
      %1561 = vmatprep.mubr.bf16.mxu0 0
      %1562 = vmatmul.mubr.bf16.gmra.mrb[0].mxu0 %v1455
      %v1563 = vpop.f32.mrb[0].mxu0
      %v1564 = vadd.f32 0.0, %v1563
      %v1565 = vpop.f32.mrb[0].mxu0
      %v1566 = vpop.f32.mrb[0].mxu0
      %v1567 = vadd.f32 0.0, %v1566
      %v1568 = vpop.f32.mrb[0].mxu0
      %1569 = vmatprep.mubr.bf16.mxu0 0
      %1570 = vmatmul.mubr.bf16.gmra.mrb[0].mxu0 %v1456
      %v1571 = vpop.f32.mrb[0].mxu0
      %v1572 = vadd.f32 0.0, %v1571
      %v1573 = vpop.f32.mrb[0].mxu0
      %v1574 = vpop.f32.mrb[0].mxu0
      %v1575 = vadd.f32 0.0, %v1574
      %v1576 = vpop.f32.mrb[0].mxu0
      %1577 = vdwg.mxu0
      %v1578 = vpack.c.bf16 %v1519, %v1516
      %v1579 = vpack.c.bf16 %v1527, %v1524
      %v1580 = vpack.c.bf16 %v1535, %v1532
      %v1581 = vpack.c.bf16 %v1543, %v1540
      %v1582 = vpack.c.bf16 %v1551, %v1548
      %v1583 = vpack.c.bf16 %v1559, %v1556
      %v1584 = vpack.c.bf16 %v1567, %v1564
      %v1585 = vpack.c.bf16 %v1575, %v1572
      %1586 = vrot.lane.b32.xlu0 %v169, 104
      %v1587 = vpop.permute.xlu0 %1586
      %1588 = vrot.lane.b32.xlu0 %v170, 104
      %v1589 = vpop.permute.xlu0 %1588
      %1590 = vrot.lane.b32.xlu0 %v171, 104
      %v1591 = vpop.permute.xlu0 %1590
      %1592 = vrot.lane.b32.xlu0 %v172, 104
      %v1593 = vpop.permute.xlu0 %1592
      %1594 = vrot.lane.b32.xlu0 %v173, 104
      %v1595 = vpop.permute.xlu0 %1594
      %1596 = vrot.lane.b32.xlu0 %v174, 104
      %v1597 = vpop.permute.xlu0 %1596
      %1598 = vrot.lane.b32.xlu0 %v175, 104
      %v1599 = vpop.permute.xlu0 %1598
      %1600 = vrot.lane.b32.xlu0 %v176, 104
      %v1601 = vpop.permute.xlu0 %1600
      %1602 = vrot.lane.b32.xlu0 %v169, 72
      %v1603 = vpop.permute.xlu0 %1602
      %1604 = vrot.lane.b32.xlu0 %v170, 72
      %v1605 = vpop.permute.xlu0 %1604
      %1606 = vrot.lane.b32.xlu0 %v171, 72
      %v1607 = vpop.permute.xlu0 %1606
      %1608 = vrot.lane.b32.xlu0 %v172, 72
      %v1609 = vpop.permute.xlu0 %1608
      %1610 = vrot.lane.b32.xlu0 %v173, 72
      %v1611 = vpop.permute.xlu0 %1610
      %1612 = vrot.lane.b32.xlu0 %v174, 72
      %v1613 = vpop.permute.xlu0 %1612
      %1614 = vrot.lane.b32.xlu0 %v175, 72
      %v1615 = vpop.permute.xlu0 %1614
      %1616 = vrot.lane.b32.xlu0 %v176, 72
      %v1617 = vpop.permute.xlu0 %1616
      %v1619 = vsel %vm193, %v1587, 0
      %v1622 = vsel %vm193, %v1589, 0
      %v1625 = vsel %vm193, %v1591, 0
      %v1628 = vsel %vm193, %v1593, 0
      %v1631 = vsel %vm193, %v1595, 0
      %v1634 = vsel %vm193, %v1597, 0
      %v1637 = vsel %vm193, %v1599, 0
      %v1640 = vsel %vm193, %v1601, 0
      %v1643 = vsel %vm193, %v1603, 0
      %v1646 = vsel %vm193, %v1605, 0
      %v1649 = vsel %vm193, %v1607, 0
      %v1652 = vsel %vm193, %v1609, 0
      %v1655 = vsel %vm193, %v1611, 0
      %v1658 = vsel %vm193, %v1613, 0
      %v1661 = vsel %vm193, %v1615, 0
      %v1664 = vsel %vm193, %v1617, 0
      %1666 = vmatprep.subr.bf16.mxu0 0
      %1667 = vmatpush1.bf16.xpose.msra.mxu0 %v1643
      %1668 = vmatprep.subr.bf16.mxu0 0
      %1669 = vmatpush1.bf16.xpose.msra.mxu0 %v1646
      %1670 = vmatprep.subr.bf16.mxu0 0
      %1671 = vmatpush1.bf16.xpose.msra.mxu0 %v1649
      %1672 = vmatprep.subr.bf16.mxu0 0
      %1673 = vmatpush1.bf16.xpose.msra.mxu0 %v1652
      %1674 = vmatprep.subr.bf16.mxu0 0
      %1675 = vmatpush1.bf16.xpose.msra.mxu0 %v1655
      %1676 = vmatprep.subr.bf16.mxu0 0
      %1677 = vmatpush1.bf16.xpose.msra.mxu0 %v1658
      %1678 = vmatprep.subr.bf16.mxu0 0
      %1679 = vmatpush1.bf16.xpose.msra.mxu0 %v1661
      %1680 = vmatprep.subr.bf16.mxu0 0
      %1681 = vmatpush1.bf16.xpose.msra.mxu0 %v1664
      %1682 = vmatprep.subr.bf16.mxu0 0
      %1683 = vmatpush1.bf16.xpose.msra.mxu0 0
      %1684 = vmatprep.subr.bf16.mxu0 0
      %1685 = vmatpush1.bf16.xpose.msra.mxu0 0
      %1686 = vmatprep.subr.bf16.mxu0 0
      %1687 = vmatpush1.bf16.xpose.msra.mxu0 0
      %1688 = vmatprep.subr.bf16.mxu0 0
      %1689 = vmatpush1.bf16.xpose.msra.mxu0 0
      %1690 = vmatprep.subr.bf16.mxu0 0
      %1691 = vmatpush1.bf16.xpose.msra.mxu0 0
      %1692 = vmatprep.subr.bf16.mxu0 0
      %1693 = vmatpush1.bf16.xpose.msra.mxu0 0
      %1694 = vmatprep.subr.bf16.mxu0 0
      %1695 = vmatpush1.bf16.xpose.msra.mxu0 0
      %1696 = vmatprep.subr.bf16.mxu0 0
      %1697 = vmatpush1.bf16.xpose.msra.mxu0 0
      %1698 = vmatprep.mubr.bf16.mxu0 0
      %1699 = vmatmul.mubr.bf16.gmra.mrb[0].mxu0 %v1619
      %v1700 = vpop.f32.mrb[0].mxu0
      %v1701 = vadd.f32 0.0, %v1700
      %v1702 = vpop.f32.mrb[0].mxu0
      %v1703 = vpop.f32.mrb[0].mxu0
      %v1704 = vadd.f32 0.0, %v1703
      %v1705 = vpop.f32.mrb[0].mxu0
      %1706 = vmatprep.mubr.bf16.mxu0 0
      %1707 = vmatmul.mubr.bf16.gmra.mrb[0].mxu0 %v1622
      %v1708 = vpop.f32.mrb[0].mxu0
      %v1709 = vadd.f32 0.0, %v1708
      %v1710 = vpop.f32.mrb[0].mxu0
      %v1711 = vpop.f32.mrb[0].mxu0
      %v1712 = vadd.f32 0.0, %v1711
      %v1713 = vpop.f32.mrb[0].mxu0
      %1714 = vmatprep.mubr.bf16.mxu0 0
      %1715 = vmatmul.mubr.bf16.gmra.mrb[0].mxu0 %v1625
      %v1716 = vpop.f32.mrb[0].mxu0
      %v1717 = vadd.f32 0.0, %v1716
      %v1718 = vpop.f32.mrb[0].mxu0
      %v1719 = vpop.f32.mrb[0].mxu0
      %v1720 = vadd.f32 0.0, %v1719
      %v1721 = vpop.f32.mrb[0].mxu0
      %1722 = vmatprep.mubr.bf16.mxu0 0
      %1723 = vmatmul.mubr.bf16.gmra.mrb[0].mxu0 %v1628
      %v1724 = vpop.f32.mrb[0].mxu0
      %v1725 = vadd.f32 0.0, %v1724
      %v1726 = vpop.f32.mrb[0].mxu0
      %v1727 = vpop.f32.mrb[0].mxu0
      %v1728 = vadd.f32 0.0, %v1727
      %v1729 = vpop.f32.mrb[0].mxu0
      %1730 = vmatprep.mubr.bf16.mxu0 0
      %1731 = vmatmul.mubr.bf16.gmra.mrb[0].mxu0 %v1631
      %v1732 = vpop.f32.mrb[0].mxu0
      %v1733 = vadd.f32 0.0, %v1732
      %v1734 = vpop.f32.mrb[0].mxu0
      %v1735 = vpop.f32.mrb[0].mxu0
      %v1736 = vadd.f32 0.0, %v1735
      %v1737 = vpop.f32.mrb[0].mxu0
      %1738 = vmatprep.mubr.bf16.mxu0 0
      %1739 = vmatmul.mubr.bf16.gmra.mrb[0].mxu0 %v1634
      %v1740 = vpop.f32.mrb[0].mxu0
      %v1741 = vadd.f32 0.0, %v1740
      %v1742 = vpop.f32.mrb[0].mxu0
      %v1743 = vpop.f32.mrb[0].mxu0
      %v1744 = vadd.f32 0.0, %v1743
      %v1745 = vpop.f32.mrb[0].mxu0
      %1746 = vmatprep.mubr.bf16.mxu0 0
      %1747 = vmatmul.mubr.bf16.gmra.mrb[0].mxu0 %v1637
      %v1748 = vpop.f32.mrb[0].mxu0
      %v1749 = vadd.f32 0.0, %v1748
      %v1750 = vpop.f32.mrb[0].mxu0
      %v1751 = vpop.f32.mrb[0].mxu0
      %v1752 = vadd.f32 0.0, %v1751
      %v1753 = vpop.f32.mrb[0].mxu0
      %1754 = vmatprep.mubr.bf16.mxu0 0
      %1755 = vmatmul.mubr.bf16.gmra.mrb[0].mxu0 %v1640
      %v1756 = vpop.f32.mrb[0].mxu0
      %v1757 = vadd.f32 0.0, %v1756
      %v1758 = vpop.f32.mrb[0].mxu0
      %v1759 = vpop.f32.mrb[0].mxu0
      %v1760 = vadd.f32 0.0, %v1759
      %v1761 = vpop.f32.mrb[0].mxu0
      %1762 = vdwg.mxu0
      %v1763 = vsel %vm340, %v1701, -1e+30
      %v1764 = vsel %vm340, %v1704, -1e+30
      %v1765 = vsel %vm340, %v1709, -1e+30
      %v1766 = vsel %vm340, %v1712, -1e+30
      %v1767 = vsel %vm340, %v1717, -1e+30
      %v1768 = vsel %vm340, %v1720, -1e+30
      %v1769 = vsel %vm340, %v1725, -1e+30
      %v1770 = vsel %vm340, %v1728, -1e+30
      %v1771 = vsel %vm340, %v1733, -1e+30
      %v1772 = vsel %vm340, %v1736, -1e+30
      %v1773 = vsel %vm340, %v1741, -1e+30
      %v1774 = vsel %vm340, %v1744, -1e+30
      %v1775 = vsel %vm340, %v1749, -1e+30
      %v1776 = vsel %vm340, %v1752, -1e+30
      %v1777 = vsel %vm340, %v1757, -1e+30
      %v1778 = vsel %vm340, %v1760, -1e+30
      %1779 = vmax.xlane.f32.xlu0 %v1763
      %v1780 = vpop.xlane.xlu0 %1779
      %1781 = vmax.xlane.f32.xlu0 %v1764
      %v1782 = vpop.xlane.xlu0 %1781
      %1783 = vmax.xlane.f32.xlu0 %v1765
      %v1784 = vpop.xlane.xlu0 %1783
      %1785 = vmax.xlane.f32.xlu0 %v1766
      %v1786 = vpop.xlane.xlu0 %1785
      %1787 = vmax.xlane.f32.xlu0 %v1767
      %v1788 = vpop.xlane.xlu0 %1787
      %1789 = vmax.xlane.f32.xlu0 %v1768
      %v1790 = vpop.xlane.xlu0 %1789
      %1791 = vmax.xlane.f32.xlu0 %v1769
      %v1792 = vpop.xlane.xlu0 %1791
      %1793 = vmax.xlane.f32.xlu0 %v1770
      %v1794 = vpop.xlane.xlu0 %1793
      %1795 = vmax.xlane.f32.xlu0 %v1771
      %v1796 = vpop.xlane.xlu0 %1795
      %1797 = vmax.xlane.f32.xlu0 %v1772
      %v1798 = vpop.xlane.xlu0 %1797
      %1799 = vmax.xlane.f32.xlu0 %v1773
      %v1800 = vpop.xlane.xlu0 %1799
      %1801 = vmax.xlane.f32.xlu0 %v1774
      %v1802 = vpop.xlane.xlu0 %1801
      %1803 = vmax.xlane.f32.xlu0 %v1775
      %v1804 = vpop.xlane.xlu0 %1803
      %1805 = vmax.xlane.f32.xlu0 %v1776
      %v1806 = vpop.xlane.xlu0 %1805
      %1807 = vmax.xlane.f32.xlu0 %v1777
      %v1808 = vpop.xlane.xlu0 %1807
      %1809 = vmax.xlane.f32.xlu0 %v1778
      %v1810 = vpop.xlane.xlu0 %1809
      %v1811 = vsub.f32 %v1763, %v1780
      %v1812 = vsub.f32 %v1764, %v1782
      %v1813 = vsub.f32 %v1765, %v1784
      %v1814 = vsub.f32 %v1766, %v1786
      %v1815 = vsub.f32 %v1767, %v1788
      %v1816 = vsub.f32 %v1768, %v1790
      %v1817 = vsub.f32 %v1769, %v1792
      %v1818 = vsub.f32 %v1770, %v1794
      %v1819 = vsub.f32 %v1771, %v1796
      %v1820 = vsub.f32 %v1772, %v1798
      %v1821 = vsub.f32 %v1773, %v1800
      %v1822 = vsub.f32 %v1774, %v1802
      %v1823 = vsub.f32 %v1775, %v1804
      %v1824 = vsub.f32 %v1776, %v1806
      %v1825 = vsub.f32 %v1777, %v1808
      %v1826 = vsub.f32 %v1778, %v1810
      %v1827 = vmul.f32 %v1811, 1.442695
      %v1828 = vpow.pop %v1827
      %v1829 = vmul.f32 %v1812, 1.442695
      %v1830 = vpow.pop %v1829
      %v1831 = vmul.f32 %v1813, 1.442695
      %v1832 = vpow.pop %v1831
      %v1833 = vmul.f32 %v1814, 1.442695
      %v1834 = vpow.pop %v1833
      %v1835 = vmul.f32 %v1815, 1.442695
      %v1836 = vpow.pop %v1835
      %v1837 = vmul.f32 %v1816, 1.442695
      %v1838 = vpow.pop %v1837
      %v1839 = vmul.f32 %v1817, 1.442695
      %v1840 = vpow.pop %v1839
      %v1841 = vmul.f32 %v1818, 1.442695
      %v1842 = vpow.pop %v1841
      %v1843 = vmul.f32 %v1819, 1.442695
      %v1844 = vpow.pop %v1843
      %v1845 = vmul.f32 %v1820, 1.442695
      %v1846 = vpow.pop %v1845
      %v1847 = vmul.f32 %v1821, 1.442695
      %v1848 = vpow.pop %v1847
      %v1849 = vmul.f32 %v1822, 1.442695
      %v1850 = vpow.pop %v1849
      %v1851 = vmul.f32 %v1823, 1.442695
      %v1852 = vpow.pop %v1851
      %v1853 = vmul.f32 %v1824, 1.442695
      %v1854 = vpow.pop %v1853
      %v1855 = vmul.f32 %v1825, 1.442695
      %v1856 = vpow.pop %v1855
      %v1857 = vmul.f32 %v1826, 1.442695
      %v1858 = vpow.pop %v1857
      %1859 = vadd.xlane.f32.xlu0 %v1828
      %v1860 = vpop.xlane.xlu0 %1859
      %1861 = vadd.xlane.f32.xlu0 %v1830
      %v1862 = vpop.xlane.xlu0 %1861
      %1863 = vadd.xlane.f32.xlu0 %v1832
      %v1864 = vpop.xlane.xlu0 %1863
      %1865 = vadd.xlane.f32.xlu0 %v1834
      %v1866 = vpop.xlane.xlu0 %1865
      %1867 = vadd.xlane.f32.xlu0 %v1836
      %v1868 = vpop.xlane.xlu0 %1867
      %1869 = vadd.xlane.f32.xlu0 %v1838
      %v1870 = vpop.xlane.xlu0 %1869
      %1871 = vadd.xlane.f32.xlu0 %v1840
      %v1872 = vpop.xlane.xlu0 %1871
      %1873 = vadd.xlane.f32.xlu0 %v1842
      %v1874 = vpop.xlane.xlu0 %1873
      %1875 = vadd.xlane.f32.xlu0 %v1844
      %v1876 = vpop.xlane.xlu0 %1875
      %1877 = vadd.xlane.f32.xlu0 %v1846
      %v1878 = vpop.xlane.xlu0 %1877
      %1879 = vadd.xlane.f32.xlu0 %v1848
      %v1880 = vpop.xlane.xlu0 %1879
      %1881 = vadd.xlane.f32.xlu0 %v1850
      %v1882 = vpop.xlane.xlu0 %1881
      %1883 = vadd.xlane.f32.xlu0 %v1852
      %v1884 = vpop.xlane.xlu0 %1883
      %1885 = vadd.xlane.f32.xlu0 %v1854
      %v1886 = vpop.xlane.xlu0 %1885
      %1887 = vadd.xlane.f32.xlu0 %v1856
      %v1888 = vpop.xlane.xlu0 %1887
      %1889 = vadd.xlane.f32.xlu0 %v1858
      %v1890 = vpop.xlane.xlu0 %1889
      %v1891 = vrcp.pop %v1860
      %v1892 = vrcp.pop %v1862
      %v1893 = vrcp.pop %v1864
      %v1894 = vrcp.pop %v1866
      %v1895 = vrcp.pop %v1868
      %v1896 = vrcp.pop %v1870
      %v1897 = vrcp.pop %v1872
      %v1898 = vrcp.pop %v1874
      %v1899 = vrcp.pop %v1876
      %v1900 = vrcp.pop %v1878
      %v1901 = vrcp.pop %v1880
      %v1902 = vrcp.pop %v1882
      %v1903 = vrcp.pop %v1884
      %v1904 = vrcp.pop %v1886
      %v1905 = vrcp.pop %v1888
      %v1906 = vrcp.pop %v1890
      %v1907 = vmul.f32 %v1828, %v1891
      %v1908 = vmul.f32 %v1830, %v1892
      %v1909 = vmul.f32 %v1832, %v1893
      %v1910 = vmul.f32 %v1834, %v1894
      %v1911 = vmul.f32 %v1836, %v1895
      %v1912 = vmul.f32 %v1838, %v1896
      %v1913 = vmul.f32 %v1840, %v1897
      %v1914 = vmul.f32 %v1842, %v1898
      %v1915 = vmul.f32 %v1844, %v1899
      %v1916 = vmul.f32 %v1846, %v1900
      %v1917 = vmul.f32 %v1848, %v1901
      %v1918 = vmul.f32 %v1850, %v1902
      %v1919 = vmul.f32 %v1852, %v1903
      %v1920 = vmul.f32 %v1854, %v1904
      %v1921 = vmul.f32 %v1856, %v1905
      %v1922 = vmul.f32 %v1858, %v1906
      %v1923 = vpack.c.bf16 %v1908, %v1907
      %v1924 = vpack.c.bf16 %v1910, %v1909
      %v1925 = vpack.c.bf16 %v1912, %v1911
      %v1926 = vpack.c.bf16 %v1914, %v1913
      %v1927 = vpack.c.bf16 %v1916, %v1915
      %v1928 = vpack.c.bf16 %v1918, %v1917
      %v1929 = vpack.c.bf16 %v1920, %v1919
      %v1930 = vpack.c.bf16 %v1922, %v1921
      %1931 = vrot.lane.b32.xlu0 %v169, 40
      %v1932 = vpop.permute.xlu0 %1931
      %1933 = vrot.lane.b32.xlu0 %v170, 40
      %v1934 = vpop.permute.xlu0 %1933
      %1935 = vrot.lane.b32.xlu0 %v171, 40
      %v1936 = vpop.permute.xlu0 %1935
      %1937 = vrot.lane.b32.xlu0 %v172, 40
      %v1938 = vpop.permute.xlu0 %1937
      %1939 = vrot.lane.b32.xlu0 %v173, 40
      %v1940 = vpop.permute.xlu0 %1939
      %1941 = vrot.lane.b32.xlu0 %v174, 40
      %v1942 = vpop.permute.xlu0 %1941
      %1943 = vrot.lane.b32.xlu0 %v175, 40
      %v1944 = vpop.permute.xlu0 %1943
      %1945 = vrot.lane.b32.xlu0 %v176, 40
      %v1946 = vpop.permute.xlu0 %1945
      %1955 = vmatprep.subr.bf16.mxu0 0
      %1956 = vmatpush1.bf16.msra.mxu0 %v1932
      %1957 = vmatprep.subr.bf16.mxu0 0
      %1958 = vmatpush1.bf16.msra.mxu0 %v1934
      %1959 = vmatprep.subr.bf16.mxu0 0
      %1960 = vmatpush1.bf16.msra.mxu0 %v1936
      %1961 = vmatprep.subr.bf16.mxu0 0
      %1962 = vmatpush1.bf16.msra.mxu0 %v1938
      %1963 = vmatprep.subr.bf16.mxu0 0
      %1964 = vmatpush1.bf16.msra.mxu0 %v1940
      %1965 = vmatprep.subr.bf16.mxu0 0
      %1966 = vmatpush1.bf16.msra.mxu0 %v1942
      %1967 = vmatprep.subr.bf16.mxu0 0
      %1968 = vmatpush1.bf16.msra.mxu0 %v1944
      %1969 = vmatprep.subr.bf16.mxu0 0
      %1970 = vmatpush1.bf16.msra.mxu0 %v1946
      %1971 = vmatprep.subr.bf16.mxu0 0
      %1972 = vmatpush1.bf16.msra.mxu0 0
      %1973 = vmatprep.subr.bf16.mxu0 0
      %1974 = vmatpush1.bf16.msra.mxu0 0
      %1975 = vmatprep.subr.bf16.mxu0 0
      %1976 = vmatpush1.bf16.msra.mxu0 0
      %1977 = vmatprep.subr.bf16.mxu0 0
      %1978 = vmatpush1.bf16.msra.mxu0 0
      %1979 = vmatprep.subr.bf16.mxu0 0
      %1980 = vmatpush1.bf16.msra.mxu0 0
      %1981 = vmatprep.subr.bf16.mxu0 0
      %1982 = vmatpush1.bf16.msra.mxu0 0
      %1983 = vmatprep.subr.bf16.mxu0 0
      %1984 = vmatpush1.bf16.msra.mxu0 0
      %1985 = vmatprep.subr.bf16.mxu0 0
      %1986 = vmatpush1.bf16.msra.mxu0 0
      %1987 = vmatprep.mubr.bf16.mxu0 0
      %1988 = vmatmul.mubr.bf16.gmra.mrb[0].mxu0 %v1923
      %v1989 = vpop.f32.mrb[0].mxu0
      %v1990 = vadd.f32 0.0, %v1989
      %v1991 = vpop.f32.mrb[0].mxu0
      %v1992 = vpop.f32.mrb[0].mxu0
      %v1993 = vadd.f32 0.0, %v1992
      %v1994 = vpop.f32.mrb[0].mxu0
      %1995 = vmatprep.mubr.bf16.mxu0 0
      %1996 = vmatmul.mubr.bf16.gmra.mrb[0].mxu0 %v1924
      %v1997 = vpop.f32.mrb[0].mxu0
      %v1998 = vadd.f32 0.0, %v1997
      %v1999 = vpop.f32.mrb[0].mxu0
      %v2000 = vpop.f32.mrb[0].mxu0
      %v2001 = vadd.f32 0.0, %v2000
      %v2002 = vpop.f32.mrb[0].mxu0
      %2003 = vmatprep.mubr.bf16.mxu0 0
      %2004 = vmatmul.mubr.bf16.gmra.mrb[0].mxu0 %v1925
      %v2005 = vpop.f32.mrb[0].mxu0
      %v2006 = vadd.f32 0.0, %v2005
      %v2007 = vpop.f32.mrb[0].mxu0
      %v2008 = vpop.f32.mrb[0].mxu0
      %v2009 = vadd.f32 0.0, %v2008
      %v2010 = vpop.f32.mrb[0].mxu0
      %2011 = vmatprep.mubr.bf16.mxu0 0
      %2012 = vmatmul.mubr.bf16.gmra.mrb[0].mxu0 %v1926
      %v2013 = vpop.f32.mrb[0].mxu0
      %v2014 = vadd.f32 0.0, %v2013
      %v2015 = vpop.f32.mrb[0].mxu0
      %v2016 = vpop.f32.mrb[0].mxu0
      %v2017 = vadd.f32 0.0, %v2016
      %v2018 = vpop.f32.mrb[0].mxu0
      %2019 = vmatprep.mubr.bf16.mxu0 0
      %2020 = vmatmul.mubr.bf16.gmra.mrb[0].mxu0 %v1927
      %v2021 = vpop.f32.mrb[0].mxu0
      %v2022 = vadd.f32 0.0, %v2021
      %v2023 = vpop.f32.mrb[0].mxu0
      %v2024 = vpop.f32.mrb[0].mxu0
      %v2025 = vadd.f32 0.0, %v2024
      %v2026 = vpop.f32.mrb[0].mxu0
      %2027 = vmatprep.mubr.bf16.mxu0 0
      %2028 = vmatmul.mubr.bf16.gmra.mrb[0].mxu0 %v1928
      %v2029 = vpop.f32.mrb[0].mxu0
      %v2030 = vadd.f32 0.0, %v2029
      %v2031 = vpop.f32.mrb[0].mxu0
      %v2032 = vpop.f32.mrb[0].mxu0
      %v2033 = vadd.f32 0.0, %v2032
      %v2034 = vpop.f32.mrb[0].mxu0
      %2035 = vmatprep.mubr.bf16.mxu0 0
      %2036 = vmatmul.mubr.bf16.gmra.mrb[0].mxu0 %v1929
      %v2037 = vpop.f32.mrb[0].mxu0
      %v2038 = vadd.f32 0.0, %v2037
      %v2039 = vpop.f32.mrb[0].mxu0
      %v2040 = vpop.f32.mrb[0].mxu0
      %v2041 = vadd.f32 0.0, %v2040
      %v2042 = vpop.f32.mrb[0].mxu0
      %2043 = vmatprep.mubr.bf16.mxu0 0
      %2044 = vmatmul.mubr.bf16.gmra.mrb[0].mxu0 %v1930
      %v2045 = vpop.f32.mrb[0].mxu0
      %v2046 = vadd.f32 0.0, %v2045
      %v2047 = vpop.f32.mrb[0].mxu0
      %v2048 = vpop.f32.mrb[0].mxu0
      %v2049 = vadd.f32 0.0, %v2048
      %v2050 = vpop.f32.mrb[0].mxu0
      %2051 = vdwg.mxu0
      %v2052 = vpack.c.bf16 %v1993, %v1990
      %v2053 = vpack.c.bf16 %v2001, %v1998
      %v2054 = vpack.c.bf16 %v2009, %v2006
      %v2055 = vpack.c.bf16 %v2017, %v2014
      %v2056 = vpack.c.bf16 %v2025, %v2022
      %v2057 = vpack.c.bf16 %v2033, %v2030
      %v2058 = vpack.c.bf16 %v2041, %v2038
      %v2059 = vpack.c.bf16 %v2049, %v2046
      %2068 = vrot.lane.b32.xlu0 %v1104, 8
      %v2069 = vpop.permute.xlu0 %2068
      %2070 = vrot.lane.b32.xlu0 %v1105, 8
      %v2071 = vpop.permute.xlu0 %2070
      %2072 = vrot.lane.b32.xlu0 %v1106, 8
      %v2073 = vpop.permute.xlu0 %2072
      %2074 = vrot.lane.b32.xlu0 %v1107, 8
      %v2075 = vpop.permute.xlu0 %2074
      %2076 = vrot.lane.b32.xlu0 %v1108, 8
      %v2077 = vpop.permute.xlu0 %2076
      %2078 = vrot.lane.b32.xlu0 %v1109, 8
      %v2079 = vpop.permute.xlu0 %2078
      %2080 = vrot.lane.b32.xlu0 %v1110, 8
      %v2081 = vpop.permute.xlu0 %2080
      %2082 = vrot.lane.b32.xlu0 %v1111, 8
      %v2083 = vpop.permute.xlu0 %2082
      %2092 = vrot.lane.b32.xlu0 %v1578, 16
      %v2093 = vpop.permute.xlu0 %2092
      %2094 = vrot.lane.b32.xlu0 %v1579, 16
      %v2095 = vpop.permute.xlu0 %2094
      %2096 = vrot.lane.b32.xlu0 %v1580, 16
      %v2097 = vpop.permute.xlu0 %2096
      %2098 = vrot.lane.b32.xlu0 %v1581, 16
      %v2099 = vpop.permute.xlu0 %2098
      %2100 = vrot.lane.b32.xlu0 %v1582, 16
      %v2101 = vpop.permute.xlu0 %2100
      %2102 = vrot.lane.b32.xlu0 %v1583, 16
      %v2103 = vpop.permute.xlu0 %2102
      %2104 = vrot.lane.b32.xlu0 %v1584, 16
      %v2105 = vpop.permute.xlu0 %2104
      %2106 = vrot.lane.b32.xlu0 %v1585, 16
      %v2107 = vpop.permute.xlu0 %2106
      %2116 = vrot.lane.b32.xlu0 %v2052, 24
      %v2117 = vpop.permute.xlu0 %2116
      %2118 = vrot.lane.b32.xlu0 %v2053, 24
      %v2119 = vpop.permute.xlu0 %2118
      %2120 = vrot.lane.b32.xlu0 %v2054, 24
      %v2121 = vpop.permute.xlu0 %2120
      %2122 = vrot.lane.b32.xlu0 %v2055, 24
      %v2123 = vpop.permute.xlu0 %2122
      %2124 = vrot.lane.b32.xlu0 %v2056, 24
      %v2125 = vpop.permute.xlu0 %2124
      %2126 = vrot.lane.b32.xlu0 %v2057, 24
      %v2127 = vpop.permute.xlu0 %2126
      %2128 = vrot.lane.b32.xlu0 %v2058, 24
      %v2129 = vpop.permute.xlu0 %2128
      %2130 = vrot.lane.b32.xlu0 %v2059, 24
      %v2131 = vpop.permute.xlu0 %2130
      %v2134 = vsel %vm193, %v630, %v2069
      %v2137 = vsel %vm193, %v631, %v2071
      %v2140 = vsel %vm193, %v632, %v2073
      %v2143 = vsel %vm193, %v633, %v2075
      %v2146 = vsel %vm193, %v634, %v2077
      %v2149 = vsel %vm193, %v635, %v2079
      %v2152 = vsel %vm193, %v636, %v2081
      %v2155 = vsel %vm193, %v637, %v2083
      %vm2156 = vcmask 130048
      %v2158 = vsel %vm2156, %v2134, %v2093
      %v2160 = vsel %vm2156, %v2137, %v2095
      %v2162 = vsel %vm2156, %v2140, %v2097
      %v2164 = vsel %vm2156, %v2143, %v2099
      %v2166 = vsel %vm2156, %v2146, %v2101
      %v2168 = vsel %vm2156, %v2149, %v2103
      %v2170 = vsel %vm2156, %v2152, %v2105
      %v2172 = vsel %vm2156, %v2155, %v2107
      %vm2173 = vcmask 195584
      %v2175 = vsel %vm2173, %v2158, %v2117
      %v2177 = vsel %vm2173, %v2160, %v2119
      %v2179 = vsel %vm2173, %v2162, %v2121
      %v2181 = vsel %vm2173, %v2164, %v2123
      %v2183 = vsel %vm2173, %v2166, %v2125
      %v2185 = vsel %vm2173, %v2168, %v2127
      %v2187 = vsel %vm2173, %v2170, %v2129
      %v2189 = vsel %vm2173, %v2172, %v2131
      %v2198 = vunpack.c.l.b16 %v2175
      %v2199 = vunpack.c.h.b16 %v2175
      %v2200 = vunpack.c.l.b16 %v2177
      %v2201 = vunpack.c.h.b16 %v2177
      %v2202 = vunpack.c.l.b16 %v2179
      %v2203 = vunpack.c.h.b16 %v2179
      %v2204 = vunpack.c.l.b16 %v2181
      %v2205 = vunpack.c.h.b16 %v2181
      %v2206 = vunpack.c.l.b16 %v2183
      %v2207 = vunpack.c.h.b16 %v2183
      %v2208 = vunpack.c.l.b16 %v2185
      %v2209 = vunpack.c.h.b16 %v2185
      %v2210 = vunpack.c.l.b16 %v2187
      %v2211 = vunpack.c.h.b16 %v2187
      %v2212 = vunpack.c.l.b16 %v2189
      %v2213 = vunpack.c.h.b16 %v2189
      %v2214 = vpack.c.b16 %v2198, %v2198
      %v2215 = vpack.c.b16 %v2199, %v2199
      %v2216 = vpack.c.b16 %v2200, %v2200
      %v2217 = vpack.c.b16 %v2201, %v2201
      %v2218 = vpack.c.b16 %v2202, %v2202
      %v2219 = vpack.c.b16 %v2203, %v2203
      %v2220 = vpack.c.b16 %v2204, %v2204
      %v2221 = vpack.c.b16 %v2205, %v2205
      %v2222 = vpack.c.b16 %v2206, %v2206
      %v2223 = vpack.c.b16 %v2207, %v2207
      %v2224 = vpack.c.b16 %v2208, %v2208
      %v2225 = vpack.c.b16 %v2209, %v2209
      %v2226 = vpack.c.b16 %v2210, %v2210
      %v2227 = vpack.c.b16 %v2211, %v2211
      %v2228 = vpack.c.b16 %v2212, %v2212
      %v2229 = vpack.c.b16 %v2213, %v2213
      %vm2246 = vcmask 257024
      %2247 = vst.msk [vmem:[%s116] sm:$0xf] %vm2246, %v2214
      %2248 = vst.msk [vmem:[%s116 + $0x4] sm:$0xf] %vm2246, %v2215
      %2249 = vst.msk [vmem:[%s116 + $0x8] sm:$0xf] %vm2246, %v2216
      %2250 = vst.msk [vmem:[%s116 + $0xc] sm:$0xf] %vm2246, %v2217
      %2251 = vst.msk [vmem:[%s116 + $0x10] sm:$0xf] %vm2246, %v2218
      %2252 = vst.msk [vmem:[%s116 + $0x14] sm:$0xf] %vm2246, %v2219
      %2253 = vst.msk [vmem:[%s116 + $0x18] sm:$0xf] %vm2246, %v2220
      %2254 = vst.msk [vmem:[%s116 + $0x1c] sm:$0xf] %vm2246, %v2221
      %2255 = vst.msk [vmem:[%s116 + $0x20] sm:$0xf] %vm2246, %v2222
      %2256 = vst.msk [vmem:[%s116 + $0x24] sm:$0xf] %vm2246, %v2223
      %2257 = vst.msk [vmem:[%s116 + $0x28] sm:$0xf] %vm2246, %v2224
      %2258 = vst.msk [vmem:[%s116 + $0x2c] sm:$0xf] %vm2246, %v2225
      %2259 = vst.msk [vmem:[%s116 + $0x30] sm:$0xf] %vm2246, %v2226
      %2260 = vst.msk [vmem:[%s116 + $0x34] sm:$0xf] %vm2246, %v2227
      %2261 = vst.msk [vmem:[%s116 + $0x38] sm:$0xf] %vm2246, %v2228
      %2262 = vst.msk [vmem:[%s116 + $0x3c] sm:$0xf] %vm2246, %v2229
      %p2263 = scmp.lt.s32.totalorder %s12, 1
      %s2264 = scalar_select %p2263, %s12, 1
      %s2265 = smul.addr %s2264, 16
      %s2266 = smul.addr %s2265, 4
      %s2267 = scalar_lea.vmem %s1, %s2266
      // Predicated region
      $region25: #{vit_forward.10} parent=23 // pred_check
        %p2268 = pneg %p56
      $region26: #{vit_forward.10} parent=23 // pred_check_branch
        %2270 = sbr.rel (%p2268) target = $region28
      $region27: #{vit_forward.10} parent=23 // pred_region
        _
      $region28: #{vit_forward.10} parent=23 // pred_fallthru
        _
    $region24: #{vit_forward.10} parent=5 // pred_fallthru
      _
    %p2271 = scmp.le.s32.totalorder 2, %s7
    // Predicated region
    $region29: #{vit_forward.10} parent=5 // pred_check
      %p2272 = pneg %p2271
    $region30: #{vit_forward.10} parent=5 // pred_check_branch
      %2274 = sbr.rel (%p2272) target = $region32
    $region31: #{vit_forward.10} parent=5 // pred_region
      %s2275 = ssub.s32 %s7, 2
      // Predicated region
      $region33: #{vit_forward.10} parent=31 // pred_check
        %p2276 = pneg %p62
      $region34: #{vit_forward.10} parent=31 // pred_check_branch
        %2278 = sbr.rel (%p2276) target = $region36
      $region35: #{vit_forward.10} parent=31 // pred_region
        %p2279 = scmp.lt.s32.totalorder %s13, 1
        %s2280 = scalar_select %p2279, %s13, 1
        %s2281 = smul.addr %s2280, 16
        %s2282 = smul.addr %s2281, 4
        %s2283 = scalar_lea.vmem %s1, %s2282
      $region36: #{vit_forward.10} parent=31 // pred_fallthru
        _
    $region32: #{vit_forward.10} parent=5 // pred_fallthru
      _
  $region6: #{vit_forward.10} parent=0 // loop_footer
    %s11 = sadd.s32 1, %s7
  $region7: #{vit_forward.10} parent=0 // loop_footer_branch
    %6 = sbr.rel target = $region3
  $region8: #{vit_forward.10} parent=0 // loop_exit
    _

// kernel: vit_forward.11
$region0: #{vit_forward.11}
  #allocation0 [shape = 'u32[]', space=smem, size = 0x4, offset = 0x4, fixed_abs, tag = 'smem constant byte address 0x4 - core index']
  #allocation1 [shape = 'u32[144,128]{1,0:T(1,128)}', space=vmem, size = 0x12000, scoped, tag = 'internal scratch']
  %s0 = inlined_call_operand.vmem [shape: f32[256,32], index: 0, kind: input, shape index: {}]
  %s1 = inlined_call_operand.vmem [shape: bf16[256,32], index: 1, kind: input, shape index: {}]
  %s2 = inlined_call_operand.vmem [shape: bf16[32,32], index: 2, kind: input, shape index: {}]
  %s3 = inlined_call_operand.vmem [shape: f32[1,32], index: 3, kind: input, shape index: {}]
  %s4 = inlined_call_operand.vmem [shape: f32[1,32], index: 4, kind: input, shape index: {}]
  %s5 = inlined_call_operand.vmem [shape: f32[1,32], index: 5, kind: input, shape index: {}]
  %s6 = inlined_call_operand.vmem [shape: bf16[32,64], index: 6, kind: input, shape index: {}]
  %s7 = inlined_call_operand.vmem [shape: f32[1,64], index: 7, kind: input, shape index: {}]
  %s8 = inlined_call_operand.vmem [shape: bf16[64,32], index: 8, kind: input, shape index: {}]
  %s9 = inlined_call_operand.vmem [shape: f32[1,32], index: 9, kind: input, shape index: {}]
  %s10 = inlined_call_operand.vmem [shape: f32[256,32], index: 10, kind: output, shape index: {}]
  %s11 = sld [smem:[#allocation0]]
  $region73: #{vit_forward.11} parent=0
    _
  %s13 = ssub.s32 1, %s11
  %s14 = scalar_select 0, %s13, %s11
  loop: start=0, step=1, limit=4
  $region2: #{vit_forward.11} parent=0 // loop_pre_header
    _
  $region3: #{vit_forward.11} parent=0 // loop_header
    %s16 = sphi 0, %s20
    %p17 = scmp.ge.s32.totalorder %s16, 4
    %s26 = sphi 0, %s28
    %s29 = sphi 0, %s26
    %s30 = sphi 0, %s29
    %s46 = sphi 0, %s30
    %s52 = sphi 0, %s54
    %s55 = sphi 0, %s52
    %s56 = sphi 0, %s55
    %s72 = sphi 0, %s56
    %s76 = sphi 0, %s76
    %s78 = sphi 0, %s76
    %s79 = sphi 0, %s78
    %s93 = sphi 0, %s79
    %s97 = sphi 0, %s97
    %s99 = sphi 0, %s97
    %s100 = sphi 0, %s99
    %s114 = sphi 0, %s100
    %s118 = sphi 0, %s118
    %s120 = sphi 0, %s118
    %s121 = sphi 0, %s120
    %s135 = sphi 0, %s121
    %s139 = sphi 0, %s139
    %s141 = sphi 0, %s139
    %s142 = sphi 0, %s141
    %s156 = sphi 0, %s142
    %s160 = sphi 0, %s160
    %s162 = sphi 0, %s160
    %s163 = sphi 0, %s162
    %s177 = sphi 0, %s163
    %s181 = sphi 0, %s181
    %s183 = sphi 0, %s181
    %s184 = sphi 0, %s183
    %s198 = sphi 0, %s184
    %s202 = sphi 0, %s202
    %s204 = sphi 0, %s202
    %s205 = sphi 0, %s204
    %s219 = sphi 0, %s205
    %s223 = sphi 0, %s223
    %s225 = sphi 0, %s223
    %s226 = sphi 0, %s225
    %s240 = sphi 0, %s226
    %s246 = sphi 0, %s248
    %s249 = sphi 0, %s246
    %s250 = sphi 0, %s249
    %s266 = sphi 0, %s250
  $region4: #{vit_forward.11} parent=0 // loop_header_branch
    %19 = sbr.rel (%p17) target = $region8
  $region5: #{vit_forward.11} parent=0 // loop_body
    %s21 = ssub.s32 %s16, 1
    %s22 = ssub.s32 %s16, 2
    %s23 = sadd.s32 %s16, 1
    %s24 = ssub.s32 %s16, %s23
    %p25 = scmp.eq.s32.totalorder %s24, 0
    %s27 = sadd.s32 %s26, 1
    %s28 = scalar_select %p25, %s26, %s27
    %p31 = pneg %p25
    %p32 = scmp.eq.s32.totalorder %s16, 1
    %p33 = por %p31, %p32
    %p34 = scmp.ne.s32.totalorder %s26, %s29
    %p35 = scmp.eq.s32.totalorder %s16, 0
    %p36 = por %p34, %p35
    %p37 = scmp.ne.s32.totalorder %s26, %s29
    %p38 = scmp.eq.s32.totalorder %s21, 1
    %p39 = por %p37, %p38
    %p40 = scmp.ne.s32.totalorder %s29, %s30
    %p41 = scmp.eq.s32.totalorder %s21, 0
    %p42 = por %p40, %p41
    %p43 = scmp.ne.s32.totalorder %s29, %s30
    %p44 = scmp.eq.s32.totalorder %s22, 1
    %p45 = por %p43, %p44
    %p47 = scmp.ne.s32.totalorder %s30, %s46
    %p48 = scmp.eq.s32.totalorder %s22, 0
    %p49 = por %p47, %p48
    %s50 = ssub.s32 %s16, %s23
    %p51 = scmp.eq.s32.totalorder %s50, 0
    %s53 = sadd.s32 %s52, 1
    %s54 = scalar_select %p51, %s52, %s53
    %p57 = pneg %p51
    %p58 = scmp.eq.s32.totalorder %s16, 1
    %p59 = por %p57, %p58
    %p60 = scmp.ne.s32.totalorder %s52, %s55
    %p61 = scmp.eq.s32.totalorder %s16, 0
    %p62 = por %p60, %p61
    %p63 = scmp.ne.s32.totalorder %s52, %s55
    %p64 = scmp.eq.s32.totalorder %s21, 1
    %p65 = por %p63, %p64
    %p66 = scmp.ne.s32.totalorder %s55, %s56
    %p67 = scmp.eq.s32.totalorder %s21, 0
    %p68 = por %p66, %p67
    %p69 = scmp.ne.s32.totalorder %s55, %s56
    %p70 = scmp.eq.s32.totalorder %s22, 1
    %p71 = por %p69, %p70
    %p73 = scmp.ne.s32.totalorder %s56, %s72
    %p74 = scmp.eq.s32.totalorder %s22, 0
    %p75 = por %p73, %p74
    %s77 = sadd.s32 %s76, 1
    %p80 = scmp.eq.s32.totalorder %s16, 1
    %p81 = scmp.ne.s32.totalorder %s76, %s78
    %p82 = scmp.eq.s32.totalorder %s16, 0
    %p83 = por %p81, %p82
    %p84 = scmp.ne.s32.totalorder %s76, %s78
    %p85 = scmp.eq.s32.totalorder %s21, 1
    %p86 = por %p84, %p85
    %p87 = scmp.ne.s32.totalorder %s78, %s79
    %p88 = scmp.eq.s32.totalorder %s21, 0
    %p89 = por %p87, %p88
    %p90 = scmp.ne.s32.totalorder %s78, %s79
    %p91 = scmp.eq.s32.totalorder %s22, 1
    %p92 = por %p90, %p91
    %p94 = scmp.ne.s32.totalorder %s79, %s93
    %p95 = scmp.eq.s32.totalorder %s22, 0
    %p96 = por %p94, %p95
    %s98 = sadd.s32 %s97, 1
    %p101 = scmp.eq.s32.totalorder %s16, 1
    %p102 = scmp.ne.s32.totalorder %s97, %s99
    %p103 = scmp.eq.s32.totalorder %s16, 0
    %p104 = por %p102, %p103
    %p105 = scmp.ne.s32.totalorder %s97, %s99
    %p106 = scmp.eq.s32.totalorder %s21, 1
    %p107 = por %p105, %p106
    %p108 = scmp.ne.s32.totalorder %s99, %s100
    %p109 = scmp.eq.s32.totalorder %s21, 0
    %p110 = por %p108, %p109
    %p111 = scmp.ne.s32.totalorder %s99, %s100
    %p112 = scmp.eq.s32.totalorder %s22, 1
    %p113 = por %p111, %p112
    %p115 = scmp.ne.s32.totalorder %s100, %s114
    %p116 = scmp.eq.s32.totalorder %s22, 0
    %p117 = por %p115, %p116
    %s119 = sadd.s32 %s118, 1
    %p122 = scmp.eq.s32.totalorder %s16, 1
    %p123 = scmp.ne.s32.totalorder %s118, %s120
    %p124 = scmp.eq.s32.totalorder %s16, 0
    %p125 = por %p123, %p124
    %p126 = scmp.ne.s32.totalorder %s118, %s120
    %p127 = scmp.eq.s32.totalorder %s21, 1
    %p128 = por %p126, %p127
    %p129 = scmp.ne.s32.totalorder %s120, %s121
    %p130 = scmp.eq.s32.totalorder %s21, 0
    %p131 = por %p129, %p130
    %p132 = scmp.ne.s32.totalorder %s120, %s121
    %p133 = scmp.eq.s32.totalorder %s22, 1
    %p134 = por %p132, %p133
    %p136 = scmp.ne.s32.totalorder %s121, %s135
    %p137 = scmp.eq.s32.totalorder %s22, 0
    %p138 = por %p136, %p137
    %s140 = sadd.s32 %s139, 1
    %p143 = scmp.eq.s32.totalorder %s16, 1
    %p144 = scmp.ne.s32.totalorder %s139, %s141
    %p145 = scmp.eq.s32.totalorder %s16, 0
    %p146 = por %p144, %p145
    %p147 = scmp.ne.s32.totalorder %s139, %s141
    %p148 = scmp.eq.s32.totalorder %s21, 1
    %p149 = por %p147, %p148
    %p150 = scmp.ne.s32.totalorder %s141, %s142
    %p151 = scmp.eq.s32.totalorder %s21, 0
    %p152 = por %p150, %p151
    %p153 = scmp.ne.s32.totalorder %s141, %s142
    %p154 = scmp.eq.s32.totalorder %s22, 1
    %p155 = por %p153, %p154
    %p157 = scmp.ne.s32.totalorder %s142, %s156
    %p158 = scmp.eq.s32.totalorder %s22, 0
    %p159 = por %p157, %p158
    %s161 = sadd.s32 %s160, 1
    %p164 = scmp.eq.s32.totalorder %s16, 1
    %p165 = scmp.ne.s32.totalorder %s160, %s162
    %p166 = scmp.eq.s32.totalorder %s16, 0
    %p167 = por %p165, %p166
    %p168 = scmp.ne.s32.totalorder %s160, %s162
    %p169 = scmp.eq.s32.totalorder %s21, 1
    %p170 = por %p168, %p169
    %p171 = scmp.ne.s32.totalorder %s162, %s163
    %p172 = scmp.eq.s32.totalorder %s21, 0
    %p173 = por %p171, %p172
    %p174 = scmp.ne.s32.totalorder %s162, %s163
    %p175 = scmp.eq.s32.totalorder %s22, 1
    %p176 = por %p174, %p175
    %p178 = scmp.ne.s32.totalorder %s163, %s177
    %p179 = scmp.eq.s32.totalorder %s22, 0
    %p180 = por %p178, %p179
    %s182 = sadd.s32 %s181, 1
    %p185 = scmp.eq.s32.totalorder %s16, 1
    %p186 = scmp.ne.s32.totalorder %s181, %s183
    %p187 = scmp.eq.s32.totalorder %s16, 0
    %p188 = por %p186, %p187
    %p189 = scmp.ne.s32.totalorder %s181, %s183
    %p190 = scmp.eq.s32.totalorder %s21, 1
    %p191 = por %p189, %p190
    %p192 = scmp.ne.s32.totalorder %s183, %s184
    %p193 = scmp.eq.s32.totalorder %s21, 0
    %p194 = por %p192, %p193
    %p195 = scmp.ne.s32.totalorder %s183, %s184
    %p196 = scmp.eq.s32.totalorder %s22, 1
    %p197 = por %p195, %p196
    %p199 = scmp.ne.s32.totalorder %s184, %s198
    %p200 = scmp.eq.s32.totalorder %s22, 0
    %p201 = por %p199, %p200
    %s203 = sadd.s32 %s202, 1
    %p206 = scmp.eq.s32.totalorder %s16, 1
    %p207 = scmp.ne.s32.totalorder %s202, %s204
    %p208 = scmp.eq.s32.totalorder %s16, 0
    %p209 = por %p207, %p208
    %p210 = scmp.ne.s32.totalorder %s202, %s204
    %p211 = scmp.eq.s32.totalorder %s21, 1
    %p212 = por %p210, %p211
    %p213 = scmp.ne.s32.totalorder %s204, %s205
    %p214 = scmp.eq.s32.totalorder %s21, 0
    %p215 = por %p213, %p214
    %p216 = scmp.ne.s32.totalorder %s204, %s205
    %p217 = scmp.eq.s32.totalorder %s22, 1
    %p218 = por %p216, %p217
    %p220 = scmp.ne.s32.totalorder %s205, %s219
    %p221 = scmp.eq.s32.totalorder %s22, 0
    %p222 = por %p220, %p221
    %s224 = sadd.s32 %s223, 1
    %p227 = scmp.eq.s32.totalorder %s16, 1
    %p228 = scmp.ne.s32.totalorder %s223, %s225
    %p229 = scmp.eq.s32.totalorder %s16, 0
    %p230 = por %p228, %p229
    %p231 = scmp.ne.s32.totalorder %s223, %s225
    %p232 = scmp.eq.s32.totalorder %s21, 1
    %p233 = por %p231, %p232
    %p234 = scmp.ne.s32.totalorder %s225, %s226
    %p235 = scmp.eq.s32.totalorder %s21, 0
    %p236 = por %p234, %p235
    %p237 = scmp.ne.s32.totalorder %s225, %s226
    %p238 = scmp.eq.s32.totalorder %s22, 1
    %p239 = por %p237, %p238
    %p241 = scmp.ne.s32.totalorder %s226, %s240
    %p242 = scmp.eq.s32.totalorder %s22, 0
    %p243 = por %p241, %p242
    %s244 = ssub.s32 %s16, %s23
    %p245 = scmp.eq.s32.totalorder %s244, 0
    %s247 = sadd.s32 %s246, 1
    %s248 = scalar_select %p245, %s246, %s247
    %p251 = pneg %p245
    %p252 = scmp.eq.s32.totalorder %s16, 1
    %p253 = por %p251, %p252
    %p254 = scmp.ne.s32.totalorder %s246, %s249
    %p255 = scmp.eq.s32.totalorder %s16, 0
    %p256 = por %p254, %p255
    %p257 = scmp.ne.s32.totalorder %s246, %s249
    %p258 = scmp.eq.s32.totalorder %s21, 1
    %p259 = por %p257, %p258
    %p260 = scmp.ne.s32.totalorder %s249, %s250
    %p261 = scmp.eq.s32.totalorder %s21, 0
    %p262 = por %p260, %p261
    %p263 = scmp.ne.s32.totalorder %s249, %s250
    %p264 = scmp.eq.s32.totalorder %s22, 1
    %p265 = por %p263, %p264
    %p267 = scmp.ne.s32.totalorder %s250, %s266
    %p268 = scmp.eq.s32.totalorder %s22, 0
    %p269 = por %p267, %p268
    %p270 = scmp.le.s32.totalorder 1, %s16
    %p271 = scmp.lt.s32.totalorder %s16, 3
    %p272 = pnand %p270, %p271
    %p273 = pneg %p272
    // Predicated region
    $region9: #{vit_forward.11} parent=5 // pred_check
      _
    $region10: #{vit_forward.11} parent=5 // pred_check_branch
      %275 = sbr.rel (%p272) target = $region12
    $region11: #{vit_forward.11} parent=5 // pred_region
      %s276 = ssub.s32 %s16, 1
      // Predicated region
      $region13: #{vit_forward.11} parent=11 // pred_check
        %p277 = pneg %p89
      $region14: #{vit_forward.11} parent=11 // pred_check_branch
        %279 = sbr.rel (%p277) target = $region16
      $region15: #{vit_forward.11} parent=11 // pred_region
        _
      $region16: #{vit_forward.11} parent=11 // pred_fallthru
        _
      // Predicated region
      $region17: #{vit_forward.11} parent=11 // pred_check
        %p280 = pneg %p110
      $region18: #{vit_forward.11} parent=11 // pred_check_branch
        %282 = sbr.rel (%p280) target = $region20
      $region19: #{vit_forward.11} parent=11 // pred_region
        _
      $region20: #{vit_forward.11} parent=11 // pred_fallthru
        _
      // Predicated region
      $region21: #{vit_forward.11} parent=11 // pred_check
        %p283 = pneg %p131
      $region22: #{vit_forward.11} parent=11 // pred_check_branch
        %285 = sbr.rel (%p283) target = $region24
      $region23: #{vit_forward.11} parent=11 // pred_region
        _
      $region24: #{vit_forward.11} parent=11 // pred_fallthru
        _
      // Predicated region
      $region25: #{vit_forward.11} parent=11 // pred_check
        %p286 = pneg %p152
      $region26: #{vit_forward.11} parent=11 // pred_check_branch
        %288 = sbr.rel (%p286) target = $region28
      $region27: #{vit_forward.11} parent=11 // pred_region
        _
      $region28: #{vit_forward.11} parent=11 // pred_fallthru
        _
      // Predicated region
      $region29: #{vit_forward.11} parent=11 // pred_check
        %p289 = pneg %p173
      $region30: #{vit_forward.11} parent=11 // pred_check_branch
        %291 = sbr.rel (%p289) target = $region32
      $region31: #{vit_forward.11} parent=11 // pred_region
        _
      $region32: #{vit_forward.11} parent=11 // pred_fallthru
        _
      // Predicated region
      $region33: #{vit_forward.11} parent=11 // pred_check
        %p292 = pneg %p194
      $region34: #{vit_forward.11} parent=11 // pred_check_branch
        %294 = sbr.rel (%p292) target = $region36
      $region35: #{vit_forward.11} parent=11 // pred_region
        _
      $region36: #{vit_forward.11} parent=11 // pred_fallthru
        _
      // Predicated region
      $region37: #{vit_forward.11} parent=11 // pred_check
        %p295 = pneg %p215
      $region38: #{vit_forward.11} parent=11 // pred_check_branch
        %297 = sbr.rel (%p295) target = $region40
      $region39: #{vit_forward.11} parent=11 // pred_region
        _
      $region40: #{vit_forward.11} parent=11 // pred_fallthru
        _
      // Predicated region
      $region41: #{vit_forward.11} parent=11 // pred_check
        %p298 = pneg %p236
      $region42: #{vit_forward.11} parent=11 // pred_check_branch
        %300 = sbr.rel (%p298) target = $region44
      $region43: #{vit_forward.11} parent=11 // pred_region
        _
      $region44: #{vit_forward.11} parent=11 // pred_fallthru
        _
    $region12: #{vit_forward.11} parent=5 // pred_fallthru
      _
    %p301 = scmp.lt.s32.totalorder %s16, 2
    // Predicated region
    $region45: #{vit_forward.11} parent=5 // pred_check
      %p302 = pneg %p301
    $region46: #{vit_forward.11} parent=5 // pred_check_branch
      %304 = sbr.rel (%p302) target = $region48
    $region47: #{vit_forward.11} parent=5 // pred_region
      // Predicated region
      $region49: #{vit_forward.11} parent=47 // pred_check
        %p305 = pneg %p36
      $region50: #{vit_forward.11} parent=47 // pred_check_branch
        %307 = sbr.rel (%p305) target = $region52
      $region51: #{vit_forward.11} parent=47 // pred_region
        %s308 = smul.u32 16, %s16
        %p309 = scmp.lt.s32.totalorder %s308, 31
        %s310 = scalar_select %p309, %s308, 31
        %s311 = smul.addr %s310, 8
        %s312 = scalar_lea.vmem %s0, %s311
        %s313 = smul.u32 16, %s16
      $region52: #{vit_forward.11} parent=47 // pred_fallthru
        _
      // Predicated region
      $region53: #{vit_forward.11} parent=47 // pred_check
        %p314 = pneg %p62
      $region54: #{vit_forward.11} parent=47 // pred_check_branch
        %316 = sbr.rel (%p314) target = $region56
      $region55: #{vit_forward.11} parent=47 // pred_region
        %s317 = smul.u32 16, %s16
        %p318 = scmp.lt.s32.totalorder %s317, 31
        %s319 = scalar_select %p318, %s317, 31
        %s320 = smul.addr %s319, 4
        %s321 = scalar_lea.vmem %s1, %s320
        %s322 = smul.u32 16, %s16
      $region56: #{vit_forward.11} parent=47 // pred_fallthru
        _
    $region48: #{vit_forward.11} parent=5 // pred_fallthru
      _
    %p323 = scmp.le.s32.totalorder 1, %s16
    %p324 = scmp.lt.s32.totalorder %s16, 3
    %p325 = pnand %p323, %p324
    %p326 = pneg %p325
    // Predicated region
    $region57: #{vit_forward.11} parent=5 // pred_check
      _
    $region58: #{vit_forward.11} parent=5 // pred_check_branch
      %328 = sbr.rel (%p325) target = $region60
    $region59: #{vit_forward.11} parent=5 // pred_region
      %s329 = ssub.s32 %s16, 1
      %s330 = smul.u32 16, %s21
      %p331 = scmp.lt.s32.totalorder %s330, 31
      %s332 = scalar_select %p331, %s330, 31
      %s333 = smul.addr %s332, 8
      %s334 = scalar_lea.vmem %s0, %s333
      %p335 = pneg %p42
      %p336 = pneg %p39
      %s337 = smul.u32 16, %s21
      %p338 = scmp.lt.s32.totalorder %s337, 31
      %s339 = scalar_select %p338, %s337, 31
      %s340 = smul.addr %s339, 4
      %s341 = scalar_lea.vmem %s1, %s340
      %p342 = pneg %p68
      %p343 = pneg %p65
      %p344 = pneg %p89
      %p345 = pneg %p86
      %p346 = pneg %p110
      %p347 = pneg %p107
      %p348 = pneg %p131
      %p349 = pneg %p128
      %p350 = pneg %p152
      %p351 = pneg %p149
      %p352 = pneg %p173
      %p353 = pneg %p170
      %p354 = pneg %p194
      %p355 = pneg %p191
      %p356 = pneg %p215
      %p357 = pneg %p212
      %p358 = pneg %p236
      %p359 = pneg %p233
      %p360 = pneg %p262
      %p361 = pneg %p259
      %s362 = smul.u32 16, %s21
      %p363 = scmp.lt.s32.totalorder %s362, 31
      %s364 = scalar_select %p363, %s362, 31
      %s365 = smul.addr %s364, 8
      %s366 = scalar_lea.vmem %s10, %s365
      %s367 = smul.u32 16, %s21
      %p368 = scmp.lt.s32.totalorder %s367, 31
      %s369 = scalar_select %p368, %s367, 31
      %s370 = smul.addr %s369, 8
      %s371 = scalar_lea.vmem %s0, %s370
      %s372 = smul.u32 16, %s21
      %s373 = smul.u32 16, %s21
      %p374 = scmp.lt.s32.totalorder %s373, 31
      %s375 = scalar_select %p374, %s373, 31
      %s376 = smul.addr %s375, 4
      %s377 = scalar_lea.vmem %s1, %s376
      %s378 = smul.u32 16, %s21
      %s379 = smul.u32 16, %s21
      %p380 = scmp.lt.s32.totalorder %s379, 31
      %s381 = scalar_select %p380, %s379, 31
      %s382 = smul.addr %s381, 8
      %s383 = scalar_lea.vmem %s10, %s382
      %s384 = smul.u32 16, %s21
      %v386 = vld [vmem:[%s371] sm:$0xff]
      %v387 = vld [vmem:[%s371 + $0x8] sm:$0xff]
      %v388 = vld [vmem:[%s371 + $0x10] sm:$0xff]
      %v389 = vld [vmem:[%s371 + $0x18] sm:$0xff]
      %v390 = vld [vmem:[%s371 + $0x20] sm:$0xff]
      %v391 = vld [vmem:[%s371 + $0x28] sm:$0xff]
      %v392 = vld [vmem:[%s371 + $0x30] sm:$0xff]
      %v393 = vld [vmem:[%s371 + $0x38] sm:$0xff]
      %v394 = vld [vmem:[%s371 + $0x40] sm:$0xff]
      %v395 = vld [vmem:[%s371 + $0x48] sm:$0xff]
      %v396 = vld [vmem:[%s371 + $0x50] sm:$0xff]
      %v397 = vld [vmem:[%s371 + $0x58] sm:$0xff]
      %v398 = vld [vmem:[%s371 + $0x60] sm:$0xff]
      %v399 = vld [vmem:[%s371 + $0x68] sm:$0xff]
      %v400 = vld [vmem:[%s371 + $0x70] sm:$0xff]
      %v401 = vld [vmem:[%s371 + $0x78] sm:$0xff]
      %v402 = vld [vmem:[%s377] sm:$0xf]
      %v403 = vld [vmem:[%s377 + $0x4] sm:$0xf]
      %v404 = vld [vmem:[%s377 + $0x8] sm:$0xf]
      %v405 = vld [vmem:[%s377 + $0xc] sm:$0xf]
      %v406 = vld [vmem:[%s377 + $0x10] sm:$0xf]
      %v407 = vld [vmem:[%s377 + $0x14] sm:$0xf]
      %v408 = vld [vmem:[%s377 + $0x18] sm:$0xf]
      %v409 = vld [vmem:[%s377 + $0x1c] sm:$0xf]
      %v410 = vld [vmem:[%s377 + $0x20] sm:$0xf]
      %v411 = vld [vmem:[%s377 + $0x24] sm:$0xf]
      %v412 = vld [vmem:[%s377 + $0x28] sm:$0xf]
      %v413 = vld [vmem:[%s377 + $0x2c] sm:$0xf]
      %v414 = vld [vmem:[%s377 + $0x30] sm:$0xf]
      %v415 = vld [vmem:[%s377 + $0x34] sm:$0xf]
      %v416 = vld [vmem:[%s377 + $0x38] sm:$0xf]
      %v417 = vld [vmem:[%s377 + $0x3c] sm:$0xf]
      %v418 = vld [vmem:[%s2] sm:$0xf]
      %v419 = vld [vmem:[%s2 + $0x4] sm:$0xf]
      %v420 = vld [vmem:[%s2 + $0x8] sm:$0xf]
      %v421 = vld [vmem:[%s2 + $0xc] sm:$0xf]
      %v422 = vld [vmem:[%s3] sm:$0x1]
      %v424 = vlaneseq
      %v425 = vshrl.u32 %v424, 7
      %v426 = vsub.s32 0, %v425
      %v427 = vrot.slane %v422, %v426
      %v445 = vunpack.c.l.b16 %v402
      %v446 = vunpack.c.l.b16 %v403
      %v447 = vunpack.c.l.b16 %v404
      %v448 = vunpack.c.l.b16 %v405
      %v449 = vunpack.c.l.b16 %v406
      %v450 = vunpack.c.l.b16 %v407
      %v451 = vunpack.c.l.b16 %v408
      %v452 = vunpack.c.l.b16 %v409
      %v453 = vunpack.c.l.b16 %v410
      %v454 = vunpack.c.l.b16 %v411
      %v455 = vunpack.c.l.b16 %v412
      %v456 = vunpack.c.l.b16 %v413
      %v457 = vunpack.c.l.b16 %v414
      %v458 = vunpack.c.l.b16 %v415
      %v459 = vunpack.c.l.b16 %v416
      %v460 = vunpack.c.l.b16 %v417
      %v461 = vpack.c.b16 %v446, %v445
      %v462 = vpack.c.b16 %v448, %v447
      %v463 = vpack.c.b16 %v450, %v449
      %v464 = vpack.c.b16 %v452, %v451
      %v465 = vpack.c.b16 %v454, %v453
      %v466 = vpack.c.b16 %v456, %v455
      %v467 = vpack.c.b16 %v458, %v457
      %v468 = vpack.c.b16 %v460, %v459
      %v473 = vunpack.c.l.b16 %v418
      %v474 = vunpack.c.l.b16 %v419
      %v475 = vunpack.c.l.b16 %v420
      %v476 = vunpack.c.l.b16 %v421
      %v477 = vpack.c.b16 %v474, %v473
      %v478 = vpack.c.b16 %v476, %v475
      %vm481 = vcmask 261120
      %v483 = vsel %vm481, %v461, 0
      %v486 = vsel %vm481, %v462, 0
      %v489 = vsel %vm481, %v463, 0
      %v492 = vsel %vm481, %v464, 0
      %v495 = vsel %vm481, %v465, 0
      %v498 = vsel %vm481, %v466, 0
      %v501 = vsel %vm481, %v467, 0
      %v504 = vsel %vm481, %v468, 0
      %506 = vmatprep.subr.bf16.mxu0 0
      %507 = vmatpush1.bf16.msra.mxu0 %v477
      %508 = vmatprep.subr.bf16.mxu0 0
      %509 = vmatpush1.bf16.msra.mxu0 %v478
      %510 = vmatprep.subr.bf16.mxu0 0
      %511 = vmatpush1.bf16.msra.mxu0 0
      %512 = vmatprep.subr.bf16.mxu0 0
      %513 = vmatpush1.bf16.msra.mxu0 0
      %514 = vmatprep.subr.bf16.mxu0 0
      %515 = vmatpush1.bf16.msra.mxu0 0
      %516 = vmatprep.subr.bf16.mxu0 0
      %517 = vmatpush1.bf16.msra.mxu0 0
      %518 = vmatprep.subr.bf16.mxu0 0
      %519 = vmatpush1.bf16.msra.mxu0 0
      %520 = vmatprep.subr.bf16.mxu0 0
      %521 = vmatpush1.bf16.msra.mxu0 0
      %522 = vmatprep.subr.bf16.mxu0 0
      %523 = vmatpush1.bf16.msra.mxu0 0
      %524 = vmatprep.subr.bf16.mxu0 0
      %525 = vmatpush1.bf16.msra.mxu0 0
      %526 = vmatprep.subr.bf16.mxu0 0
      %527 = vmatpush1.bf16.msra.mxu0 0
      %528 = vmatprep.subr.bf16.mxu0 0
      %529 = vmatpush1.bf16.msra.mxu0 0
      %530 = vmatprep.subr.bf16.mxu0 0
      %531 = vmatpush1.bf16.msra.mxu0 0
      %532 = vmatprep.subr.bf16.mxu0 0
      %533 = vmatpush1.bf16.msra.mxu0 0
      %534 = vmatprep.subr.bf16.mxu0 0
      %535 = vmatpush1.bf16.msra.mxu0 0
      %536 = vmatprep.subr.bf16.mxu0 0
      %537 = vmatpush1.bf16.msra.mxu0 0
      %538 = vmatprep.mubr.bf16.mxu0 0
      %539 = vmatmul.mubr.bf16.gmra.mrb[0].mxu0 %v483
      %v540 = vpop.f32.mrb[0].mxu0
      %v541 = vadd.f32 %v427, %v540
      %v542 = vpop.f32.mrb[0].mxu0
      %v543 = vpop.f32.mrb[0].mxu0
      %v544 = vadd.f32 %v427, %v543
      %v545 = vpop.f32.mrb[0].mxu0
      %546 = vmatprep.mubr.bf16.mxu0 0
      %547 = vmatmul.mubr.bf16.gmra.mrb[0].mxu0 %v486
      %v548 = vpop.f32.mrb[0].mxu0
      %v549 = vadd.f32 %v427, %v548
      %v550 = vpop.f32.mrb[0].mxu0
      %v551 = vpop.f32.mrb[0].mxu0
      %v552 = vadd.f32 %v427, %v551
      %v553 = vpop.f32.mrb[0].mxu0
      %554 = vmatprep.mubr.bf16.mxu0 0
      %555 = vmatmul.mubr.bf16.gmra.mrb[0].mxu0 %v489
      %v556 = vpop.f32.mrb[0].mxu0
      %v557 = vadd.f32 %v427, %v556
      %v558 = vpop.f32.mrb[0].mxu0
      %v559 = vpop.f32.mrb[0].mxu0
      %v560 = vadd.f32 %v427, %v559
      %v561 = vpop.f32.mrb[0].mxu0
      %562 = vmatprep.mubr.bf16.mxu0 0
      %563 = vmatmul.mubr.bf16.gmra.mrb[0].mxu0 %v492
      %v564 = vpop.f32.mrb[0].mxu0
      %v565 = vadd.f32 %v427, %v564
      %v566 = vpop.f32.mrb[0].mxu0
      %v567 = vpop.f32.mrb[0].mxu0
      %v568 = vadd.f32 %v427, %v567
      %v569 = vpop.f32.mrb[0].mxu0
      %570 = vmatprep.mubr.bf16.mxu0 0
      %571 = vmatmul.mubr.bf16.gmra.mrb[0].mxu0 %v495
      %v572 = vpop.f32.mrb[0].mxu0
      %v573 = vadd.f32 %v427, %v572
      %v574 = vpop.f32.mrb[0].mxu0
      %v575 = vpop.f32.mrb[0].mxu0
      %v576 = vadd.f32 %v427, %v575
      %v577 = vpop.f32.mrb[0].mxu0
      %578 = vmatprep.mubr.bf16.mxu0 0
      %579 = vmatmul.mubr.bf16.gmra.mrb[0].mxu0 %v498
      %v580 = vpop.f32.mrb[0].mxu0
      %v581 = vadd.f32 %v427, %v580
      %v582 = vpop.f32.mrb[0].mxu0
      %v583 = vpop.f32.mrb[0].mxu0
      %v584 = vadd.f32 %v427, %v583
      %v585 = vpop.f32.mrb[0].mxu0
      %586 = vmatprep.mubr.bf16.mxu0 0
      %587 = vmatmul.mubr.bf16.gmra.mrb[0].mxu0 %v501
      %v588 = vpop.f32.mrb[0].mxu0
      %v589 = vadd.f32 %v427, %v588
      %v590 = vpop.f32.mrb[0].mxu0
      %v591 = vpop.f32.mrb[0].mxu0
      %v592 = vadd.f32 %v427, %v591
      %v593 = vpop.f32.mrb[0].mxu0
      %594 = vmatprep.mubr.bf16.mxu0 0
      %595 = vmatmul.mubr.bf16.gmra.mrb[0].mxu0 %v504
      %v596 = vpop.f32.mrb[0].mxu0
      %v597 = vadd.f32 %v427, %v596
      %v598 = vpop.f32.mrb[0].mxu0
      %v599 = vpop.f32.mrb[0].mxu0
      %v600 = vadd.f32 %v427, %v599
      %v601 = vpop.f32.mrb[0].mxu0
      %602 = vdwg.mxu0
      %v603 = vadd.f32 %v386, %v541
      %v604 = vadd.f32 %v387, %v544
      %v605 = vadd.f32 %v388, %v549
      %v606 = vadd.f32 %v389, %v552
      %v607 = vadd.f32 %v390, %v557
      %v608 = vadd.f32 %v391, %v560
      %v609 = vadd.f32 %v392, %v565
      %v610 = vadd.f32 %v393, %v568
      %v611 = vadd.f32 %v394, %v573
      %v612 = vadd.f32 %v395, %v576
      %v613 = vadd.f32 %v396, %v581
      %v614 = vadd.f32 %v397, %v584
      %v615 = vadd.f32 %v398, %v589
      %v616 = vadd.f32 %v399, %v592
      %v617 = vadd.f32 %v400, %v597
      %v618 = vadd.f32 %v401, %v600
      %v619 = vld [vmem:[%s4] sm:$0x1]
      %v620 = vld [vmem:[%s5] sm:$0x1]
      %v621 = vsel %vm481, %v603, 0.0
      %622 = vadd.xlane.f32.xlu0 %v621
      %v623 = vpop.xlane.xlu0 %622
      %v624 = vsel %vm481, %v604, 0.0
      %625 = vadd.xlane.f32.xlu0 %v624
      %v626 = vpop.xlane.xlu0 %625
      %v627 = vsel %vm481, %v605, 0.0
      %628 = vadd.xlane.f32.xlu0 %v627
      %v629 = vpop.xlane.xlu0 %628
      %v630 = vsel %vm481, %v606, 0.0
      %631 = vadd.xlane.f32.xlu0 %v630
      %v632 = vpop.xlane.xlu0 %631
      %v633 = vsel %vm481, %v607, 0.0
      %634 = vadd.xlane.f32.xlu0 %v633
      %v635 = vpop.xlane.xlu0 %634
      %v636 = vsel %vm481, %v608, 0.0
      %637 = vadd.xlane.f32.xlu0 %v636
      %v638 = vpop.xlane.xlu0 %637
      %v639 = vsel %vm481, %v609, 0.0
      %640 = vadd.xlane.f32.xlu0 %v639
      %v641 = vpop.xlane.xlu0 %640
      %v642 = vsel %vm481, %v610, 0.0
      %643 = vadd.xlane.f32.xlu0 %v642
      %v644 = vpop.xlane.xlu0 %643
      %v645 = vsel %vm481, %v611, 0.0
      %646 = vadd.xlane.f32.xlu0 %v645
      %v647 = vpop.xlane.xlu0 %646
      %v648 = vsel %vm481, %v612, 0.0
      %649 = vadd.xlane.f32.xlu0 %v648
      %v650 = vpop.xlane.xlu0 %649
      %v651 = vsel %vm481, %v613, 0.0
      %652 = vadd.xlane.f32.xlu0 %v651
      %v653 = vpop.xlane.xlu0 %652
      %v654 = vsel %vm481, %v614, 0.0
      %655 = vadd.xlane.f32.xlu0 %v654
      %v656 = vpop.xlane.xlu0 %655
      %v657 = vsel %vm481, %v615, 0.0
      %658 = vadd.xlane.f32.xlu0 %v657
      %v659 = vpop.xlane.xlu0 %658
      %v660 = vsel %vm481, %v616, 0.0
      %661 = vadd.xlane.f32.xlu0 %v660
      %v662 = vpop.xlane.xlu0 %661
      %v663 = vsel %vm481, %v617, 0.0
      %664 = vadd.xlane.f32.xlu0 %v663
      %v665 = vpop.xlane.xlu0 %664
      %v666 = vsel %vm481, %v618, 0.0
      %667 = vadd.xlane.f32.xlu0 %v666
      %v668 = vpop.xlane.xlu0 %667
      %v669 = vrcp.pop 32.0
      %v670 = vmul.f32 %v623, %v669
      %v671 = vmul.f32 %v626, %v669
      %v672 = vmul.f32 %v629, %v669
      %v673 = vmul.f32 %v632, %v669
      %v674 = vmul.f32 %v635, %v669
      %v675 = vmul.f32 %v638, %v669
      %v676 = vmul.f32 %v641, %v669
      %v677 = vmul.f32 %v644, %v669
      %v678 = vmul.f32 %v647, %v669
      %v679 = vmul.f32 %v650, %v669
      %v680 = vmul.f32 %v653, %v669
      %v681 = vmul.f32 %v656, %v669
      %v682 = vmul.f32 %v659, %v669
      %v683 = vmul.f32 %v662, %v669
      %v684 = vmul.f32 %v665, %v669
      %v685 = vmul.f32 %v668, %v669
      %v686 = vsub.f32 %v603, %v670
      %v687 = vsub.f32 %v604, %v671
      %v688 = vsub.f32 %v605, %v672
      %v689 = vsub.f32 %v606, %v673
      %v690 = vsub.f32 %v607, %v674
      %v691 = vsub.f32 %v608, %v675
      %v692 = vsub.f32 %v609, %v676
      %v693 = vsub.f32 %v610, %v677
      %v694 = vsub.f32 %v611, %v678
      %v695 = vsub.f32 %v612, %v679
      %v696 = vsub.f32 %v613, %v680
      %v697 = vsub.f32 %v614, %v681
      %v698 = vsub.f32 %v615, %v682
      %v699 = vsub.f32 %v616, %v683
      %v700 = vsub.f32 %v617, %v684
      %v701 = vsub.f32 %v618, %v685
      %v702 = vmul.f32 %v686, %v686
      %v703 = vmul.f32 %v687, %v687
      %v704 = vmul.f32 %v688, %v688
      %v705 = vmul.f32 %v689, %v689
      %v706 = vmul.f32 %v690, %v690
      %v707 = vmul.f32 %v691, %v691
      %v708 = vmul.f32 %v692, %v692
      %v709 = vmul.f32 %v693, %v693
      %v710 = vmul.f32 %v694, %v694
      %v711 = vmul.f32 %v695, %v695
      %v712 = vmul.f32 %v696, %v696
      %v713 = vmul.f32 %v697, %v697
      %v714 = vmul.f32 %v698, %v698
      %v715 = vmul.f32 %v699, %v699
      %v716 = vmul.f32 %v700, %v700
      %v717 = vmul.f32 %v701, %v701
      %v718 = vsel %vm481, %v702, 0.0
      %719 = vadd.xlane.f32.xlu0 %v718
      %v720 = vpop.xlane.xlu0 %719
      %v721 = vsel %vm481, %v703, 0.0
      %722 = vadd.xlane.f32.xlu0 %v721
      %v723 = vpop.xlane.xlu0 %722
      %v724 = vsel %vm481, %v704, 0.0
      %725 = vadd.xlane.f32.xlu0 %v724
      %v726 = vpop.xlane.xlu0 %725
      %v727 = vsel %vm481, %v705, 0.0
      %728 = vadd.xlane.f32.xlu0 %v727
      %v729 = vpop.xlane.xlu0 %728
      %v730 = vsel %vm481, %v706, 0.0
      %731 = vadd.xlane.f32.xlu0 %v730
      %v732 = vpop.xlane.xlu0 %731
      %v733 = vsel %vm481, %v707, 0.0
      %734 = vadd.xlane.f32.xlu0 %v733
      %v735 = vpop.xlane.xlu0 %734
      %v736 = vsel %vm481, %v708, 0.0
      %737 = vadd.xlane.f32.xlu0 %v736
      %v738 = vpop.xlane.xlu0 %737
      %v739 = vsel %vm481, %v709, 0.0
      %740 = vadd.xlane.f32.xlu0 %v739
      %v741 = vpop.xlane.xlu0 %740
      %v742 = vsel %vm481, %v710, 0.0
      %743 = vadd.xlane.f32.xlu0 %v742
      %v744 = vpop.xlane.xlu0 %743
      %v745 = vsel %vm481, %v711, 0.0
      %746 = vadd.xlane.f32.xlu0 %v745
      %v747 = vpop.xlane.xlu0 %746
      %v748 = vsel %vm481, %v712, 0.0
      %749 = vadd.xlane.f32.xlu0 %v748
      %v750 = vpop.xlane.xlu0 %749
      %v751 = vsel %vm481, %v713, 0.0
      %752 = vadd.xlane.f32.xlu0 %v751
      %v753 = vpop.xlane.xlu0 %752
      %v754 = vsel %vm481, %v714, 0.0
      %755 = vadd.xlane.f32.xlu0 %v754
      %v756 = vpop.xlane.xlu0 %755
      %v757 = vsel %vm481, %v715, 0.0
      %758 = vadd.xlane.f32.xlu0 %v757
      %v759 = vpop.xlane.xlu0 %758
      %v760 = vsel %vm481, %v716, 0.0
      %761 = vadd.xlane.f32.xlu0 %v760
      %v762 = vpop.xlane.xlu0 %761
      %v763 = vsel %vm481, %v717, 0.0
      %764 = vadd.xlane.f32.xlu0 %v763
      %v765 = vpop.xlane.xlu0 %764
      %v766 = vmul.f32 %v720, %v669
      %v767 = vmul.f32 %v723, %v669
      %v768 = vmul.f32 %v726, %v669
      %v769 = vmul.f32 %v729, %v669
      %v770 = vmul.f32 %v732, %v669
      %v771 = vmul.f32 %v735, %v669
      %v772 = vmul.f32 %v738, %v669
      %v773 = vmul.f32 %v741, %v669
      %v774 = vmul.f32 %v744, %v669
      %v775 = vmul.f32 %v747, %v669
      %v776 = vmul.f32 %v750, %v669
      %v777 = vmul.f32 %v753, %v669
      %v778 = vmul.f32 %v756, %v669
      %v779 = vmul.f32 %v759, %v669
      %v780 = vmul.f32 %v762, %v669
      %v781 = vmul.f32 %v765, %v669
      %v782 = vadd.f32 %v766, 1e-05
      %v783 = vadd.f32 %v767, 1e-05
      %v784 = vadd.f32 %v768, 1e-05
      %v785 = vadd.f32 %v769, 1e-05
      %v786 = vadd.f32 %v770, 1e-05
      %v787 = vadd.f32 %v771, 1e-05
      %v788 = vadd.f32 %v772, 1e-05
      %v789 = vadd.f32 %v773, 1e-05
      %v790 = vadd.f32 %v774, 1e-05
      %v791 = vadd.f32 %v775, 1e-05
      %v792 = vadd.f32 %v776, 1e-05
      %v793 = vadd.f32 %v777, 1e-05
      %v794 = vadd.f32 %v778, 1e-05
      %v795 = vadd.f32 %v779, 1e-05
      %v796 = vadd.f32 %v780, 1e-05
      %v797 = vadd.f32 %v781, 1e-05
      %v798 = vrsqrt.pop %v782
      %v799 = vrsqrt.pop %v783
      %v800 = vrsqrt.pop %v784
      %v801 = vrsqrt.pop %v785
      %v802 = vrsqrt.pop %v786
      %v803 = vrsqrt.pop %v787
      %v804 = vrsqrt.pop %v788
      %v805 = vrsqrt.pop %v789
      %v806 = vrsqrt.pop %v790
      %v807 = vrsqrt.pop %v791
      %v808 = vrsqrt.pop %v792
      %v809 = vrsqrt.pop %v793
      %v810 = vrsqrt.pop %v794
      %v811 = vrsqrt.pop %v795
      %v812 = vrsqrt.pop %v796
      %v813 = vrsqrt.pop %v797
      %v814 = vmul.f32 %v686, %v798
      %v815 = vmul.f32 %v687, %v799
      %v816 = vmul.f32 %v688, %v800
      %v817 = vmul.f32 %v689, %v801
      %v818 = vmul.f32 %v690, %v802
      %v819 = vmul.f32 %v691, %v803
      %v820 = vmul.f32 %v692, %v804
      %v821 = vmul.f32 %v693, %v805
      %v822 = vmul.f32 %v694, %v806
      %v823 = vmul.f32 %v695, %v807
      %v824 = vmul.f32 %v696, %v808
      %v825 = vmul.f32 %v697, %v809
      %v826 = vmul.f32 %v698, %v810
      %v827 = vmul.f32 %v699, %v811
      %v828 = vmul.f32 %v700, %v812
      %v829 = vmul.f32 %v701, %v813
      %v831 = vlaneseq
      %v832 = vshrl.u32 %v831, 7
      %v833 = vsub.s32 0, %v832
      %v834 = vrot.slane %v619, %v833
      %v836 = vmul.f32 %v814, %v834
      %v837 = vmul.f32 %v815, %v834
      %v838 = vmul.f32 %v816, %v834
      %v839 = vmul.f32 %v817, %v834
      %v840 = vmul.f32 %v818, %v834
      %v841 = vmul.f32 %v819, %v834
      %v842 = vmul.f32 %v820, %v834
      %v843 = vmul.f32 %v821, %v834
      %v844 = vmul.f32 %v822, %v834
      %v845 = vmul.f32 %v823, %v834
      %v846 = vmul.f32 %v824, %v834
      %v847 = vmul.f32 %v825, %v834
      %v848 = vmul.f32 %v826, %v834
      %v849 = vmul.f32 %v827, %v834
      %v850 = vmul.f32 %v828, %v834
      %v851 = vmul.f32 %v829, %v834
      %v853 = vlaneseq
      %v854 = vshrl.u32 %v853, 7
      %v855 = vsub.s32 0, %v854
      %v856 = vrot.slane %v620, %v855
      %v858 = vadd.f32 %v836, %v856
      %v859 = vadd.f32 %v837, %v856
      %v860 = vadd.f32 %v838, %v856
      %v861 = vadd.f32 %v839, %v856
      %v862 = vadd.f32 %v840, %v856
      %v863 = vadd.f32 %v841, %v856
      %v864 = vadd.f32 %v842, %v856
      %v865 = vadd.f32 %v843, %v856
      %v866 = vadd.f32 %v844, %v856
      %v867 = vadd.f32 %v845, %v856
      %v868 = vadd.f32 %v846, %v856
      %v869 = vadd.f32 %v847, %v856
      %v870 = vadd.f32 %v848, %v856
      %v871 = vadd.f32 %v849, %v856
      %v872 = vadd.f32 %v850, %v856
      %v873 = vadd.f32 %v851, %v856
      %v874 = vpack.c.bf16 %v859, %v858
      %v875 = vpack.c.bf16 %v861, %v860
      %v876 = vpack.c.bf16 %v863, %v862
      %v877 = vpack.c.bf16 %v865, %v864
      %v878 = vpack.c.bf16 %v867, %v866
      %v879 = vpack.c.bf16 %v869, %v868
      %v880 = vpack.c.bf16 %v871, %v870
      %v881 = vpack.c.bf16 %v873, %v872
      %v882 = vld [vmem:[%s6] sm:$0xf]
      %v883 = vld [vmem:[%s6 + $0x4] sm:$0xf]
      %v884 = vld [vmem:[%s6 + $0x8] sm:$0xf]
      %v885 = vld [vmem:[%s6 + $0xc] sm:$0xf]
      %v886 = vld [vmem:[%s7] sm:$0x1]
      %v888 = vlaneseq
      %v889 = vshrl.u32 %v888, 7
      %v890 = vsub.s32 0, %v889
      %v891 = vrot.slane %v886, %v890
      %v897 = vunpack.c.l.b16 %v882
      %v898 = vunpack.c.l.b16 %v883
      %v899 = vunpack.c.l.b16 %v884
      %v900 = vunpack.c.l.b16 %v885
      %v901 = vpack.c.b16 %v898, %v897
      %v902 = vpack.c.b16 %v900, %v899
      %v906 = vsel %vm481, %v874, 0
      %v909 = vsel %vm481, %v875, 0
      %v912 = vsel %vm481, %v876, 0
      %v915 = vsel %vm481, %v877, 0
      %v918 = vsel %vm481, %v878, 0
      %v921 = vsel %vm481, %v879, 0
      %v924 = vsel %vm481, %v880, 0
      %v927 = vsel %vm481, %v881, 0
      %929 = vmatprep.subr.bf16.mxu0 0
      %930 = vmatpush1.bf16.msra.mxu0 %v901
      %931 = vmatprep.subr.bf16.mxu0 0
      %932 = vmatpush1.bf16.msra.mxu0 %v902
      %933 = vmatprep.subr.bf16.mxu0 0
      %934 = vmatpush1.bf16.msra.mxu0 0
      %935 = vmatprep.subr.bf16.mxu0 0
      %936 = vmatpush1.bf16.msra.mxu0 0
      %937 = vmatprep.subr.bf16.mxu0 0
      %938 = vmatpush1.bf16.msra.mxu0 0
      %939 = vmatprep.subr.bf16.mxu0 0
      %940 = vmatpush1.bf16.msra.mxu0 0
      %941 = vmatprep.subr.bf16.mxu0 0
      %942 = vmatpush1.bf16.msra.mxu0 0
      %943 = vmatprep.subr.bf16.mxu0 0
      %944 = vmatpush1.bf16.msra.mxu0 0
      %945 = vmatprep.subr.bf16.mxu0 0
      %946 = vmatpush1.bf16.msra.mxu0 0
      %947 = vmatprep.subr.bf16.mxu0 0
      %948 = vmatpush1.bf16.msra.mxu0 0
      %949 = vmatprep.subr.bf16.mxu0 0
      %950 = vmatpush1.bf16.msra.mxu0 0
      %951 = vmatprep.subr.bf16.mxu0 0
      %952 = vmatpush1.bf16.msra.mxu0 0
      %953 = vmatprep.subr.bf16.mxu0 0
      %954 = vmatpush1.bf16.msra.mxu0 0
      %955 = vmatprep.subr.bf16.mxu0 0
      %956 = vmatpush1.bf16.msra.mxu0 0
      %957 = vmatprep.subr.bf16.mxu0 0
      %958 = vmatpush1.bf16.msra.mxu0 0
      %959 = vmatprep.subr.bf16.mxu0 0
      %960 = vmatpush1.bf16.msra.mxu0 0
      %961 = vmatprep.mubr.bf16.mxu0 0
      %962 = vmatmul.mubr.bf16.gmra.mrb[0].mxu0 %v906
      %v963 = vpop.f32.mrb[0].mxu0
      %v964 = vadd.f32 %v891, %v963
      %v965 = vpop.f32.mrb[0].mxu0
      %v966 = vpop.f32.mrb[0].mxu0
      %v967 = vadd.f32 %v891, %v966
      %v968 = vpop.f32.mrb[0].mxu0
      %969 = vmatprep.mubr.bf16.mxu0 0
      %970 = vmatmul.mubr.bf16.gmra.mrb[0].mxu0 %v909
      %v971 = vpop.f32.mrb[0].mxu0
      %v972 = vadd.f32 %v891, %v971
      %v973 = vpop.f32.mrb[0].mxu0
      %v974 = vpop.f32.mrb[0].mxu0
      %v975 = vadd.f32 %v891, %v974
      %v976 = vpop.f32.mrb[0].mxu0
      %977 = vmatprep.mubr.bf16.mxu0 0
      %978 = vmatmul.mubr.bf16.gmra.mrb[0].mxu0 %v912
      %v979 = vpop.f32.mrb[0].mxu0
      %v980 = vadd.f32 %v891, %v979
      %v981 = vpop.f32.mrb[0].mxu0
      %v982 = vpop.f32.mrb[0].mxu0
      %v983 = vadd.f32 %v891, %v982
      %v984 = vpop.f32.mrb[0].mxu0
      %985 = vmatprep.mubr.bf16.mxu0 0
      %986 = vmatmul.mubr.bf16.gmra.mrb[0].mxu0 %v915
      %v987 = vpop.f32.mrb[0].mxu0
      %v988 = vadd.f32 %v891, %v987
      %v989 = vpop.f32.mrb[0].mxu0
      %v990 = vpop.f32.mrb[0].mxu0
      %v991 = vadd.f32 %v891, %v990
      %v992 = vpop.f32.mrb[0].mxu0
      %993 = vmatprep.mubr.bf16.mxu0 0
      %994 = vmatmul.mubr.bf16.gmra.mrb[0].mxu0 %v918
      %v995 = vpop.f32.mrb[0].mxu0
      %v996 = vadd.f32 %v891, %v995
      %v997 = vpop.f32.mrb[0].mxu0
      %v998 = vpop.f32.mrb[0].mxu0
      %v999 = vadd.f32 %v891, %v998
      %v1000 = vpop.f32.mrb[0].mxu0
      %1001 = vmatprep.mubr.bf16.mxu0 0
      %1002 = vmatmul.mubr.bf16.gmra.mrb[0].mxu0 %v921
      %v1003 = vpop.f32.mrb[0].mxu0
      %v1004 = vadd.f32 %v891, %v1003
      %v1005 = vpop.f32.mrb[0].mxu0
      %v1006 = vpop.f32.mrb[0].mxu0
      %v1007 = vadd.f32 %v891, %v1006
      %v1008 = vpop.f32.mrb[0].mxu0
      %1009 = vmatprep.mubr.bf16.mxu0 0
      %1010 = vmatmul.mubr.bf16.gmra.mrb[0].mxu0 %v924
      %v1011 = vpop.f32.mrb[0].mxu0
      %v1012 = vadd.f32 %v891, %v1011
      %v1013 = vpop.f32.mrb[0].mxu0
      %v1014 = vpop.f32.mrb[0].mxu0
      %v1015 = vadd.f32 %v891, %v1014
      %v1016 = vpop.f32.mrb[0].mxu0
      %1017 = vmatprep.mubr.bf16.mxu0 0
      %1018 = vmatmul.mubr.bf16.gmra.mrb[0].mxu0 %v927
      %v1019 = vpop.f32.mrb[0].mxu0
      %v1020 = vadd.f32 %v891, %v1019
      %v1021 = vpop.f32.mrb[0].mxu0
      %v1022 = vpop.f32.mrb[0].mxu0
      %v1023 = vadd.f32 %v891, %v1022
      %v1024 = vpop.f32.mrb[0].mxu0
      %1025 = vdwg.mxu0
      %v1026 = vmul.f32 %v964, %v964
      %v1027 = vmul.f32 %v967, %v967
      %v1028 = vmul.f32 %v972, %v972
      %v1029 = vmul.f32 %v975, %v975
      %v1030 = vmul.f32 %v980, %v980
      %v1031 = vmul.f32 %v983, %v983
      %v1032 = vmul.f32 %v988, %v988
      %v1033 = vmul.f32 %v991, %v991
      %v1034 = vmul.f32 %v996, %v996
      %v1035 = vmul.f32 %v999, %v999
      %v1036 = vmul.f32 %v1004, %v1004
      %v1037 = vmul.f32 %v1007, %v1007
      %v1038 = vmul.f32 %v1012, %v1012
      %v1039 = vmul.f32 %v1015, %v1015
      %v1040 = vmul.f32 %v1020, %v1020
      %v1041 = vmul.f32 %v1023, %v1023
      %v1042 = vmul.f32 %v964, %v1026
      %v1043 = vmul.f32 %v967, %v1027
      %v1044 = vmul.f32 %v972, %v1028
      %v1045 = vmul.f32 %v975, %v1029
      %v1046 = vmul.f32 %v980, %v1030
      %v1047 = vmul.f32 %v983, %v1031
      %v1048 = vmul.f32 %v988, %v1032
      %v1049 = vmul.f32 %v991, %v1033
      %v1050 = vmul.f32 %v996, %v1034
      %v1051 = vmul.f32 %v999, %v1035
      %v1052 = vmul.f32 %v1004, %v1036
      %v1053 = vmul.f32 %v1007, %v1037
      %v1054 = vmul.f32 %v1012, %v1038
      %v1055 = vmul.f32 %v1015, %v1039
      %v1056 = vmul.f32 %v1020, %v1040
      %v1057 = vmul.f32 %v1023, %v1041
      %v1058 = vmul.f32 %v1042, 0.044715
      %v1059 = vmul.f32 %v1043, 0.044715
      %v1060 = vmul.f32 %v1044, 0.044715
      %v1061 = vmul.f32 %v1045, 0.044715
      %v1062 = vmul.f32 %v1046, 0.044715
      %v1063 = vmul.f32 %v1047, 0.044715
      %v1064 = vmul.f32 %v1048, 0.044715
      %v1065 = vmul.f32 %v1049, 0.044715
      %v1066 = vmul.f32 %v1050, 0.044715
      %v1067 = vmul.f32 %v1051, 0.044715
      %v1068 = vmul.f32 %v1052, 0.044715
      %v1069 = vmul.f32 %v1053, 0.044715
      %v1070 = vmul.f32 %v1054, 0.044715
      %v1071 = vmul.f32 %v1055, 0.044715
      %v1072 = vmul.f32 %v1056, 0.044715
      %v1073 = vmul.f32 %v1057, 0.044715
      %v1074 = vadd.f32 %v964, %v1058
      %v1075 = vadd.f32 %v967, %v1059
      %v1076 = vadd.f32 %v972, %v1060
      %v1077 = vadd.f32 %v975, %v1061
      %v1078 = vadd.f32 %v980, %v1062
      %v1079 = vadd.f32 %v983, %v1063
      %v1080 = vadd.f32 %v988, %v1064
      %v1081 = vadd.f32 %v991, %v1065
      %v1082 = vadd.f32 %v996, %v1066
      %v1083 = vadd.f32 %v999, %v1067
      %v1084 = vadd.f32 %v1004, %v1068
      %v1085 = vadd.f32 %v1007, %v1069
      %v1086 = vadd.f32 %v1012, %v1070
      %v1087 = vadd.f32 %v1015, %v1071
      %v1088 = vadd.f32 %v1020, %v1072
      %v1089 = vadd.f32 %v1023, %v1073
      %v1090 = vmul.f32 %v1074, 0.7978846
      %v1091 = vmul.f32 %v1075, 0.7978846
      %v1092 = vmul.f32 %v1076, 0.7978846
      %v1093 = vmul.f32 %v1077, 0.7978846
      %v1094 = vmul.f32 %v1078, 0.7978846
      %v1095 = vmul.f32 %v1079, 0.7978846
      %v1096 = vmul.f32 %v1080, 0.7978846
      %v1097 = vmul.f32 %v1081, 0.7978846
      %v1098 = vmul.f32 %v1082, 0.7978846
      %v1099 = vmul.f32 %v1083, 0.7978846
      %v1100 = vmul.f32 %v1084, 0.7978846
      %v1101 = vmul.f32 %v1085, 0.7978846
      %v1102 = vmul.f32 %v1086, 0.7978846
      %v1103 = vmul.f32 %v1087, 0.7978846
      %v1104 = vmul.f32 %v1088, 0.7978846
      %v1105 = vmul.f32 %v1089, 0.7978846
      %v1106 = vtanh.pop %v1090
      %v1107 = vtanh.pop %v1091
      %v1108 = vtanh.pop %v1092
      %v1109 = vtanh.pop %v1093
      %v1110 = vtanh.pop %v1094
      %v1111 = vtanh.pop %v1095
      %v1112 = vtanh.pop %v1096
      %v1113 = vtanh.pop %v1097
      %v1114 = vtanh.pop %v1098
      %v1115 = vtanh.pop %v1099
      %v1116 = vtanh.pop %v1100
      %v1117 = vtanh.pop %v1101
      %v1118 = vtanh.pop %v1102
      %v1119 = vtanh.pop %v1103
      %v1120 = vtanh.pop %v1104
      %v1121 = vtanh.pop %v1105
      %v1122 = vadd.f32 %v1106, 1.0
      %v1123 = vadd.f32 %v1107, 1.0
      %v1124 = vadd.f32 %v1108, 1.0
      %v1125 = vadd.f32 %v1109, 1.0
      %v1126 = vadd.f32 %v1110, 1.0
      %v1127 = vadd.f32 %v1111, 1.0
      %v1128 = vadd.f32 %v1112, 1.0
      %v1129 = vadd.f32 %v1113, 1.0
      %v1130 = vadd.f32 %v1114, 1.0
      %v1131 = vadd.f32 %v1115, 1.0
      %v1132 = vadd.f32 %v1116, 1.0
      %v1133 = vadd.f32 %v1117, 1.0
      %v1134 = vadd.f32 %v1118, 1.0
      %v1135 = vadd.f32 %v1119, 1.0
      %v1136 = vadd.f32 %v1120, 1.0
      %v1137 = vadd.f32 %v1121, 1.0
      %v1138 = vmul.f32 %v1122, 0.5
      %v1139 = vmul.f32 %v1123, 0.5
      %v1140 = vmul.f32 %v1124, 0.5
      %v1141 = vmul.f32 %v1125, 0.5
      %v1142 = vmul.f32 %v1126, 0.5
      %v1143 = vmul.f32 %v1127, 0.5
      %v1144 = vmul.f32 %v1128, 0.5
      %v1145 = vmul.f32 %v1129, 0.5
      %v1146 = vmul.f32 %v1130, 0.5
      %v1147 = vmul.f32 %v1131, 0.5
      %v1148 = vmul.f32 %v1132, 0.5
      %v1149 = vmul.f32 %v1133, 0.5
      %v1150 = vmul.f32 %v1134, 0.5
      %v1151 = vmul.f32 %v1135, 0.5
      %v1152 = vmul.f32 %v1136, 0.5
      %v1153 = vmul.f32 %v1137, 0.5
      %v1154 = vmul.f32 %v964, %v1138
      %v1155 = vmul.f32 %v967, %v1139
      %v1156 = vmul.f32 %v972, %v1140
      %v1157 = vmul.f32 %v975, %v1141
      %v1158 = vmul.f32 %v980, %v1142
      %v1159 = vmul.f32 %v983, %v1143
      %v1160 = vmul.f32 %v988, %v1144
      %v1161 = vmul.f32 %v991, %v1145
      %v1162 = vmul.f32 %v996, %v1146
      %v1163 = vmul.f32 %v999, %v1147
      %v1164 = vmul.f32 %v1004, %v1148
      %v1165 = vmul.f32 %v1007, %v1149
      %v1166 = vmul.f32 %v1012, %v1150
      %v1167 = vmul.f32 %v1015, %v1151
      %v1168 = vmul.f32 %v1020, %v1152
      %v1169 = vmul.f32 %v1023, %v1153
      %v1170 = vpack.c.bf16 %v1155, %v1154
      %v1171 = vpack.c.bf16 %v1157, %v1156
      %v1172 = vpack.c.bf16 %v1159, %v1158
      %v1173 = vpack.c.bf16 %v1161, %v1160
      %v1174 = vpack.c.bf16 %v1163, %v1162
      %v1175 = vpack.c.bf16 %v1165, %v1164
      %v1176 = vpack.c.bf16 %v1167, %v1166
      %v1177 = vpack.c.bf16 %v1169, %v1168
      %v1178 = vld [vmem:[%s8] sm:$0xf]
      %v1179 = vld [vmem:[%s8 + $0x4] sm:$0xf]
      %v1180 = vld [vmem:[%s8 + $0x8] sm:$0xf]
      %v1181 = vld [vmem:[%s8 + $0xc] sm:$0xf]
      %v1182 = vld [vmem:[%s8 + $0x10] sm:$0xf]
      %v1183 = vld [vmem:[%s8 + $0x14] sm:$0xf]
      %v1184 = vld [vmem:[%s8 + $0x18] sm:$0xf]
      %v1185 = vld [vmem:[%s8 + $0x1c] sm:$0xf]
      %v1186 = vld [vmem:[%s9] sm:$0x1]
      %v1188 = vlaneseq
      %v1189 = vshrl.u32 %v1188, 7
      %v1190 = vsub.s32 0, %v1189
      %v1191 = vrot.slane %v1186, %v1190
      %v1201 = vunpack.c.l.b16 %v1178
      %v1202 = vunpack.c.l.b16 %v1179
      %v1203 = vunpack.c.l.b16 %v1180
      %v1204 = vunpack.c.l.b16 %v1181
      %v1205 = vunpack.c.l.b16 %v1182
      %v1206 = vunpack.c.l.b16 %v1183
      %v1207 = vunpack.c.l.b16 %v1184
      %v1208 = vunpack.c.l.b16 %v1185
      %v1209 = vpack.c.b16 %v1202, %v1201
      %v1210 = vpack.c.b16 %v1204, %v1203
      %v1211 = vpack.c.b16 %v1206, %v1205
      %v1212 = vpack.c.b16 %v1208, %v1207
      %vm1217 = vcmask 523264
      %v1219 = vsel %vm1217, %v1170, 0
      %v1222 = vsel %vm1217, %v1171, 0
      %v1225 = vsel %vm1217, %v1172, 0
      %v1228 = vsel %vm1217, %v1173, 0
      %v1231 = vsel %vm1217, %v1174, 0
      %v1234 = vsel %vm1217, %v1175, 0
      %v1237 = vsel %vm1217, %v1176, 0
      %v1240 = vsel %vm1217, %v1177, 0
      %1242 = vmatprep.subr.bf16.mxu0 0
      %1243 = vmatpush1.bf16.msra.mxu0 %v1209
      %1244 = vmatprep.subr.bf16.mxu0 0
      %1245 = vmatpush1.bf16.msra.mxu0 %v1210
      %1246 = vmatprep.subr.bf16.mxu0 0
      %1247 = vmatpush1.bf16.msra.mxu0 %v1211
      %1248 = vmatprep.subr.bf16.mxu0 0
      %1249 = vmatpush1.bf16.msra.mxu0 %v1212
      %1250 = vmatprep.subr.bf16.mxu0 0
      %1251 = vmatpush1.bf16.msra.mxu0 0
      %1252 = vmatprep.subr.bf16.mxu0 0
      %1253 = vmatpush1.bf16.msra.mxu0 0
      %1254 = vmatprep.subr.bf16.mxu0 0
      %1255 = vmatpush1.bf16.msra.mxu0 0
      %1256 = vmatprep.subr.bf16.mxu0 0
      %1257 = vmatpush1.bf16.msra.mxu0 0
      %1258 = vmatprep.subr.bf16.mxu0 0
      %1259 = vmatpush1.bf16.msra.mxu0 0
      %1260 = vmatprep.subr.bf16.mxu0 0
      %1261 = vmatpush1.bf16.msra.mxu0 0
      %1262 = vmatprep.subr.bf16.mxu0 0
      %1263 = vmatpush1.bf16.msra.mxu0 0
      %1264 = vmatprep.subr.bf16.mxu0 0
      %1265 = vmatpush1.bf16.msra.mxu0 0
      %1266 = vmatprep.subr.bf16.mxu0 0
      %1267 = vmatpush1.bf16.msra.mxu0 0
      %1268 = vmatprep.subr.bf16.mxu0 0
      %1269 = vmatpush1.bf16.msra.mxu0 0
      %1270 = vmatprep.subr.bf16.mxu0 0
      %1271 = vmatpush1.bf16.msra.mxu0 0
      %1272 = vmatprep.subr.bf16.mxu0 0
      %1273 = vmatpush1.bf16.msra.mxu0 0
      %1274 = vmatprep.mubr.bf16.mxu0 0
      %1275 = vmatmul.mubr.bf16.gmra.mrb[0].mxu0 %v1219
      %v1276 = vpop.f32.mrb[0].mxu0
      %v1277 = vadd.f32 %v1191, %v1276
      %v1278 = vpop.f32.mrb[0].mxu0
      %v1279 = vpop.f32.mrb[0].mxu0
      %v1280 = vadd.f32 %v1191, %v1279
      %v1281 = vpop.f32.mrb[0].mxu0
      %1282 = vmatprep.mubr.bf16.mxu0 0
      %1283 = vmatmul.mubr.bf16.gmra.mrb[0].mxu0 %v1222
      %v1284 = vpop.f32.mrb[0].mxu0
      %v1285 = vadd.f32 %v1191, %v1284
      %v1286 = vpop.f32.mrb[0].mxu0
      %v1287 = vpop.f32.mrb[0].mxu0
      %v1288 = vadd.f32 %v1191, %v1287
      %v1289 = vpop.f32.mrb[0].mxu0
      %1290 = vmatprep.mubr.bf16.mxu0 0
      %1291 = vmatmul.mubr.bf16.gmra.mrb[0].mxu0 %v1225
      %v1292 = vpop.f32.mrb[0].mxu0
      %v1293 = vadd.f32 %v1191, %v1292
      %v1294 = vpop.f32.mrb[0].mxu0
      %v1295 = vpop.f32.mrb[0].mxu0
      %v1296 = vadd.f32 %v1191, %v1295
      %v1297 = vpop.f32.mrb[0].mxu0
      %1298 = vmatprep.mubr.bf16.mxu0 0
      %1299 = vmatmul.mubr.bf16.gmra.mrb[0].mxu0 %v1228
      %v1300 = vpop.f32.mrb[0].mxu0
      %v1301 = vadd.f32 %v1191, %v1300
      %v1302 = vpop.f32.mrb[0].mxu0
      %v1303 = vpop.f32.mrb[0].mxu0
      %v1304 = vadd.f32 %v1191, %v1303
      %v1305 = vpop.f32.mrb[0].mxu0
      %1306 = vmatprep.mubr.bf16.mxu0 0
      %1307 = vmatmul.mubr.bf16.gmra.mrb[0].mxu0 %v1231
      %v1308 = vpop.f32.mrb[0].mxu0
      %v1309 = vadd.f32 %v1191, %v1308
      %v1310 = vpop.f32.mrb[0].mxu0
      %v1311 = vpop.f32.mrb[0].mxu0
      %v1312 = vadd.f32 %v1191, %v1311
      %v1313 = vpop.f32.mrb[0].mxu0
      %1314 = vmatprep.mubr.bf16.mxu0 0
      %1315 = vmatmul.mubr.bf16.gmra.mrb[0].mxu0 %v1234
      %v1316 = vpop.f32.mrb[0].mxu0
      %v1317 = vadd.f32 %v1191, %v1316
      %v1318 = vpop.f32.mrb[0].mxu0
      %v1319 = vpop.f32.mrb[0].mxu0
      %v1320 = vadd.f32 %v1191, %v1319
      %v1321 = vpop.f32.mrb[0].mxu0
      %1322 = vmatprep.mubr.bf16.mxu0 0
      %1323 = vmatmul.mubr.bf16.gmra.mrb[0].mxu0 %v1237
      %v1324 = vpop.f32.mrb[0].mxu0
      %v1325 = vadd.f32 %v1191, %v1324
      %v1326 = vpop.f32.mrb[0].mxu0
      %v1327 = vpop.f32.mrb[0].mxu0
      %v1328 = vadd.f32 %v1191, %v1327
      %v1329 = vpop.f32.mrb[0].mxu0
      %1330 = vmatprep.mubr.bf16.mxu0 0
      %1331 = vmatmul.mubr.bf16.gmra.mrb[0].mxu0 %v1240
      %v1332 = vpop.f32.mrb[0].mxu0
      %v1333 = vadd.f32 %v1191, %v1332
      %v1334 = vpop.f32.mrb[0].mxu0
      %v1335 = vpop.f32.mrb[0].mxu0
      %v1336 = vadd.f32 %v1191, %v1335
      %v1337 = vpop.f32.mrb[0].mxu0
      %1338 = vdwg.mxu0
      %v1339 = vadd.f32 %v603, %v1277
      %v1340 = vadd.f32 %v604, %v1280
      %v1341 = vadd.f32 %v605, %v1285
      %v1342 = vadd.f32 %v606, %v1288
      %v1343 = vadd.f32 %v607, %v1293
      %v1344 = vadd.f32 %v608, %v1296
      %v1345 = vadd.f32 %v609, %v1301
      %v1346 = vadd.f32 %v610, %v1304
      %v1347 = vadd.f32 %v611, %v1309
      %v1348 = vadd.f32 %v612, %v1312
      %v1349 = vadd.f32 %v613, %v1317
      %v1350 = vadd.f32 %v614, %v1320
      %v1351 = vadd.f32 %v615, %v1325
      %v1352 = vadd.f32 %v616, %v1328
      %v1353 = vadd.f32 %v617, %v1333
      %v1354 = vadd.f32 %v618, %v1336
      %1355 = vst.msk [vmem:[%s383] sm:$0xff] %vm481, %v1339
      %1356 = vst.msk [vmem:[%s383 + $0x8] sm:$0xff] %vm481, %v1340
      %1357 = vst.msk [vmem:[%s383 + $0x10] sm:$0xff] %vm481, %v1341
      %1358 = vst.msk [vmem:[%s383 + $0x18] sm:$0xff] %vm481, %v1342
      %1359 = vst.msk [vmem:[%s383 + $0x20] sm:$0xff] %vm481, %v1343
      %1360 = vst.msk [vmem:[%s383 + $0x28] sm:$0xff] %vm481, %v1344
      %1361 = vst.msk [vmem:[%s383 + $0x30] sm:$0xff] %vm481, %v1345
      %1362 = vst.msk [vmem:[%s383 + $0x38] sm:$0xff] %vm481, %v1346
      %1363 = vst.msk [vmem:[%s383 + $0x40] sm:$0xff] %vm481, %v1347
      %1364 = vst.msk [vmem:[%s383 + $0x48] sm:$0xff] %vm481, %v1348
      %1365 = vst.msk [vmem:[%s383 + $0x50] sm:$0xff] %vm481, %v1349
      %1366 = vst.msk [vmem:[%s383 + $0x58] sm:$0xff] %vm481, %v1350
      %1367 = vst.msk [vmem:[%s383 + $0x60] sm:$0xff] %vm481, %v1351
      %1368 = vst.msk [vmem:[%s383 + $0x68] sm:$0xff] %vm481, %v1352
      %1369 = vst.msk [vmem:[%s383 + $0x70] sm:$0xff] %vm481, %v1353
      %1370 = vst.msk [vmem:[%s383 + $0x78] sm:$0xff] %vm481, %v1354
      %s1371 = smul.u32 16, %s21
      %p1372 = scmp.lt.s32.totalorder %s1371, 31
      %s1373 = scalar_select %p1372, %s1371, 31
      %s1374 = smul.addr %s1373, 8
      %s1375 = scalar_lea.vmem %s10, %s1374
      // Predicated region
      $region61: #{vit_forward.11} parent=59 // pred_check
        %p1376 = pneg %p259
      $region62: #{vit_forward.11} parent=59 // pred_check_branch
        %1378 = sbr.rel (%p1376) target = $region64
      $region63: #{vit_forward.11} parent=59 // pred_region
        %s1379 = smul.u32 16, %s21
      $region64: #{vit_forward.11} parent=59 // pred_fallthru
        _
    $region60: #{vit_forward.11} parent=5 // pred_fallthru
      _
    %p1380 = scmp.le.s32.totalorder 2, %s16
    // Predicated region
    $region65: #{vit_forward.11} parent=5 // pred_check
      %p1381 = pneg %p1380
    $region66: #{vit_forward.11} parent=5 // pred_check_branch
      %1383 = sbr.rel (%p1381) target = $region68
    $region67: #{vit_forward.11} parent=5 // pred_region
      %s1384 = ssub.s32 %s16, 2
      // Predicated region
      $region69: #{vit_forward.11} parent=67 // pred_check
        %p1385 = pneg %p265
      $region70: #{vit_forward.11} parent=67 // pred_check_branch
        %1387 = sbr.rel (%p1385) target = $region72
      $region71: #{vit_forward.11} parent=67 // pred_region
        %s1388 = smul.u32 16, %s22
        %p1389 = scmp.lt.s32.totalorder %s1388, 31
        %s1390 = scalar_select %p1389, %s1388, 31
        %s1391 = smul.addr %s1390, 8
        %s1392 = scalar_lea.vmem %s10, %s1391
      $region72: #{vit_forward.11} parent=67 // pred_fallthru
        _
    $region68: #{vit_forward.11} parent=5 // pred_fallthru
      _
  $region6: #{vit_forward.11} parent=0 // loop_footer
    %s20 = sadd.s32 1, %s16
  $region7: #{vit_forward.11} parent=0 // loop_footer_branch
    %15 = sbr.rel target = $region3
  $region8: #{vit_forward.11} parent=0 // loop_exit
    _

// kernel: vit_forward.15
$region0: #{vit_forward.15}
  #allocation0 [shape = 'u32[]', space=smem, size = 0x4, offset = 0x4, fixed_abs, tag = 'smem constant byte address 0x4 - core index']
  #allocation1 [shape = 'u32[144,128]{1,0:T(1,128)}', space=vmem, size = 0x12000, scoped, tag = 'internal scratch']
  %s0 = inlined_call_operand.vmem [shape: f32[8,32], index: 0, kind: input, shape index: {}]
  %s1 = inlined_call_operand.vmem [shape: f32[1,32], index: 1, kind: input, shape index: {}]
  %s2 = inlined_call_operand.vmem [shape: f32[1,32], index: 2, kind: input, shape index: {}]
  %s3 = inlined_call_operand.vmem [shape: bf16[32,128], index: 3, kind: input, shape index: {}]
  %s4 = inlined_call_operand.vmem [shape: f32[1,128], index: 4, kind: input, shape index: {}]
  %s5 = inlined_call_operand.vmem [shape: f32[8,128], index: 5, kind: output, shape index: {}]
  %s6 = sld [smem:[#allocation0]]
  $region30: #{vit_forward.15} parent=0
    _
  %s8 = ssub.s32 1, %s6
  %s9 = scalar_select 0, %s8, %s6
  // Predicated region
  $region2: #{vit_forward.15} parent=0 // pred_check
    _
  $region3: #{vit_forward.15} parent=0 // pred_check_branch
    %11 = sbr.rel (0) target = $region5
  $region4: #{vit_forward.15} parent=0 // pred_region
    _
  $region5: #{vit_forward.15} parent=0 // pred_fallthru
    _
  // Predicated region
  $region6: #{vit_forward.15} parent=0 // pred_check
    _
  $region7: #{vit_forward.15} parent=0 // pred_check_branch
    %13 = sbr.rel (0) target = $region9
  $region8: #{vit_forward.15} parent=0 // pred_region
    _
  $region9: #{vit_forward.15} parent=0 // pred_fallthru
    _
  // Predicated region
  $region10: #{vit_forward.15} parent=0 // pred_check
    _
  $region11: #{vit_forward.15} parent=0 // pred_check_branch
    %15 = sbr.rel (0) target = $region13
  $region12: #{vit_forward.15} parent=0 // pred_region
    _
  $region13: #{vit_forward.15} parent=0 // pred_fallthru
    _
  // Predicated region
  $region14: #{vit_forward.15} parent=0 // pred_check
    _
  $region15: #{vit_forward.15} parent=0 // pred_check_branch
    %17 = sbr.rel (0) target = $region17
  $region16: #{vit_forward.15} parent=0 // pred_region
    _
  $region17: #{vit_forward.15} parent=0 // pred_fallthru
    _
  // Predicated region
  $region18: #{vit_forward.15} parent=0 // pred_check
    _
  $region19: #{vit_forward.15} parent=0 // pred_check_branch
    %19 = sbr.rel (0) target = $region21
  $region20: #{vit_forward.15} parent=0 // pred_region
    _
  $region21: #{vit_forward.15} parent=0 // pred_fallthru
    _
  %v21 = vld [vmem:[%s0] sm:$0xff]
  %v22 = vld [vmem:[%s1] sm:$0x1]
  %v23 = vld [vmem:[%s2] sm:$0x1]
  %vm24 = vcmask 261120
  %v25 = vsel %vm24, %v21, 0.0
  %26 = vadd.xlane.f32.xlu0 %v25
  %v27 = vpop.xlane.xlu0 %26
  %v28 = vrcp.pop 32.0
  %v29 = vmul.f32 %v27, %v28
  %v30 = vsub.f32 %v21, %v29
  %v31 = vmul.f32 %v30, %v30
  %v32 = vsel %vm24, %v31, 0.0
  %33 = vadd.xlane.f32.xlu0 %v32
  %v34 = vpop.xlane.xlu0 %33
  %v35 = vmul.f32 %v34, %v28
  %v36 = vadd.f32 %v35, 1e-05
  %v37 = vrsqrt.pop %v36
  %v38 = vmul.f32 %v30, %v37
  %v40 = vlaneseq
  %v41 = vshrl.u32 %v40, 7
  %v42 = vsub.s32 0, %v41
  %v43 = vrot.slane %v22, %v42
  %v45 = vmul.f32 %v38, %v43
  %v47 = vlaneseq
  %v48 = vshrl.u32 %v47, 7
  %v49 = vsub.s32 0, %v48
  %v50 = vrot.slane %v23, %v49
  %v52 = vadd.f32 %v45, %v50
  %v53 = vpack.c.bf16 %v52, %v52
  %v54 = vld [vmem:[%s3] sm:$0xf]
  %v55 = vld [vmem:[%s3 + $0x4] sm:$0xf]
  %v56 = vld [vmem:[%s3 + $0x8] sm:$0xf]
  %v57 = vld [vmem:[%s3 + $0xc] sm:$0xf]
  %v58 = vld [vmem:[%s4] sm:$0x1]
  %v60 = vlaneseq
  %v61 = vshrl.u32 %v60, 7
  %v62 = vsub.s32 0, %v61
  %v63 = vrot.slane %v58, %v62
  %v69 = vunpack.c.l.b16 %v54
  %v70 = vunpack.c.l.b16 %v55
  %v71 = vunpack.c.l.b16 %v56
  %v72 = vunpack.c.l.b16 %v57
  %v73 = vpack.c.b16 %v70, %v69
  %v74 = vpack.c.b16 %v72, %v71
  %v78 = vsel %vm24, %v53, 0
  %80 = vmatprep.subr.bf16.mxu0 0
  %81 = vmatpush1.bf16.msra.mxu0 %v73
  %82 = vmatprep.subr.bf16.mxu0 0
  %83 = vmatpush1.bf16.msra.mxu0 %v74
  %84 = vmatprep.subr.bf16.mxu0 0
  %85 = vmatpush1.bf16.msra.mxu0 0
  %86 = vmatprep.subr.bf16.mxu0 0
  %87 = vmatpush1.bf16.msra.mxu0 0
  %88 = vmatprep.subr.bf16.mxu0 0
  %89 = vmatpush1.bf16.msra.mxu0 0
  %90 = vmatprep.subr.bf16.mxu0 0
  %91 = vmatpush1.bf16.msra.mxu0 0
  %92 = vmatprep.subr.bf16.mxu0 0
  %93 = vmatpush1.bf16.msra.mxu0 0
  %94 = vmatprep.subr.bf16.mxu0 0
  %95 = vmatpush1.bf16.msra.mxu0 0
  %96 = vmatprep.subr.bf16.mxu0 0
  %97 = vmatpush1.bf16.msra.mxu0 0
  %98 = vmatprep.subr.bf16.mxu0 0
  %99 = vmatpush1.bf16.msra.mxu0 0
  %100 = vmatprep.subr.bf16.mxu0 0
  %101 = vmatpush1.bf16.msra.mxu0 0
  %102 = vmatprep.subr.bf16.mxu0 0
  %103 = vmatpush1.bf16.msra.mxu0 0
  %104 = vmatprep.subr.bf16.mxu0 0
  %105 = vmatpush1.bf16.msra.mxu0 0
  %106 = vmatprep.subr.bf16.mxu0 0
  %107 = vmatpush1.bf16.msra.mxu0 0
  %108 = vmatprep.subr.bf16.mxu0 0
  %109 = vmatpush1.bf16.msra.mxu0 0
  %110 = vmatprep.subr.bf16.mxu0 0
  %111 = vmatpush1.bf16.msra.mxu0 0
  %112 = vmatprep.mubr.bf16.mxu0 0
  %113 = vmatmul.mubr.bf16.gmra.mrb[0].mxu0 %v78
  %v114 = vpop.f32.mrb[0].mxu0
  %v115 = vadd.f32 %v63, %v114
  %v116 = vpop.f32.mrb[0].mxu0
  %v117 = vpop.f32.mrb[0].mxu0
  %v118 = vpop.f32.mrb[0].mxu0
  %119 = vdwg.mxu0
  %120 = vst [vmem:[%s5] sm:$0xff] %v115
  // Predicated region
  $region22: #{vit_forward.15} parent=0 // pred_check
    _
  $region23: #{vit_forward.15} parent=0 // pred_check_branch
    %122 = sbr.rel (0) target = $region25
  $region24: #{vit_forward.15} parent=0 // pred_region
    _
  $region25: #{vit_forward.15} parent=0 // pred_fallthru
    _
  // Predicated region
  $region26: #{vit_forward.15} parent=0 // pred_check
    _
  $region27: #{vit_forward.15} parent=0 // pred_check_branch
    %124 = sbr.rel (0) target = $region29
  $region28: #{vit_forward.15} parent=0 // pred_region
    _
  $region29: #{vit_forward.15} parent=0 // pred_fallthru
    _

</llo_original>
